<compile_context>
chip_gen: v7x
topology: tpu7x:2x2x1
jax: 0.10.0
libtpu: 0.0.40
codegen_flags: <defaults>
</compile_context>

<pallas_src>
import jax
import jax.numpy as jnp
from jax import lax
from jax.experimental import pallas as pl
from jax.experimental.pallas import tpu as pltpu

HIDDEN = 64


def _fs(shape):
    # full-array block for a grid-less pallas_call
    return pl.BlockSpec(shape, lambda: (0,) * len(shape))


def _gate_reorder(a):
    # PyTorch LSTM gate blocks along the leading 4H axis: [i, f, g, o] -> [i, f, o, g]
    i, f, g, o = jnp.split(a, 4, axis=0)
    return jnp.concatenate([i, f, o, g], axis=0)


# --------------------------- conv stack kernel ---------------------------

def _conv_stack_kernel(x_ref, w1_ref, b1_ref, w2_ref, b2_ref, o_ref,
                       xb_scr, p1_scr, pad_scr, p2_scr):
    # x_ref  : (H, Bb, W)            f32   un-padded input images (rows h, then b)
    # w1_ref : (9, 32)               f32   conv1 taps, row k = dh*3+dw
    # b1_ref : (1, 32)               f32
    # w2_ref : (288, 64)             bf16  conv2 as one K=9*32 GEMM operand, rows (dh,dw,cin)
    # b2_ref : (1, 64)               f32
    # o_ref  : (H2, Bb, W2*64)       bf16  LSTM-ready features, rows (t=h2, b), lanes (w, c)
    # xb_scr : (H+2, Bb, W+2, 32)    f32   zero-bordered, lane-broadcast conv1 input
    # p1_scr : (H1*Bb*W, 32)         f32   H-pooled conv1, rows (h1, b, w)
    # pad_scr: (H1+2, Bb, W1+2, 32)  f32   zero-bordered conv2 input
    # p2_scr : (H2*Bb*W1, 64)        f32   H-pooled conv2, rows (h2, b, w)
    H, Bb, W = x_ref.shape
    H1, W1 = H // 2, W // 2
    H2, W2 = H1 // 2, W1 // 2
    C1 = w1_ref.shape[1]              # 32
    C2 = b2_ref.shape[1]              # 64
    f32 = jnp.float32

    # ---- conv1 input: broadcast Cin=1 -> 32 lanes ONCE; zero only the border strips
    # (interior is fully overwritten every step; borders are re-zeroed each step because
    #  the scratch is per-core under "parallel" grid semantics). ----
    xb_scr[0:1, :, :, :] = jnp.zeros((1, Bb, W + 2, C1), f32)
    xb_scr[H + 1:H + 2, :, :, :] = jnp.zeros((1, Bb, W + 2, C1), f32)
    xb_scr[:, :, 0:1, :] = jnp.zeros((H + 2, Bb, 1, C1), f32)
    xb_scr[:, :, W + 1:W + 2, :] = jnp.zeros((H + 2, Bb, 1, C1), f32)
    xb_scr[1:H + 1, :, 1:W + 1, :] = jnp.broadcast_to(
        x_ref[...][..., None], (H, Bb, W, C1))

    # ---- conv1: 9 VPU FMAs over the pre-broadcast input (K=9 would starve the MXU) ----
    w1 = w1_ref[...]
    acc1 = jnp.zeros((H, Bb, W, C1), f32)
    for k in range(9):
        dh, dw = k // 3, k % 3
        acc1 = acc1 + xb_scr[dh:dh + H, :, dw:dw + W, :] * w1[k]
    z1 = jnp.maximum(acc1 + b1_ref[...], 0.0)            # (H, Bb, W, C1)

    # ---- pool1 (2x2 max): H via leading-dim pairing, W via stride-2 VMEM reads ----
    z1p = z1.reshape(H1, 2, Bb, W, C1)
    p1_scr[...] = jnp.maximum(z1p[:, 0], z1p[:, 1]).reshape(H1 * Bb * W, C1)
    n1 = H1 * Bb * W1
    pooled1 = jnp.maximum(p1_scr[pl.ds(0, n1, stride=2), :],
                          p1_scr[pl.ds(1, n1, stride=2), :])   # rows (h1, b, w)

    # ---- conv2 input: zero-bordered scratch (padding=1), borders only ----
    pad_scr[0:1, :, :, :] = jnp.zeros((1, Bb, W1 + 2, C1), f32)
    pad_scr[H1 + 1:H1 + 2, :, :, :] = jnp.zeros((1, Bb, W1 + 2, C1), f32)
    pad_scr[:, :, 0:1, :] = jnp.zeros((H1 + 2, Bb, 1, C1), f32)
    pad_scr[:, :, W1 + 1:W1 + 2, :] = jnp.zeros((H1 + 2, Bb, 1, C1), f32)
    pad_scr[1:H1 + 1, :, 1:W1 + 1, :] = pooled1.reshape(H1, Bb, W1, C1)

    # ---- conv2: in-kernel im2col -> ONE (Bb*H1*W1, 288) x (288, 64) bf16 MXU GEMM ----
    taps = []
    for k in range(9):
        dh, dw = k // 3, k % 3
        taps.append(pad_scr[dh:dh + H1, :, dw:dw + W1, :].reshape(H1 * Bb * W1, C1))
    im2col = jnp.concatenate(taps, axis=-1).astype(jnp.bfloat16)   # single bf16 cast
    acc2 = jnp.dot(im2col, w2_ref[...], preferred_element_type=jnp.float32)
    z2 = jnp.maximum(acc2 + b2_ref[...], 0.0)             # (Bb*H1*W1, C2), rows (h, b, w)

    # ---- pool2 (2x2 max) + LSTM-ready (T=H2, Bb, W2*C2) bf16 slab ----
    z2p = z2.reshape(H2, 2, Bb * W1, C2)
    p2_scr[...] = jnp.maximum(z2p[:, 0], z2p[:, 1]).reshape(H2 * Bb * W1, C2)
    chunks = []
    for pw in range(W2):
        left = p2_scr[pl.ds(2 * pw, H2 * Bb, stride=W1), :]
        right = p2_scr[pl.ds(2 * pw + 1, H2 * Bb, stride=W1), :]
        chunks.append(jnp.maximum(left, right))
    feat = jnp.concatenate(chunks, axis=-1)               # (H2*Bb, W2*C2), rows (h2, b)
    for t in range(H2):
        o_ref[t] = feat[t * Bb:(t + 1) * Bb, :].astype(jnp.bfloat16)


def conv_stack(x_hbw, w1, b1, w2, b2, block_b=None):
    H, B, W = x_hbw.shape
    assert H % 4 == 0 and W % 8 == 0, "tiling assumes H%4==0 and W%8==0"
    H1, W1 = H // 2, W // 2
    H2, W2 = H1 // 2, W1 // 2
    F = W2 * 64
    Bb = block_b if block_b is not None else (B if B <= 8 else 8)
    assert B % Bb == 0 and (Bb == B or Bb % 8 == 0), \
        "batch block must tile B and respect the (8,128) sublane rule"
    return pl.pallas_call(
        _conv_stack_kernel,
        out_shape=jax.ShapeDtypeStruct((H2, B, F), jnp.bfloat16),
        grid=(B // Bb,),
        in_specs=[
            pl.BlockSpec((H, Bb, W), lambda g: (0, g, 0)),
            pl.BlockSpec((9, 32), lambda g: (0, 0)),
            pl.BlockSpec((1, 32), lambda g: (0, 0)),
            pl.BlockSpec((288, 64), lambda g: (0, 0)),
            pl.BlockSpec((1, 64), lambda g: (0, 0)),
        ],
        out_specs=pl.BlockSpec((H2, Bb, F), lambda g: (0, g, 0)),
        scratch_shapes=[
            pltpu.VMEM((H + 2, Bb, W + 2, 32), jnp.float32),     # xb_scr
            pltpu.VMEM((H1 * Bb * W, 32), jnp.float32),          # p1_scr
            pltpu.VMEM((H1 + 2, Bb, W1 + 2, 32), jnp.float32),   # pad_scr
            pltpu.VMEM((H2 * Bb * W1, 64), jnp.float32),         # p2_scr
        ],
        compiler_params=pltpu.CompilerParams(
            dimension_semantics=("parallel",)),
    )(x_hbw, w1, b1, w2, b2)


# --------------------------- LSTM + FC head kernel ---------------------------

def _lstm_head_kernel(x_ref, wih_ref, whh_ref, b_ref,
                      f1w_ref, f1b_ref, f2w_ref, f2b_ref, o_ref, xp_scr):
    # x_ref : (T*B, F) bf16, rows ordered (t, b)
    # wih_ref: (F, 4H) bf16   whh_ref: (H, 4H) bf16   b_ref: (1, 4H) f32
    # f1w_ref: (H, 64) f32  f1b_ref: (1, 64)  f2w_ref: (64, 1)  f2b_ref: (1, 1)
    # o_ref : (B, 1) f32      xp_scr: (T, B, 4H) f32  (aligned per-step gate reads)
    T, B, H4 = xp_scr.shape
    H = whh_ref.shape[0]

    # hoisted input projection: ONE (T*B, F) x (F, 4H) GEMM + combined biases
    xp = jnp.dot(x_ref[...], wih_ref[...],
                 preferred_element_type=jnp.float32) + b_ref[...]
    for tt in range(T):
        xp_scr[tt] = xp[tt * B:(tt + 1) * B, :]

    whh = whh_ref[...]                                   # hoisted out of the loop

    def step(t, carry):
        h, c = carry
        g = xp_scr[t] + jnp.dot(h.astype(whh.dtype), whh,
                                preferred_element_type=jnp.float32)
        # gate columns pre-permuted at trace time to [i, f, o | g]:
        # one contiguous 192-lane sigmoid + one 64-lane tanh per serial step.
        sig = jax.nn.sigmoid(g[:, :3 * H])
        i = sig[:, 0 * H:1 * H]
        f = sig[:, 1 * H:2 * H]
        o = sig[:, 2 * H:3 * H]
        gg = jnp.tanh(g[:, 3 * H:4 * H])
        c = f * c + i * gg                               # cell state kept in f32
        h = o * jnp.tanh(c)
        return h, c

    h0 = jnp.zeros((B, H), jnp.float32)
    c0 = jnp.zeros((B, H), jnp.float32)
    h, _ = lax.fori_loop(0, T, step, (h0, c0), unroll=True)

    # fused FC head (f32): fc1 + ReLU + fc2 + sigmoid on h already in VMEM
    z = jnp.maximum(jnp.dot(h, f1w_ref[...],
                            preferred_element_type=jnp.float32) + f1b_ref[...], 0.0)
    # TODO(synk): nn.Dropout(0.3) is identity in eval mode; training-mode dropout not implemented.
    logit = jnp.dot(z, f2w_ref[...],
                    preferred_element_type=jnp.float32) + f2b_ref[...]
    o_ref[...] = jax.nn.sigmoid(logit)


def lstm_head(x2d, wih, whh, bias, f1w, f1b, f2w, f2b, batch):
    TB, _ = x2d.shape
    H4 = whh.shape[1]
    T = TB // batch
    args = (x2d, wih, whh, bias, f1w, f1b, f2w, f2b)
    return pl.pallas_call(
        _lstm_head_kernel,
        out_shape=jax.ShapeDtypeStruct((batch, 1), jnp.float32),
        in_specs=[_fs(a.shape) for a in args],
        out_specs=_fs((batch, 1)),
        scratch_shapes=[pltpu.VMEM((T, batch, H4), jnp.float32)],
    )(*args)


# ------------------------------ params & forward ------------------------------

def init_params(key, input_height, input_width, hidden=HIDDEN):
    Wp = input_width // 4
    F = Wp * 64                      # lstm_input_size
    ks = jax.random.split(key, 12)

    def u(k, shape, fan_in):
        bound = 1.0 / jnp.sqrt(jnp.float32(fan_in))
        return jax.random.uniform(k, shape, jnp.float32, -bound, bound)

    return dict(
        # conv weights stored HWIO (== PyTorch OIHW transposed (2,3,1,0))
        w1=u(ks[0], (3, 3, 1, 32), 9 * 1),
        b1=u(ks[1], (32,), 9 * 1),
        w2=u(ks[2], (3, 3, 32, 64), 9 * 32),
        b2=u(ks[3], (64,), 9 * 32),
        # LSTM params in PyTorch layout: weight_ih (4H, F), weight_hh (4H, H), biases (4H,)
        w_ih=u(ks[4], (4 * hidden, F), hidden),
        w_hh=u(ks[5], (4 * hidden, hidden), hidden),
        b_ih=u(ks[6], (4 * hidden,), hidden),
        b_hh=u(ks[7], (4 * hidden,), hidden),
        # Linear params in PyTorch (out, in) layout
        fc1_w=u(ks[8], (64, hidden), hidden),
        fc1_b=u(ks[9], (64,), hidden),
        fc2_w=u(ks[10], (1, 64), 64),
        fc2_b=u(ks[11], (1,), 64),
    )


def cnn_lstm_forward(x_nchw, params):
    hidden = HIDDEN
    B = x_nchw.shape[0]
    # (B,1,H,W) -> (H, B, W): the conv kernel works h-major so its output already IS
    # the LSTM's (T, B, F) bf16 layout (no XLA transpose / cast between the kernels).
    x_hbw = jnp.transpose(x_nchw[:, 0, :, :], (1, 0, 2)).astype(jnp.float32)

    w1 = params["w1"].reshape(9, 32)                              # (dh,dw) taps
    b1 = params["b1"].reshape(1, 32)
    w2 = params["w2"].reshape(9 * 32, 64).astype(jnp.bfloat16)    # one K=288 GEMM operand
    b2 = params["b2"].reshape(1, 64)

    feats = conv_stack(x_hbw, w1, b1, w2, b2)                     # (T, B, F) bf16, lanes (w, c)
    T, F = feats.shape[0], feats.shape[2]
    Wp = F // 64
    x2d = feats.reshape(T * B, F)                                 # free reshape, rows (t, b)

    # LSTM weights: PyTorch (4H, F) gate blocks [i,f,g,o] -> reorder to [i,f,o,g] and
    # permute the feature axis from PyTorch's (c, w) flatten order (permute(0,2,1,3))
    # to the kernel's (w, c) lane order.  Pure trace-time parameter plumbing.
    w_ih = _gate_reorder(params["w_ih"])
    w_hh = _gate_reorder(params["w_hh"])
    bsum = _gate_reorder(params["b_ih"] + params["b_hh"])
    wih = w_ih.T.reshape(64, Wp, 4 * hidden).transpose(1, 0, 2)
    wih = wih.reshape(F, 4 * hidden).astype(jnp.bfloat16)
    whh = w_hh.T.astype(jnp.bfloat16)                             # (H, 4H)
    bias = bsum.reshape(1, 4 * hidden)

    out = lstm_head(x2d, wih, whh, bias,
                    params["fc1_w"].T, params["fc1_b"].reshape(1, -1),
                    params["fc2_w"].T, params["fc2_b"].reshape(1, 1), B)
    return out


# ------------------------------ pure-JAX reference ------------------------------

def reference_forward(x_nchw, params):
    hidden = HIDDEN
    x = jnp.transpose(x_nchw, (0, 2, 3, 1)).astype(jnp.float32)   # NHWC
    dn = ("NHWC", "HWIO", "NHWC")
    y = lax.conv_general_dilated(x, params["w1"], (1, 1), "SAME", dimension_numbers=dn)
    y = jnp.maximum(y + params["b1"], 0.0)
    Bn, Hc, Wc, Cc = y.shape
    y = y.reshape(Bn, Hc // 2, 2, Wc // 2, 2, Cc).max(axis=(2, 4))
    y = lax.conv_general_dilated(y, params["w2"], (1, 1), "SAME", dimension_numbers=dn)
    y = jnp.maximum(y + params["b2"], 0.0)
    Bn, Hc, Wc, Cc = y.shape
    y = y.reshape(Bn, Hc // 2, 2, Wc // 2, 2, Cc).max(axis=(2, 4))   # (B, H2, W2, 64)
    # PyTorch: NCHW -> permute(0,2,1,3) -> (B, H2, C, W2) -> flatten (c, w)
    feats = jnp.transpose(y, (0, 1, 3, 2)).reshape(y.shape[0], y.shape[1], -1)
    B_, T = feats.shape[0], feats.shape[1]
    w_ih, w_hh = params["w_ih"], params["w_hh"]
    bsum = params["b_ih"] + params["b_hh"]
    h = jnp.zeros((B_, hidden), jnp.float32)
    c = jnp.zeros((B_, hidden), jnp.float32)
    for t in range(T):
        g = feats[:, t, :] @ w_ih.T + h @ w_hh.T + bsum
        i = jax.nn.sigmoid(g[:, :hidden])
        f = jax.nn.sigmoid(g[:, hidden:2 * hidden])
        gg = jnp.tanh(g[:, 2 * hidden:3 * hidden])
        o = jax.nn.sigmoid(g[:, 3 * hidden:])
        c = f * c + i * gg
        h = o * jnp.tanh(c)
    z = jnp.maximum(h @ params["fc1_w"].T + params["fc1_b"], 0.0)
    return jax.nn.sigmoid(z @ params["fc2_w"].T + params["fc2_b"])


if __name__ == "__main__":
    key = jax.random.PRNGKey(0)
    k_x, k_p = jax.random.split(key)

    B, Hin, Win = 2, 16, 16
    x = jax.random.normal(k_x, (B, 1, Hin, Win), jnp.float32)     # NCHW, 1 input channel
    params = init_params(k_p, Hin, Win)

    out = jax.jit(cnn_lstm_forward)(x, params)
    out = jax.block_until_ready(out)

    ref = jax.jit(reference_forward)(x, params)
    ref = jax.block_until_ready(ref)

    assert out.shape == (B, 1), out.shape
    assert bool(jnp.all(jnp.isfinite(out)))
    assert bool(jnp.all((out > 0.0) & (out < 1.0)))               # sigmoid output range
    assert float(jnp.max(jnp.abs(out - ref))) < 2e-2              # bf16 GEMMs vs f32 ref
    print("KERNEL_OK")
</pallas_src>

<mosaic_0001>
module attributes {stable_mosaic.version = 11 : i64} {
  func.func @_conv_stack_kernel(%arg0: i32, %arg1: memref<16x2x16xf32, #tpu.memory_space<vmem>>, %arg2: memref<9x32xf32, #tpu.memory_space<vmem>>, %arg3: memref<1x32xf32, #tpu.memory_space<vmem>>, %arg4: memref<288x64xbf16, #tpu.memory_space<vmem>>, %arg5: memref<1x64xf32, #tpu.memory_space<vmem>>, %arg6: memref<4x2x256xbf16, #tpu.memory_space<vmem>>, %arg7: memref<18x2x18x32xf32, #tpu.memory_space<vmem>>, %arg8: memref<256x32xf32, #tpu.memory_space<vmem>>, %arg9: memref<10x2x10x32xf32, #tpu.memory_space<vmem>>, %arg10: memref<64x64xf32, #tpu.memory_space<vmem>>) attributes {dimension_semantics = [#tpu.dimension_semantics<parallel>], iteration_bounds = array<i64: 1>, scalar_prefetch = 0 : i64, scratch_operands = 4 : i64, tpu.core_type = #tpu.core_type<tc>, window_params = [{transform_indices = @transform_0, window_bounds = array<i64: 16, 2, 16>}, {pipeline_mode = #tpu.pipeline_mode<synchronous>, transform_indices = @transform_1, window_bounds = array<i64: 9, 32>}, {pipeline_mode = #tpu.pipeline_mode<synchronous>, transform_indices = @transform_2, window_bounds = array<i64: 1, 32>}, {pipeline_mode = #tpu.pipeline_mode<synchronous>, transform_indices = @transform_3, window_bounds = array<i64: 288, 64>}, {pipeline_mode = #tpu.pipeline_mode<synchronous>, transform_indices = @transform_4, window_bounds = array<i64: 1, 64>}, {transform_indices = @transform_5, window_bounds = array<i64: 4, 2, 256>}]} {
    %cst = arith.constant 0.000000e+00 : f32
    %0 = vector.broadcast %cst : f32 to vector<1x2x18x32xf32>
    %c0 = arith.constant 0 : index
    %c0_0 = arith.constant 0 : index
    %c0_1 = arith.constant 0 : index
    %c0_2 = arith.constant 0 : index
    %1 = vector.load %arg7[%c0, %c0_0, %c0_1, %c0_2] : memref<18x2x18x32xf32, #tpu.memory_space<vmem>>, vector<1x2x18x32xf32>
    tpu.vector_store %arg7[%c0, %c0_0, %c0_1, %c0_2], %0 {strides = array<i32>} : memref<18x2x18x32xf32, #tpu.memory_space<vmem>>, vector<1x2x18x32xf32>,
    %cst_3 = arith.constant 0.000000e+00 : f32
    %2 = vector.broadcast %cst_3 : f32 to vector<1x2x18x32xf32>
    %c17 = arith.constant 17 : index
    %c0_4 = arith.constant 0 : index
    %c0_5 = arith.constant 0 : index
    %c0_6 = arith.constant 0 : index
    %3 = vector.load %arg7[%c17, %c0_4, %c0_5, %c0_6] : memref<18x2x18x32xf32, #tpu.memory_space<vmem>>, vector<1x2x18x32xf32>
    tpu.vector_store %arg7[%c17, %c0_4, %c0_5, %c0_6], %2 {strides = array<i32>} : memref<18x2x18x32xf32, #tpu.memory_space<vmem>>, vector<1x2x18x32xf32>,
    %cst_7 = arith.constant 0.000000e+00 : f32
    %4 = vector.broadcast %cst_7 : f32 to vector<18x2x1x32xf32>
    %c0_8 = arith.constant 0 : index
    %c0_9 = arith.constant 0 : index
    %c0_10 = arith.constant 0 : index
    %c0_11 = arith.constant 0 : index
    %5 = vector.load %arg7[%c0_8, %c0_9, %c0_10, %c0_11] : memref<18x2x18x32xf32, #tpu.memory_space<vmem>>, vector<18x2x1x32xf32>
    tpu.vector_store %arg7[%c0_8, %c0_9, %c0_10, %c0_11], %4 {strides = array<i32>} : memref<18x2x18x32xf32, #tpu.memory_space<vmem>>, vector<18x2x1x32xf32>,
    %cst_12 = arith.constant 0.000000e+00 : f32
    %6 = vector.broadcast %cst_12 : f32 to vector<18x2x1x32xf32>
    %c0_13 = arith.constant 0 : index
    %c0_14 = arith.constant 0 : index
    %c17_15 = arith.constant 17 : index
    %c0_16 = arith.constant 0 : index
    %7 = vector.load %arg7[%c0_13, %c0_14, %c17_15, %c0_16] : memref<18x2x18x32xf32, #tpu.memory_space<vmem>>, vector<18x2x1x32xf32>
    tpu.vector_store %arg7[%c0_13, %c0_14, %c17_15, %c0_16], %6 {strides = array<i32>} : memref<18x2x18x32xf32, #tpu.memory_space<vmem>>, vector<18x2x1x32xf32>,
    %c0_17 = arith.constant 0 : index
    %c0_18 = arith.constant 0 : index
    %c0_19 = arith.constant 0 : index
    %8 = vector.load %arg1[%c0_17, %c0_18, %c0_19] : memref<16x2x16xf32, #tpu.memory_space<vmem>>, vector<16x2x16xf32>
    %9 = vector.shape_cast %8 : vector<16x2x16xf32> to vector<16x2x16x1xf32>
    %10 = vector.shape_cast %9 : vector<16x2x16x1xf32> to vector<16x2x16x1xf32>
    %11 = vector.broadcast %10 : vector<16x2x16x1xf32> to vector<16x2x16x32xf32>
    %c1 = arith.constant 1 : index
    %c0_20 = arith.constant 0 : index
    %c1_21 = arith.constant 1 : index
    %c0_22 = arith.constant 0 : index
    %12 = vector.load %arg7[%c1, %c0_20, %c1_21, %c0_22] : memref<18x2x18x32xf32, #tpu.memory_space<vmem>>, vector<16x2x16x32xf32>
    tpu.vector_store %arg7[%c1, %c0_20, %c1_21, %c0_22], %11 {strides = array<i32>} : memref<18x2x18x32xf32, #tpu.memory_space<vmem>>, vector<16x2x16x32xf32>,
    %c0_23 = arith.constant 0 : index
    %c0_24 = arith.constant 0 : index
    %13 = vector.load %arg2[%c0_23, %c0_24] : memref<9x32xf32, #tpu.memory_space<vmem>>, vector<9x32xf32>
    %cst_25 = arith.constant 0.000000e+00 : f32
    %14 = vector.broadcast %cst_25 : f32 to vector<16x2x16x32xf32>
    %c0_26 = arith.constant 0 : index
    %c0_27 = arith.constant 0 : index
    %c0_28 = arith.constant 0 : index
    %c0_29 = arith.constant 0 : index
    %15 = vector.load %arg7[%c0_26, %c0_27, %c0_28, %c0_29] : memref<18x2x18x32xf32, #tpu.memory_space<vmem>>, vector<16x2x16x32xf32>
    %16 = vector.extract_strided_slice %13 {offsets = [0, 0], sizes = [1, 32], strides = [1, 1]} : vector<9x32xf32> to vector<1x32xf32>
    %17 = vector.shape_cast %16 : vector<1x32xf32> to vector<32xf32>
    %18 = vector.shape_cast %17 : vector<32xf32> to vector<1x1x1x32xf32>
    %19 = vector.broadcast %18 : vector<1x1x1x32xf32> to vector<16x2x16x32xf32>
    %20 = arith.mulf %15, %19 : vector<16x2x16x32xf32>
    %21 = arith.addf %14, %20 : vector<16x2x16x32xf32>
    %c0_30 = arith.constant 0 : index
    %c0_31 = arith.constant 0 : index
    %c1_32 = arith.constant 1 : index
    %c0_33 = arith.constant 0 : index
    %22 = vector.load %arg7[%c0_30, %c0_31, %c1_32, %c0_33] : memref<18x2x18x32xf32, #tpu.memory_space<vmem>>, vector<16x2x16x32xf32>
    %23 = vector.extract_strided_slice %13 {offsets = [1, 0], sizes = [1, 32], strides = [1, 1]} : vector<9x32xf32> to vector<1x32xf32>
    %24 = vector.shape_cast %23 : vector<1x32xf32> to vector<32xf32>
    %25 = vector.shape_cast %24 : vector<32xf32> to vector<1x1x1x32xf32>
    %26 = vector.broadcast %25 : vector<1x1x1x32xf32> to vector<16x2x16x32xf32>
    %27 = arith.mulf %22, %26 : vector<16x2x16x32xf32>
    %28 = arith.addf %21, %27 : vector<16x2x16x32xf32>
    %c0_34 = arith.constant 0 : index
    %c0_35 = arith.constant 0 : index
    %c2 = arith.constant 2 : index
    %c0_36 = arith.constant 0 : index
    %29 = vector.load %arg7[%c0_34, %c0_35, %c2, %c0_36] : memref<18x2x18x32xf32, #tpu.memory_space<vmem>>, vector<16x2x16x32xf32>
    %30 = vector.extract_strided_slice %13 {offsets = [2, 0], sizes = [1, 32], strides = [1, 1]} : vector<9x32xf32> to vector<1x32xf32>
    %31 = vector.shape_cast %30 : vector<1x32xf32> to vector<32xf32>
    %32 = vector.shape_cast %31 : vector<32xf32> to vector<1x1x1x32xf32>
    %33 = vector.broadcast %32 : vector<1x1x1x32xf32> to vector<16x2x16x32xf32>
    %34 = arith.mulf %29, %33 : vector<16x2x16x32xf32>
    %35 = arith.addf %28, %34 : vector<16x2x16x32xf32>
    %c1_37 = arith.constant 1 : index
    %c0_38 = arith.constant 0 : index
    %c0_39 = arith.constant 0 : index
    %c0_40 = arith.constant 0 : index
    %36 = vector.load %arg7[%c1_37, %c0_38, %c0_39, %c0_40] : memref<18x2x18x32xf32, #tpu.memory_space<vmem>>, vector<16x2x16x32xf32>
    %37 = vector.extract_strided_slice %13 {offsets = [3, 0], sizes = [1, 32], strides = [1, 1]} : vector<9x32xf32> to vector<1x32xf32>
    %38 = vector.shape_cast %37 : vector<1x32xf32> to vector<32xf32>
    %39 = vector.shape_cast %38 : vector<32xf32> to vector<1x1x1x32xf32>
    %40 = vector.broadcast %39 : vector<1x1x1x32xf32> to vector<16x2x16x32xf32>
    %41 = arith.mulf %36, %40 : vector<16x2x16x32xf32>
    %42 = arith.addf %35, %41 : vector<16x2x16x32xf32>
    %c1_41 = arith.constant 1 : index
    %c0_42 = arith.constant 0 : index
    %c1_43 = arith.constant 1 : index
    %c0_44 = arith.constant 0 : index
    %43 = vector.load %arg7[%c1_41, %c0_42, %c1_43, %c0_44] : memref<18x2x18x32xf32, #tpu.memory_space<vmem>>, vector<16x2x16x32xf32>
    %44 = vector.extract_strided_slice %13 {offsets = [4, 0], sizes = [1, 32], strides = [1, 1]} : vector<9x32xf32> to vector<1x32xf32>
    %45 = vector.shape_cast %44 : vector<1x32xf32> to vector<32xf32>
    %46 = vector.shape_cast %45 : vector<32xf32> to vector<1x1x1x32xf32>
    %47 = vector.broadcast %46 : vector<1x1x1x32xf32> to vector<16x2x16x32xf32>
    %48 = arith.mulf %43, %47 : vector<16x2x16x32xf32>
    %49 = arith.addf %42, %48 : vector<16x2x16x32xf32>
    %c1_45 = arith.constant 1 : index
    %c0_46 = arith.constant 0 : index
    %c2_47 = arith.constant 2 : index
    %c0_48 = arith.constant 0 : index
    %50 = vector.load %arg7[%c1_45, %c0_46, %c2_47, %c0_48] : memref<18x2x18x32xf32, #tpu.memory_space<vmem>>, vector<16x2x16x32xf32>
    %51 = vector.extract_strided_slice %13 {offsets = [5, 0], sizes = [1, 32], strides = [1, 1]} : vector<9x32xf32> to vector<1x32xf32>
    %52 = vector.shape_cast %51 : vector<1x32xf32> to vector<32xf32>
    %53 = vector.shape_cast %52 : vector<32xf32> to vector<1x1x1x32xf32>
    %54 = vector.broadcast %53 : vector<1x1x1x32xf32> to vector<16x2x16x32xf32>
    %55 = arith.mulf %50, %54 : vector<16x2x16x32xf32>
    %56 = arith.addf %49, %55 : vector<16x2x16x32xf32>
    %c2_49 = arith.constant 2 : index
    %c0_50 = arith.constant 0 : index
    %c0_51 = arith.constant 0 : index
    %c0_52 = arith.constant 0 : index
    %57 = vector.load %arg7[%c2_49, %c0_50, %c0_51, %c0_52] : memref<18x2x18x32xf32, #tpu.memory_space<vmem>>, vector<16x2x16x32xf32>
    %58 = vector.extract_strided_slice %13 {offsets = [6, 0], sizes = [1, 32], strides = [1, 1]} : vector<9x32xf32> to vector<1x32xf32>
    %59 = vector.shape_cast %58 : vector<1x32xf32> to vector<32xf32>
    %60 = vector.shape_cast %59 : vector<32xf32> to vector<1x1x1x32xf32>
    %61 = vector.broadcast %60 : vector<1x1x1x32xf32> to vector<16x2x16x32xf32>
    %62 = arith.mulf %57, %61 : vector<16x2x16x32xf32>
    %63 = arith.addf %56, %62 : vector<16x2x16x32xf32>
    %c2_53 = arith.constant 2 : index
    %c0_54 = arith.constant 0 : index
    %c1_55 = arith.constant 1 : index
    %c0_56 = arith.constant 0 : index
    %64 = vector.load %arg7[%c2_53, %c0_54, %c1_55, %c0_56] : memref<18x2x18x32xf32, #tpu.memory_space<vmem>>, vector<16x2x16x32xf32>
    %65 = vector.extract_strided_slice %13 {offsets = [7, 0], sizes = [1, 32], strides = [1, 1]} : vector<9x32xf32> to vector<1x32xf32>
    %66 = vector.shape_cast %65 : vector<1x32xf32> to vector<32xf32>
    %67 = vector.shape_cast %66 : vector<32xf32> to vector<1x1x1x32xf32>
    %68 = vector.broadcast %67 : vector<1x1x1x32xf32> to vector<16x2x16x32xf32>
    %69 = arith.mulf %64, %68 : vector<16x2x16x32xf32>
    %70 = arith.addf %63, %69 : vector<16x2x16x32xf32>
    %c2_57 = arith.constant 2 : index
    %c0_58 = arith.constant 0 : index
    %c2_59 = arith.constant 2 : index
    %c0_60 = arith.constant 0 : index
    %71 = vector.load %arg7[%c2_57, %c0_58, %c2_59, %c0_60] : memref<18x2x18x32xf32, #tpu.memory_space<vmem>>, vector<16x2x16x32xf32>
    %72 = vector.extract_strided_slice %13 {offsets = [8, 0], sizes = [1, 32], strides = [1, 1]} : vector<9x32xf32> to vector<1x32xf32>
    %73 = vector.shape_cast %72 : vector<1x32xf32> to vector<32xf32>
    %74 = vector.shape_cast %73 : vector<32xf32> to vector<1x1x1x32xf32>
    %75 = vector.broadcast %74 : vector<1x1x1x32xf32> to vector<16x2x16x32xf32>
    %76 = arith.mulf %71, %75 : vector<16x2x16x32xf32>
    %77 = arith.addf %70, %76 : vector<16x2x16x32xf32>
    %c0_61 = arith.constant 0 : index
    %c0_62 = arith.constant 0 : index
    %78 = vector.load %arg3[%c0_61, %c0_62] : memref<1x32xf32, #tpu.memory_space<vmem>>, vector<1x32xf32>
    %79 = vector.shape_cast %78 : vector<1x32xf32> to vector<1x1x1x32xf32>
    %80 = vector.broadcast %79 : vector<1x1x1x32xf32> to vector<16x2x16x32xf32>
    %81 = arith.addf %77, %80 : vector<16x2x16x32xf32>
    %cst_63 = arith.constant 0.000000e+00 : f32
    %82 = vector.broadcast %cst_63 : f32 to vector<16x2x16x32xf32>
    %83 = arith.maximumf %81, %82 : vector<16x2x16x32xf32>
    %84 = vector.shape_cast %83 : vector<16x2x16x32xf32> to vector<8x2x2x16x32xf32>
    %85 = vector.extract_strided_slice %84 {offsets = [0, 0, 0, 0, 0], sizes = [8, 1, 2, 16, 32], strides = [1, 1, 1, 1, 1]} : vector<8x2x2x16x32xf32> to vector<8x1x2x16x32xf32>
    %86 = vector.shape_cast %85 : vector<8x1x2x16x32xf32> to vector<8x2x16x32xf32>
    %87 = vector.extract_strided_slice %84 {offsets = [0, 1, 0, 0, 0], sizes = [8, 1, 2, 16, 32], strides = [1, 1, 1, 1, 1]} : vector<8x2x2x16x32xf32> to vector<8x1x2x16x32xf32>
    %88 = vector.shape_cast %87 : vector<8x1x2x16x32xf32> to vector<8x2x16x32xf32>
    %89 = arith.maximumf %86, %88 : vector<8x2x16x32xf32>
    %90 = vector.shape_cast %89 : vector<8x2x16x32xf32> to vector<256x32xf32>
    %c0_64 = arith.constant 0 : index
    %c0_65 = arith.constant 0 : index
    %91 = vector.load %arg8[%c0_64, %c0_65] : memref<256x32xf32, #tpu.memory_space<vmem>>, vector<256x32xf32>
    tpu.vector_store %arg8[%c0_64, %c0_65], %90 {strides = array<i32>} : memref<256x32xf32, #tpu.memory_space<vmem>>, vector<256x32xf32>,
    %c0_66 = arith.constant 0 : index
    %c0_67 = arith.constant 0 : index
    %92 = tpu.strided_load %arg8[%c0_66, %c0_67] {strides = array<i32: 2, 1>} : memref<256x32xf32, #tpu.memory_space<vmem>>, vector<128x32xf32>
    %c1_68 = arith.constant 1 : index
    %c0_69 = arith.constant 0 : index
    %93 = tpu.strided_load %arg8[%c1_68, %c0_69] {strides = array<i32: 2, 1>} : memref<256x32xf32, #tpu.memory_space<vmem>>, vector<128x32xf32>
    %94 = arith.maximumf %92, %93 : vector<128x32xf32>
    %cst_70 = arith.constant 0.000000e+00 : f32
    %95 = vector.broadcast %cst_70 : f32 to vector<1x2x10x32xf32>
    %c0_71 = arith.constant 0 : index
    %c0_72 = arith.constant 0 : index
    %c0_73 = arith.constant 0 : index
    %c0_74 = arith.constant 0 : index
    %96 = vector.load %arg9[%c0_71, %c0_72, %c0_73, %c0_74] : memref<10x2x10x32xf32, #tpu.memory_space<vmem>>, vector<1x2x10x32xf32>
    tpu.vector_store %arg9[%c0_71, %c0_72, %c0_73, %c0_74], %95 {strides = array<i32>} : memref<10x2x10x32xf32, #tpu.memory_space<vmem>>, vector<1x2x10x32xf32>,
    %cst_75 = arith.constant 0.000000e+00 : f32
    %97 = vector.broadcast %cst_75 : f32 to vector<1x2x10x32xf32>
    %c9 = arith.constant 9 : index
    %c0_76 = arith.constant 0 : index
    %c0_77 = arith.constant 0 : index
    %c0_78 = arith.constant 0 : index
    %98 = vector.load %arg9[%c9, %c0_76, %c0_77, %c0_78] : memref<10x2x10x32xf32, #tpu.memory_space<vmem>>, vector<1x2x10x32xf32>
    tpu.vector_store %arg9[%c9, %c0_76, %c0_77, %c0_78], %97 {strides = array<i32>} : memref<10x2x10x32xf32, #tpu.memory_space<vmem>>, vector<1x2x10x32xf32>,
    %cst_79 = arith.constant 0.000000e+00 : f32
    %99 = vector.broadcast %cst_79 : f32 to vector<10x2x1x32xf32>
    %c0_80 = arith.constant 0 : index
    %c0_81 = arith.constant 0 : index
    %c0_82 = arith.constant 0 : index
    %c0_83 = arith.constant 0 : index
    %100 = vector.load %arg9[%c0_80, %c0_81, %c0_82, %c0_83] : memref<10x2x10x32xf32, #tpu.memory_space<vmem>>, vector<10x2x1x32xf32>
    tpu.vector_store %arg9[%c0_80, %c0_81, %c0_82, %c0_83], %99 {strides = array<i32>} : memref<10x2x10x32xf32, #tpu.memory_space<vmem>>, vector<10x2x1x32xf32>,
    %cst_84 = arith.constant 0.000000e+00 : f32
    %101 = vector.broadcast %cst_84 : f32 to vector<10x2x1x32xf32>
    %c0_85 = arith.constant 0 : index
    %c0_86 = arith.constant 0 : index
    %c9_87 = arith.constant 9 : index
    %c0_88 = arith.constant 0 : index
    %102 = vector.load %arg9[%c0_85, %c0_86, %c9_87, %c0_88] : memref<10x2x10x32xf32, #tpu.memory_space<vmem>>, vector<10x2x1x32xf32>
    tpu.vector_store %arg9[%c0_85, %c0_86, %c9_87, %c0_88], %101 {strides = array<i32>} : memref<10x2x10x32xf32, #tpu.memory_space<vmem>>, vector<10x2x1x32xf32>,
    %103 = vector.shape_cast %94 : vector<128x32xf32> to vector<8x2x8x32xf32>
    %c1_89 = arith.constant 1 : index
    %c0_90 = arith.constant 0 : index
    %c1_91 = arith.constant 1 : index
    %c0_92 = arith.constant 0 : index
    %104 = vector.load %arg9[%c1_89, %c0_90, %c1_91, %c0_92] : memref<10x2x10x32xf32, #tpu.memory_space<vmem>>, vector<8x2x8x32xf32>
    tpu.vector_store %arg9[%c1_89, %c0_90, %c1_91, %c0_92], %103 {strides = array<i32>} : memref<10x2x10x32xf32, #tpu.memory_space<vmem>>, vector<8x2x8x32xf32>,
    %c0_93 = arith.constant 0 : index
    %c0_94 = arith.constant 0 : index
    %c0_95 = arith.constant 0 : index
    %c0_96 = arith.constant 0 : index
    %105 = vector.load %arg9[%c0_93, %c0_94, %c0_95, %c0_96] : memref<10x2x10x32xf32, #tpu.memory_space<vmem>>, vector<8x2x8x32xf32>
    %106 = vector.shape_cast %105 : vector<8x2x8x32xf32> to vector<128x32xf32>
    %c0_97 = arith.constant 0 : index
    %c0_98 = arith.constant 0 : index
    %c1_99 = arith.constant 1 : index
    %c0_100 = arith.constant 0 : index
    %107 = vector.load %arg9[%c0_97, %c0_98, %c1_99, %c0_100] : memref<10x2x10x32xf32, #tpu.memory_space<vmem>>, vector<8x2x8x32xf32>
    %108 = vector.shape_cast %107 : vector<8x2x8x32xf32> to vector<128x32xf32>
    %c0_101 = arith.constant 0 : index
    %c0_102 = arith.constant 0 : index
    %c2_103 = arith.constant 2 : index
    %c0_104 = arith.constant 0 : index
    %109 = vector.load %arg9[%c0_101, %c0_102, %c2_103, %c0_104] : memref<10x2x10x32xf32, #tpu.memory_space<vmem>>, vector<8x2x8x32xf32>
    %110 = vector.shape_cast %109 : vector<8x2x8x32xf32> to vector<128x32xf32>
    %c1_105 = arith.constant 1 : index
    %c0_106 = arith.constant 0 : index
    %c0_107 = arith.constant 0 : index
    %c0_108 = arith.constant 0 : index
    %111 = vector.load %arg9[%c1_105, %c0_106, %c0_107, %c0_108] : memref<10x2x10x32xf32, #tpu.memory_space<vmem>>, vector<8x2x8x32xf32>
    %112 = vector.shape_cast %111 : vector<8x2x8x32xf32> to vector<128x32xf32>
    %c1_109 = arith.constant 1 : index
    %c0_110 = arith.constant 0 : index
    %c1_111 = arith.constant 1 : index
    %c0_112 = arith.constant 0 : index
    %113 = vector.load %arg9[%c1_109, %c0_110, %c1_111, %c0_112] : memref<10x2x10x32xf32, #tpu.memory_space<vmem>>, vector<8x2x8x32xf32>
    %114 = vector.shape_cast %113 : vector<8x2x8x32xf32> to vector<128x32xf32>
    %c1_113 = arith.constant 1 : index
    %c0_114 = arith.constant 0 : index
    %c2_115 = arith.constant 2 : index
    %c0_116 = arith.constant 0 : index
    %115 = vector.load %arg9[%c1_113, %c0_114, %c2_115, %c0_116] : memref<10x2x10x32xf32, #tpu.memory_space<vmem>>, vector<8x2x8x32xf32>
    %116 = vector.shape_cast %115 : vector<8x2x8x32xf32> to vector<128x32xf32>
    %c2_117 = arith.constant 2 : index
    %c0_118 = arith.constant 0 : index
    %c0_119 = arith.constant 0 : index
    %c0_120 = arith.constant 0 : index
    %117 = vector.load %arg9[%c2_117, %c0_118, %c0_119, %c0_120] : memref<10x2x10x32xf32, #tpu.memory_space<vmem>>, vector<8x2x8x32xf32>
    %118 = vector.shape_cast %117 : vector<8x2x8x32xf32> to vector<128x32xf32>
    %c2_121 = arith.constant 2 : index
    %c0_122 = arith.constant 0 : index
    %c1_123 = arith.constant 1 : index
    %c0_124 = arith.constant 0 : index
    %119 = vector.load %arg9[%c2_121, %c0_122, %c1_123, %c0_124] : memref<10x2x10x32xf32, #tpu.memory_space<vmem>>, vector<8x2x8x32xf32>
    %120 = vector.shape_cast %119 : vector<8x2x8x32xf32> to vector<128x32xf32>
    %c2_125 = arith.constant 2 : index
    %c0_126 = arith.constant 0 : index
    %c2_127 = arith.constant 2 : index
    %c0_128 = arith.constant 0 : index
    %121 = vector.load %arg9[%c2_125, %c0_126, %c2_127, %c0_128] : memref<10x2x10x32xf32, #tpu.memory_space<vmem>>, vector<8x2x8x32xf32>
    %122 = vector.shape_cast %121 : vector<8x2x8x32xf32> to vector<128x32xf32>
    %123 = tpu.concatenate %106, %108, %110, %112, %114, %116, %118, %120, %122 in 1 : vector<128x32xf32>, vector<128x32xf32>, vector<128x32xf32>, vector<128x32xf32>, vector<128x32xf32>, vector<128x32xf32>, vector<128x32xf32>, vector<128x32xf32>, vector<128x32xf32> -> vector<128x288xf32>
    %124 = arith.truncf %123 : vector<128x288xf32> to vector<128x288xbf16>
    %c0_129 = arith.constant 0 : index
    %c0_130 = arith.constant 0 : index
    %125 = vector.load %arg4[%c0_129, %c0_130] : memref<288x64xbf16, #tpu.memory_space<vmem>>, vector<288x64xbf16>
    %cst_131 = arith.constant dense<0.000000e+00> : vector<128x64xf32>
    %126 = tpu.matmul %124, %125, %cst_131 {dimension_numbers = #tpu.dot_dimension_numbers<[1], [0], [0], [1], [0, 0, 1, 1], [], []>} : vector<128x288xbf16>, vector<288x64xbf16>, vector<128x64xf32> -> vector<128x64xf32>
    %c0_132 = arith.constant 0 : index
    %c0_133 = arith.constant 0 : index
    %127 = vector.load %arg5[%c0_132, %c0_133] : memref<1x64xf32, #tpu.memory_space<vmem>>, vector<1x64xf32>
    %128 = vector.broadcast %127 : vector<1x64xf32> to vector<128x64xf32>
    %129 = arith.addf %126, %128 : vector<128x64xf32>
    %cst_134 = arith.constant 0.000000e+00 : f32
    %130 = vector.broadcast %cst_134 : f32 to vector<128x64xf32>
    %131 = arith.maximumf %129, %130 : vector<128x64xf32>
    %132 = vector.shape_cast %131 : vector<128x64xf32> to vector<4x2x16x64xf32>
    %133 = vector.extract_strided_slice %132 {offsets = [0, 0, 0, 0], sizes = [4, 1, 16, 64], strides = [1, 1, 1, 1]} : vector<4x2x16x64xf32> to vector<4x1x16x64xf32>
    %134 = vector.shape_cast %133 : vector<4x1x16x64xf32> to vector<4x16x64xf32>
    %135 = vector.extract_strided_slice %132 {offsets = [0, 1, 0, 0], sizes = [4, 1, 16, 64], strides = [1, 1, 1, 1]} : vector<4x2x16x64xf32> to vector<4x1x16x64xf32>
    %136 = vector.shape_cast %135 : vector<4x1x16x64xf32> to vector<4x16x64xf32>
    %137 = arith.maximumf %134, %136 : vector<4x16x64xf32>
    %138 = vector.shape_cast %137 : vector<4x16x64xf32> to vector<64x64xf32>
    %c0_135 = arith.constant 0 : index
    %c0_136 = arith.constant 0 : index
    %139 = vector.load %arg10[%c0_135, %c0_136] : memref<64x64xf32, #tpu.memory_space<vmem>>, vector<64x64xf32>
    tpu.vector_store %arg10[%c0_135, %c0_136], %138 {strides = array<i32>} : memref<64x64xf32, #tpu.memory_space<vmem>>, vector<64x64xf32>,
    %c0_137 = arith.constant 0 : index
    %c0_138 = arith.constant 0 : index
    %140 = tpu.strided_load %arg10[%c0_137, %c0_138] {strides = array<i32: 8, 1>} : memref<64x64xf32, #tpu.memory_space<vmem>>, vector<8x64xf32>
    %c1_139 = arith.constant 1 : index
    %c0_140 = arith.constant 0 : index
    %141 = tpu.strided_load %arg10[%c1_139, %c0_140] {strides = array<i32: 8, 1>} : memref<64x64xf32, #tpu.memory_space<vmem>>, vector<8x64xf32>
    %142 = arith.maximumf %140, %141 : vector<8x64xf32>
    %c2_141 = arith.constant 2 : index
    %c0_142 = arith.constant 0 : index
    %143 = tpu.strided_load %arg10[%c2_141, %c0_142] {strides = array<i32: 8, 1>} : memref<64x64xf32, #tpu.memory_space<vmem>>, vector<8x64xf32>
    %c3 = arith.constant 3 : index
    %c0_143 = arith.constant 0 : index
    %144 = tpu.strided_load %arg10[%c3, %c0_143] {strides = array<i32: 8, 1>} : memref<64x64xf32, #tpu.memory_space<vmem>>, vector<8x64xf32>
    %145 = arith.maximumf %143, %144 : vector<8x64xf32>
    %c4 = arith.constant 4 : index
    %c0_144 = arith.constant 0 : index
    %146 = tpu.strided_load %arg10[%c4, %c0_144] {strides = array<i32: 8, 1>} : memref<64x64xf32, #tpu.memory_space<vmem>>, vector<8x64xf32>
    %c5 = arith.constant 5 : index
    %c0_145 = arith.constant 0 : index
    %147 = tpu.strided_load %arg10[%c5, %c0_145] {strides = array<i32: 8, 1>} : memref<64x64xf32, #tpu.memory_space<vmem>>, vector<8x64xf32>
    %148 = arith.maximumf %146, %147 : vector<8x64xf32>
    %c6 = arith.constant 6 : index
    %c0_146 = arith.constant 0 : index
    %149 = tpu.strided_load %arg10[%c6, %c0_146] {strides = array<i32: 8, 1>} : memref<64x64xf32, #tpu.memory_space<vmem>>, vector<8x64xf32>
    %c7 = arith.constant 7 : index
    %c0_147 = arith.constant 0 : index
    %150 = tpu.strided_load %arg10[%c7, %c0_147] {strides = array<i32: 8, 1>} : memref<64x64xf32, #tpu.memory_space<vmem>>, vector<8x64xf32>
    %151 = arith.maximumf %149, %150 : vector<8x64xf32>
    %152 = tpu.concatenate %142, %145, %148, %151 in 1 : vector<8x64xf32>, vector<8x64xf32>, vector<8x64xf32>, vector<8x64xf32> -> vector<8x256xf32>
    %153 = vector.extract_strided_slice %152 {offsets = [0, 0], sizes = [2, 256], strides = [1, 1]} : vector<8x256xf32> to vector<2x256xf32>
    %154 = arith.truncf %153 : vector<2x256xf32> to vector<2x256xbf16>
    %c0_148 = arith.constant 0 : index
    %c0_149 = arith.constant 0 : index
    %c0_150 = arith.constant 0 : index
    %155 = vector.load %arg6[%c0_148, %c0_149, %c0_150] : memref<4x2x256xbf16, #tpu.memory_space<vmem>>, vector<1x2x256xbf16>
    %156 = vector.shape_cast %155 : vector<1x2x256xbf16> to vector<2x256xbf16>
    %157 = vector.shape_cast %154 : vector<2x256xbf16> to vector<1x2x256xbf16>
    tpu.vector_store %arg6[%c0_148, %c0_149, %c0_150], %157 {strides = array<i32>} : memref<4x2x256xbf16, #tpu.memory_space<vmem>>, vector<1x2x256xbf16>,
    %158 = vector.extract_strided_slice %152 {offsets = [2, 0], sizes = [2, 256], strides = [1, 1]} : vector<8x256xf32> to vector<2x256xf32>
    %159 = arith.truncf %158 : vector<2x256xf32> to vector<2x256xbf16>
    %c1_151 = arith.constant 1 : index
    %c0_152 = arith.constant 0 : index
    %c0_153 = arith.constant 0 : index
    %160 = vector.load %arg6[%c1_151, %c0_152, %c0_153] : memref<4x2x256xbf16, #tpu.memory_space<vmem>>, vector<1x2x256xbf16>
    %161 = vector.shape_cast %160 : vector<1x2x256xbf16> to vector<2x256xbf16>
    %162 = vector.shape_cast %159 : vector<2x256xbf16> to vector<1x2x256xbf16>
    tpu.vector_store %arg6[%c1_151, %c0_152, %c0_153], %162 {strides = array<i32>} : memref<4x2x256xbf16, #tpu.memory_space<vmem>>, vector<1x2x256xbf16>,
    %163 = vector.extract_strided_slice %152 {offsets = [4, 0], sizes = [2, 256], strides = [1, 1]} : vector<8x256xf32> to vector<2x256xf32>
    %164 = arith.truncf %163 : vector<2x256xf32> to vector<2x256xbf16>
    %c2_154 = arith.constant 2 : index
    %c0_155 = arith.constant 0 : index
    %c0_156 = arith.constant 0 : index
    %165 = vector.load %arg6[%c2_154, %c0_155, %c0_156] : memref<4x2x256xbf16, #tpu.memory_space<vmem>>, vector<1x2x256xbf16>
    %166 = vector.shape_cast %165 : vector<1x2x256xbf16> to vector<2x256xbf16>
    %167 = vector.shape_cast %164 : vector<2x256xbf16> to vector<1x2x256xbf16>
    tpu.vector_store %arg6[%c2_154, %c0_155, %c0_156], %167 {strides = array<i32>} : memref<4x2x256xbf16, #tpu.memory_space<vmem>>, vector<1x2x256xbf16>,
    %168 = vector.extract_strided_slice %152 {offsets = [6, 0], sizes = [2, 256], strides = [1, 1]} : vector<8x256xf32> to vector<2x256xf32>
    %169 = arith.truncf %168 : vector<2x256xf32> to vector<2x256xbf16>
    %c3_157 = arith.constant 3 : index
    %c0_158 = arith.constant 0 : index
    %c0_159 = arith.constant 0 : index
    %170 = vector.load %arg6[%c3_157, %c0_158, %c0_159] : memref<4x2x256xbf16, #tpu.memory_space<vmem>>, vector<1x2x256xbf16>
    %171 = vector.shape_cast %170 : vector<1x2x256xbf16> to vector<2x256xbf16>
    %172 = vector.shape_cast %169 : vector<2x256xbf16> to vector<1x2x256xbf16>
    tpu.vector_store %arg6[%c3_157, %c0_158, %c0_159], %172 {strides = array<i32>} : memref<4x2x256xbf16, #tpu.memory_space<vmem>>, vector<1x2x256xbf16>,
    return
  }
  func.func @transform_0(%arg0: i32) -> (i32, i32, i32) {
    %c0_i32 = arith.constant 0 : i32
    %c0_i32_0 = arith.constant 0 : i32
    %c0_i32_1 = arith.constant 0 : i32
    return %c0_i32, %arg0, %c0_i32_0 : i32, i32, i32
  }
  func.func @transform_1(%arg0: i32) -> (i32, i32) {
    %c0_i32 = arith.constant 0 : i32
    %c0_i32_0 = arith.constant 0 : i32
    %c0_i32_1 = arith.constant 0 : i32
    return %c0_i32, %c0_i32_0 : i32, i32
  }
  func.func @transform_2(%arg0: i32) -> (i32, i32) {
    %c0_i32 = arith.constant 0 : i32
    %c0_i32_0 = arith.constant 0 : i32
    %c0_i32_1 = arith.constant 0 : i32
    return %c0_i32, %c0_i32_0 : i32, i32
  }
  func.func @transform_3(%arg0: i32) -> (i32, i32) {
    %c0_i32 = arith.constant 0 : i32
    %c0_i32_0 = arith.constant 0 : i32
    %c0_i32_1 = arith.constant 0 : i32
    return %c0_i32, %c0_i32_0 : i32, i32
  }
  func.func @transform_4(%arg0: i32) -> (i32, i32) {
    %c0_i32 = arith.constant 0 : i32
    %c0_i32_0 = arith.constant 0 : i32
    %c0_i32_1 = arith.constant 0 : i32
    return %c0_i32, %c0_i32_0 : i32, i32
  }
  func.func @transform_5(%arg0: i32) -> (i32, i32, i32) {
    %c0_i32 = arith.constant 0 : i32
    %c0_i32_0 = arith.constant 0 : i32
    %c0_i32_1 = arith.constant 0 : i32
    return %c0_i32, %arg0, %c0_i32_0 : i32, i32, i32
  }
}

module attributes {stable_mosaic.version = 11 : i64} {
  func.func @_lstm_head_kernel(%arg0: memref<8x256xbf16, #tpu.memory_space<vmem>>, %arg1: memref<256x256xbf16, #tpu.memory_space<vmem>>, %arg2: memref<64x256xbf16, #tpu.memory_space<vmem>>, %arg3: memref<1x256xf32, #tpu.memory_space<vmem>>, %arg4: memref<64x64xf32, #tpu.memory_space<vmem>>, %arg5: memref<1x64xf32, #tpu.memory_space<vmem>>, %arg6: memref<64x1xf32, #tpu.memory_space<vmem>>, %arg7: memref<1x1xf32, #tpu.memory_space<vmem>>, %arg8: memref<2x1xf32, #tpu.memory_space<vmem>>, %arg9: memref<4x2x256xf32, #tpu.memory_space<vmem>>) attributes {dimension_semantics = [], scalar_prefetch = 0 : i64, scratch_operands = 1 : i64, tpu.core_type = #tpu.core_type<tc>} {
    %c0 = arith.constant 0 : index
    %c0_0 = arith.constant 0 : index
    %0 = vector.load %arg0[%c0, %c0_0] : memref<8x256xbf16, #tpu.memory_space<vmem>>, vector<8x256xbf16>
    %c0_1 = arith.constant 0 : index
    %c0_2 = arith.constant 0 : index
    %1 = vector.load %arg1[%c0_1, %c0_2] : memref<256x256xbf16, #tpu.memory_space<vmem>>, vector<256x256xbf16>
    %cst = arith.constant dense<0.000000e+00> : vector<8x256xf32>
    %2 = tpu.matmul %0, %1, %cst {dimension_numbers = #tpu.dot_dimension_numbers<[1], [0], [0], [1], [0, 0, 1, 1], [], []>} : vector<8x256xbf16>, vector<256x256xbf16>, vector<8x256xf32> -> vector<8x256xf32>
    %c0_3 = arith.constant 0 : index
    %c0_4 = arith.constant 0 : index
    %3 = vector.load %arg3[%c0_3, %c0_4] : memref<1x256xf32, #tpu.memory_space<vmem>>, vector<1x256xf32>
    %4 = vector.broadcast %3 : vector<1x256xf32> to vector<8x256xf32>
    %5 = arith.addf %2, %4 : vector<8x256xf32>
    %6 = vector.extract_strided_slice %5 {offsets = [0, 0], sizes = [2, 256], strides = [1, 1]} : vector<8x256xf32> to vector<2x256xf32>
    %c0_5 = arith.constant 0 : index
    %c0_6 = arith.constant 0 : index
    %c0_7 = arith.constant 0 : index
    %7 = vector.load %arg9[%c0_5, %c0_6, %c0_7] : memref<4x2x256xf32, #tpu.memory_space<vmem>>, vector<1x2x256xf32>
    %8 = vector.shape_cast %7 : vector<1x2x256xf32> to vector<2x256xf32>
    %9 = vector.shape_cast %6 : vector<2x256xf32> to vector<1x2x256xf32>
    tpu.vector_store %arg9[%c0_5, %c0_6, %c0_7], %9 {strides = array<i32>} : memref<4x2x256xf32, #tpu.memory_space<vmem>>, vector<1x2x256xf32>,
    %10 = vector.extract_strided_slice %5 {offsets = [2, 0], sizes = [2, 256], strides = [1, 1]} : vector<8x256xf32> to vector<2x256xf32>
    %c1 = arith.constant 1 : index
    %c0_8 = arith.constant 0 : index
    %c0_9 = arith.constant 0 : index
    %11 = vector.load %arg9[%c1, %c0_8, %c0_9] : memref<4x2x256xf32, #tpu.memory_space<vmem>>, vector<1x2x256xf32>
    %12 = vector.shape_cast %11 : vector<1x2x256xf32> to vector<2x256xf32>
    %13 = vector.shape_cast %10 : vector<2x256xf32> to vector<1x2x256xf32>
    tpu.vector_store %arg9[%c1, %c0_8, %c0_9], %13 {strides = array<i32>} : memref<4x2x256xf32, #tpu.memory_space<vmem>>, vector<1x2x256xf32>,
    %14 = vector.extract_strided_slice %5 {offsets = [4, 0], sizes = [2, 256], strides = [1, 1]} : vector<8x256xf32> to vector<2x256xf32>
    %c2 = arith.constant 2 : index
    %c0_10 = arith.constant 0 : index
    %c0_11 = arith.constant 0 : index
    %15 = vector.load %arg9[%c2, %c0_10, %c0_11] : memref<4x2x256xf32, #tpu.memory_space<vmem>>, vector<1x2x256xf32>
    %16 = vector.shape_cast %15 : vector<1x2x256xf32> to vector<2x256xf32>
    %17 = vector.shape_cast %14 : vector<2x256xf32> to vector<1x2x256xf32>
    tpu.vector_store %arg9[%c2, %c0_10, %c0_11], %17 {strides = array<i32>} : memref<4x2x256xf32, #tpu.memory_space<vmem>>, vector<1x2x256xf32>,
    %18 = vector.extract_strided_slice %5 {offsets = [6, 0], sizes = [2, 256], strides = [1, 1]} : vector<8x256xf32> to vector<2x256xf32>
    %c3 = arith.constant 3 : index
    %c0_12 = arith.constant 0 : index
    %c0_13 = arith.constant 0 : index
    %19 = vector.load %arg9[%c3, %c0_12, %c0_13] : memref<4x2x256xf32, #tpu.memory_space<vmem>>, vector<1x2x256xf32>
    %20 = vector.shape_cast %19 : vector<1x2x256xf32> to vector<2x256xf32>
    %21 = vector.shape_cast %18 : vector<2x256xf32> to vector<1x2x256xf32>
    tpu.vector_store %arg9[%c3, %c0_12, %c0_13], %21 {strides = array<i32>} : memref<4x2x256xf32, #tpu.memory_space<vmem>>, vector<1x2x256xf32>,
    %c0_14 = arith.constant 0 : index
    %c0_15 = arith.constant 0 : index
    %22 = vector.load %arg2[%c0_14, %c0_15] : memref<64x256xbf16, #tpu.memory_space<vmem>>, vector<64x256xbf16>
    %cst_16 = arith.constant 0.000000e+00 : f32
    %23 = vector.broadcast %cst_16 : f32 to vector<2x64xf32>
    %cst_17 = arith.constant 0.000000e+00 : f32
    %24 = vector.broadcast %cst_17 : f32 to vector<2x64xf32>
    %c0_i32 = arith.constant 0 : i32
    %25 = arith.index_cast %c0_i32 : i32 to index
    %c0_18 = arith.constant 0 : index
    %c0_19 = arith.constant 0 : index
    %26 = vector.load %arg9[%25, %c0_18, %c0_19] : memref<4x2x256xf32, #tpu.memory_space<vmem>>, vector<1x2x256xf32>
    %27 = vector.shape_cast %26 : vector<1x2x256xf32> to vector<2x256xf32>
    %28 = arith.truncf %23 : vector<2x64xf32> to vector<2x64xbf16>
    %cst_20 = arith.constant dense<0.000000e+00> : vector<2x256xf32>
    %29 = tpu.matmul %28, %22, %cst_20 {dimension_numbers = #tpu.dot_dimension_numbers<[1], [0], [0], [1], [0, 0, 1, 1], [], []>} : vector<2x64xbf16>, vector<64x256xbf16>, vector<2x256xf32> -> vector<2x256xf32>
    %30 = arith.addf %27, %29 : vector<2x256xf32>
    %31 = vector.extract_strided_slice %30 {offsets = [0, 0], sizes = [2, 192], strides = [1, 1]} : vector<2x256xf32> to vector<2x192xf32>
    %32 = arith.negf %31 : vector<2x192xf32>
    %33 = math.exp %32 : vector<2x192xf32>
    %cst_21 = arith.constant 1.000000e+00 : f32
    %34 = vector.broadcast %cst_21 : f32 to vector<2x192xf32>
    %35 = arith.addf %34, %33 : vector<2x192xf32>
    %36 = arith.divf %34, %35 : vector<2x192xf32>
    %37 = vector.extract_strided_slice %36 {offsets = [0, 0], sizes = [2, 64], strides = [1, 1]} : vector<2x192xf32> to vector<2x64xf32>
    %38 = vector.extract_strided_slice %36 {offsets = [0, 64], sizes = [2, 64], strides = [1, 1]} : vector<2x192xf32> to vector<2x64xf32>
    %39 = vector.extract_strided_slice %36 {offsets = [0, 128], sizes = [2, 64], strides = [1, 1]} : vector<2x192xf32> to vector<2x64xf32>
    %40 = vector.extract_strided_slice %30 {offsets = [0, 192], sizes = [2, 64], strides = [1, 1]} : vector<2x256xf32> to vector<2x64xf32>
    %41 = math.tanh %40 : vector<2x64xf32>
    %42 = arith.mulf %38, %24 : vector<2x64xf32>
    %43 = arith.mulf %37, %41 : vector<2x64xf32>
    %44 = arith.addf %42, %43 : vector<2x64xf32>
    %45 = math.tanh %44 : vector<2x64xf32>
    %46 = arith.mulf %39, %45 : vector<2x64xf32>
    %c1_i32 = arith.constant 1 : i32
    %47 = arith.index_cast %c1_i32 : i32 to index
    %c0_22 = arith.constant 0 : index
    %c0_23 = arith.constant 0 : index
    %48 = vector.load %arg9[%47, %c0_22, %c0_23] : memref<4x2x256xf32, #tpu.memory_space<vmem>>, vector<1x2x256xf32>
    %49 = vector.shape_cast %48 : vector<1x2x256xf32> to vector<2x256xf32>
    %50 = arith.truncf %46 : vector<2x64xf32> to vector<2x64xbf16>
    %cst_24 = arith.constant dense<0.000000e+00> : vector<2x256xf32>
    %51 = tpu.matmul %50, %22, %cst_24 {dimension_numbers = #tpu.dot_dimension_numbers<[1], [0], [0], [1], [0, 0, 1, 1], [], []>} : vector<2x64xbf16>, vector<64x256xbf16>, vector<2x256xf32> -> vector<2x256xf32>
    %52 = arith.addf %49, %51 : vector<2x256xf32>
    %53 = vector.extract_strided_slice %52 {offsets = [0, 0], sizes = [2, 192], strides = [1, 1]} : vector<2x256xf32> to vector<2x192xf32>
    %54 = arith.negf %53 : vector<2x192xf32>
    %55 = math.exp %54 : vector<2x192xf32>
    %cst_25 = arith.constant 1.000000e+00 : f32
    %56 = vector.broadcast %cst_25 : f32 to vector<2x192xf32>
    %57 = arith.addf %56, %55 : vector<2x192xf32>
    %58 = arith.divf %56, %57 : vector<2x192xf32>
    %59 = vector.extract_strided_slice %58 {offsets = [0, 0], sizes = [2, 64], strides = [1, 1]} : vector<2x192xf32> to vector<2x64xf32>
    %60 = vector.extract_strided_slice %58 {offsets = [0, 64], sizes = [2, 64], strides = [1, 1]} : vector<2x192xf32> to vector<2x64xf32>
    %61 = vector.extract_strided_slice %58 {offsets = [0, 128], sizes = [2, 64], strides = [1, 1]} : vector<2x192xf32> to vector<2x64xf32>
    %62 = vector.extract_strided_slice %52 {offsets = [0, 192], sizes = [2, 64], strides = [1, 1]} : vector<2x256xf32> to vector<2x64xf32>
    %63 = math.tanh %62 : vector<2x64xf32>
    %64 = arith.mulf %60, %44 : vector<2x64xf32>
    %65 = arith.mulf %59, %63 : vector<2x64xf32>
    %66 = arith.addf %64, %65 : vector<2x64xf32>
    %67 = math.tanh %66 : vector<2x64xf32>
    %68 = arith.mulf %61, %67 : vector<2x64xf32>
    %c2_i32 = arith.constant 2 : i32
    %69 = arith.index_cast %c2_i32 : i32 to index
    %c0_26 = arith.constant 0 : index
    %c0_27 = arith.constant 0 : index
    %70 = vector.load %arg9[%69, %c0_26, %c0_27] : memref<4x2x256xf32, #tpu.memory_space<vmem>>, vector<1x2x256xf32>
    %71 = vector.shape_cast %70 : vector<1x2x256xf32> to vector<2x256xf32>
    %72 = arith.truncf %68 : vector<2x64xf32> to vector<2x64xbf16>
    %cst_28 = arith.constant dense<0.000000e+00> : vector<2x256xf32>
    %73 = tpu.matmul %72, %22, %cst_28 {dimension_numbers = #tpu.dot_dimension_numbers<[1], [0], [0], [1], [0, 0, 1, 1], [], []>} : vector<2x64xbf16>, vector<64x256xbf16>, vector<2x256xf32> -> vector<2x256xf32>
    %74 = arith.addf %71, %73 : vector<2x256xf32>
    %75 = vector.extract_strided_slice %74 {offsets = [0, 0], sizes = [2, 192], strides = [1, 1]} : vector<2x256xf32> to vector<2x192xf32>
    %76 = arith.negf %75 : vector<2x192xf32>
    %77 = math.exp %76 : vector<2x192xf32>
    %cst_29 = arith.constant 1.000000e+00 : f32
    %78 = vector.broadcast %cst_29 : f32 to vector<2x192xf32>
    %79 = arith.addf %78, %77 : vector<2x192xf32>
    %80 = arith.divf %78, %79 : vector<2x192xf32>
    %81 = vector.extract_strided_slice %80 {offsets = [0, 0], sizes = [2, 64], strides = [1, 1]} : vector<2x192xf32> to vector<2x64xf32>
    %82 = vector.extract_strided_slice %80 {offsets = [0, 64], sizes = [2, 64], strides = [1, 1]} : vector<2x192xf32> to vector<2x64xf32>
    %83 = vector.extract_strided_slice %80 {offsets = [0, 128], sizes = [2, 64], strides = [1, 1]} : vector<2x192xf32> to vector<2x64xf32>
    %84 = vector.extract_strided_slice %74 {offsets = [0, 192], sizes = [2, 64], strides = [1, 1]} : vector<2x256xf32> to vector<2x64xf32>
    %85 = math.tanh %84 : vector<2x64xf32>
    %86 = arith.mulf %82, %66 : vector<2x64xf32>
    %87 = arith.mulf %81, %85 : vector<2x64xf32>
    %88 = arith.addf %86, %87 : vector<2x64xf32>
    %89 = math.tanh %88 : vector<2x64xf32>
    %90 = arith.mulf %83, %89 : vector<2x64xf32>
    %c3_i32 = arith.constant 3 : i32
    %91 = arith.index_cast %c3_i32 : i32 to index
    %c0_30 = arith.constant 0 : index
    %c0_31 = arith.constant 0 : index
    %92 = vector.load %arg9[%91, %c0_30, %c0_31] : memref<4x2x256xf32, #tpu.memory_space<vmem>>, vector<1x2x256xf32>
    %93 = vector.shape_cast %92 : vector<1x2x256xf32> to vector<2x256xf32>
    %94 = arith.truncf %90 : vector<2x64xf32> to vector<2x64xbf16>
    %cst_32 = arith.constant dense<0.000000e+00> : vector<2x256xf32>
    %95 = tpu.matmul %94, %22, %cst_32 {dimension_numbers = #tpu.dot_dimension_numbers<[1], [0], [0], [1], [0, 0, 1, 1], [], []>} : vector<2x64xbf16>, vector<64x256xbf16>, vector<2x256xf32> -> vector<2x256xf32>
    %96 = arith.addf %93, %95 : vector<2x256xf32>
    %97 = vector.extract_strided_slice %96 {offsets = [0, 0], sizes = [2, 192], strides = [1, 1]} : vector<2x256xf32> to vector<2x192xf32>
    %98 = arith.negf %97 : vector<2x192xf32>
    %99 = math.exp %98 : vector<2x192xf32>
    %cst_33 = arith.constant 1.000000e+00 : f32
    %100 = vector.broadcast %cst_33 : f32 to vector<2x192xf32>
    %101 = arith.addf %100, %99 : vector<2x192xf32>
    %102 = arith.divf %100, %101 : vector<2x192xf32>
    %103 = vector.extract_strided_slice %102 {offsets = [0, 0], sizes = [2, 64], strides = [1, 1]} : vector<2x192xf32> to vector<2x64xf32>
    %104 = vector.extract_strided_slice %102 {offsets = [0, 64], sizes = [2, 64], strides = [1, 1]} : vector<2x192xf32> to vector<2x64xf32>
    %105 = vector.extract_strided_slice %102 {offsets = [0, 128], sizes = [2, 64], strides = [1, 1]} : vector<2x192xf32> to vector<2x64xf32>
    %106 = vector.extract_strided_slice %96 {offsets = [0, 192], sizes = [2, 64], strides = [1, 1]} : vector<2x256xf32> to vector<2x64xf32>
    %107 = math.tanh %106 : vector<2x64xf32>
    %108 = arith.mulf %104, %88 : vector<2x64xf32>
    %109 = arith.mulf %103, %107 : vector<2x64xf32>
    %110 = arith.addf %108, %109 : vector<2x64xf32>
    %111 = math.tanh %110 : vector<2x64xf32>
    %112 = arith.mulf %105, %111 : vector<2x64xf32>
    %c4_i32 = arith.constant 4 : i32
    %c0_34 = arith.constant 0 : index
    %c0_35 = arith.constant 0 : index
    %113 = vector.load %arg4[%c0_34, %c0_35] : memref<64x64xf32, #tpu.memory_space<vmem>>, vector<64x64xf32>
    %cst_36 = arith.constant dense<0.000000e+00> : vector<2x64xf32>
    %114 = tpu.matmul %112, %113, %cst_36 {dimension_numbers = #tpu.dot_dimension_numbers<[1], [0], [0], [1], [0, 0, 1, 1], [], []>} : vector<2x64xf32>, vector<64x64xf32>, vector<2x64xf32> -> vector<2x64xf32>
    %c0_37 = arith.constant 0 : index
    %c0_38 = arith.constant 0 : index
    %115 = vector.load %arg5[%c0_37, %c0_38] : memref<1x64xf32, #tpu.memory_space<vmem>>, vector<1x64xf32>
    %116 = vector.broadcast %115 : vector<1x64xf32> to vector<2x64xf32>
    %117 = arith.addf %114, %116 : vector<2x64xf32>
    %cst_39 = arith.constant 0.000000e+00 : f32
    %118 = vector.broadcast %cst_39 : f32 to vector<2x64xf32>
    %119 = arith.maximumf %117, %118 : vector<2x64xf32>
    %c0_40 = arith.constant 0 : index
    %c0_41 = arith.constant 0 : index
    %120 = vector.load %arg6[%c0_40, %c0_41] : memref<64x1xf32, #tpu.memory_space<vmem>>, vector<64x1xf32>
    %cst_42 = arith.constant dense<0.000000e+00> : vector<2x1xf32>
    %121 = tpu.matmul %119, %120, %cst_42 {dimension_numbers = #tpu.dot_dimension_numbers<[1], [0], [0], [1], [0, 0, 1, 1], [], []>} : vector<2x64xf32>, vector<64x1xf32>, vector<2x1xf32> -> vector<2x1xf32>
    %c0_43 = arith.constant 0 : index
    %c0_44 = arith.constant 0 : index
    %122 = vector.load %arg7[%c0_43, %c0_44] : memref<1x1xf32, #tpu.memory_space<vmem>>, vector<1x1xf32>
    %123 = vector.broadcast %122 : vector<1x1xf32> to vector<2x1xf32>
    %124 = arith.addf %121, %123 : vector<2x1xf32>
    %125 = arith.negf %124 : vector<2x1xf32>
    %126 = math.exp %125 : vector<2x1xf32>
    %cst_45 = arith.constant 1.000000e+00 : f32
    %127 = vector.broadcast %cst_45 : f32 to vector<2x1xf32>
    %128 = arith.addf %127, %126 : vector<2x1xf32>
    %129 = arith.divf %127, %128 : vector<2x1xf32>
    %c0_46 = arith.constant 0 : index
    %c0_47 = arith.constant 0 : index
    %130 = vector.load %arg8[%c0_46, %c0_47] : memref<2x1xf32, #tpu.memory_space<vmem>>, vector<2x1xf32>
    tpu.vector_store %arg8[%c0_46, %c0_47], %129 {strides = array<i32>} : memref<2x1xf32, #tpu.memory_space<vmem>>, vector<2x1xf32>,
    return
  }
}

</mosaic_0001>

<llo_original>
// kernel: cnn_lstm_forward.3
$region0: #{cnn_lstm_forward.3}
  #allocation0 [shape = 'u32[]', space=smem, size = 0x4, offset = 0x4, fixed_abs, tag = 'smem constant byte address 0x4 - core index']
  #allocation1 [shape = 'u32[144,128]{1,0:T(1,128)}', space=vmem, size = 0x12000, scoped, tag = 'internal scratch']
  #allocation2 [shape = 'f32[4,2,256]{2,1,0:T(2,128)}', space=vmem, size = 0x2000, scoped, tag = 'scratch operand']
  #allocation3 [shape = 'f32[1,1]{1,0:T(1,128)S(1)}', space=vmem, size = 0x200, scoped, tag = 'scoped memory for cnn_lstm_forward.3']
  %s0 = inlined_call_operand.vmem [shape: bf16[8,256], index: 0, kind: input, shape index: {}]
  %s1 = inlined_call_operand.vmem [shape: bf16[256,256], index: 1, kind: input, shape index: {}]
  %s2 = inlined_call_operand.vmem [shape: bf16[64,256], index: 2, kind: input, shape index: {}]
  %s3 = inlined_call_operand.vmem [shape: f32[1,256], index: 3, kind: input, shape index: {}]
  %s4 = inlined_call_operand.vmem [shape: f32[64,64], index: 4, kind: input, shape index: {}]
  %s5 = inlined_call_operand.vmem [shape: f32[1,64], index: 5, kind: input, shape index: {}]
  %s6 = inlined_call_operand.vmem [shape: f32[64,1], index: 6, kind: input, shape index: {}]
  %s7 = inlined_call_operand.<no memory space> [shape: f32[1,1], index: 7, kind: input, shape index: {}]
  %s8 = inlined_call_operand.vmem [shape: f32[2,1], index: 8, kind: output, shape index: {}]
  %s9 = sld [smem:[#allocation0]]
  $region42: #{cnn_lstm_forward.3} parent=0
    _
  %s11 = ssub.s32 1, %s9
  %s12 = scalar_select 0, %s11, %s9
  %v13 = vstv %s7
  %14 = vst [vmem:[#allocation3] sm:$0x1] %v13
  // Predicated region
  $region2: #{cnn_lstm_forward.3} parent=0 // pred_check
    _
  $region3: #{cnn_lstm_forward.3} parent=0 // pred_check_branch
    %16 = sbr.rel (0) target = $region5
  $region4: #{cnn_lstm_forward.3} parent=0 // pred_region
    _
  $region5: #{cnn_lstm_forward.3} parent=0 // pred_fallthru
    _
  // Predicated region
  $region6: #{cnn_lstm_forward.3} parent=0 // pred_check
    _
  $region7: #{cnn_lstm_forward.3} parent=0 // pred_check_branch
    %18 = sbr.rel (0) target = $region9
  $region8: #{cnn_lstm_forward.3} parent=0 // pred_region
    _
  $region9: #{cnn_lstm_forward.3} parent=0 // pred_fallthru
    _
  // Predicated region
  $region10: #{cnn_lstm_forward.3} parent=0 // pred_check
    _
  $region11: #{cnn_lstm_forward.3} parent=0 // pred_check_branch
    %20 = sbr.rel (0) target = $region13
  $region12: #{cnn_lstm_forward.3} parent=0 // pred_region
    _
  $region13: #{cnn_lstm_forward.3} parent=0 // pred_fallthru
    _
  // Predicated region
  $region14: #{cnn_lstm_forward.3} parent=0 // pred_check
    _
  $region15: #{cnn_lstm_forward.3} parent=0 // pred_check_branch
    %22 = sbr.rel (0) target = $region17
  $region16: #{cnn_lstm_forward.3} parent=0 // pred_region
    _
  $region17: #{cnn_lstm_forward.3} parent=0 // pred_fallthru
    _
  // Predicated region
  $region18: #{cnn_lstm_forward.3} parent=0 // pred_check
    _
  $region19: #{cnn_lstm_forward.3} parent=0 // pred_check_branch
    %24 = sbr.rel (0) target = $region21
  $region20: #{cnn_lstm_forward.3} parent=0 // pred_region
    _
  $region21: #{cnn_lstm_forward.3} parent=0 // pred_fallthru
    _
  // Predicated region
  $region22: #{cnn_lstm_forward.3} parent=0 // pred_check
    _
  $region23: #{cnn_lstm_forward.3} parent=0 // pred_check_branch
    %26 = sbr.rel (0) target = $region25
  $region24: #{cnn_lstm_forward.3} parent=0 // pred_region
    _
  $region25: #{cnn_lstm_forward.3} parent=0 // pred_fallthru
    _
  // Predicated region
  $region26: #{cnn_lstm_forward.3} parent=0 // pred_check
    _
  $region27: #{cnn_lstm_forward.3} parent=0 // pred_check_branch
    %28 = sbr.rel (0) target = $region29
  $region28: #{cnn_lstm_forward.3} parent=0 // pred_region
    _
  $region29: #{cnn_lstm_forward.3} parent=0 // pred_fallthru
    _
  // Predicated region
  $region30: #{cnn_lstm_forward.3} parent=0 // pred_check
    _
  $region31: #{cnn_lstm_forward.3} parent=0 // pred_check_branch
    %30 = sbr.rel (0) target = $region33
  $region32: #{cnn_lstm_forward.3} parent=0 // pred_region
    _
  $region33: #{cnn_lstm_forward.3} parent=0 // pred_fallthru
    _
  %v32 = vld [vmem:[%s0] sm:$0xff]
  %v33 = vld [vmem:[%s1] sm:$0xff]
  %v34 = vld [vmem:[%s1 + $0x8] sm:$0xff]
  %v35 = vld [vmem:[%s1 + $0x10] sm:$0xff]
  %v36 = vld [vmem:[%s1 + $0x18] sm:$0xff]
  %v37 = vld [vmem:[%s1 + $0x20] sm:$0xff]
  %v38 = vld [vmem:[%s1 + $0x28] sm:$0xff]
  %v39 = vld [vmem:[%s1 + $0x30] sm:$0xff]
  %v40 = vld [vmem:[%s1 + $0x38] sm:$0xff]
  %v41 = vld [vmem:[%s1 + $0x40] sm:$0xff]
  %v42 = vld [vmem:[%s1 + $0x48] sm:$0xff]
  %v43 = vld [vmem:[%s1 + $0x50] sm:$0xff]
  %v44 = vld [vmem:[%s1 + $0x58] sm:$0xff]
  %v45 = vld [vmem:[%s1 + $0x60] sm:$0xff]
  %v46 = vld [vmem:[%s1 + $0x68] sm:$0xff]
  %v47 = vld [vmem:[%s1 + $0x70] sm:$0xff]
  %v48 = vld [vmem:[%s1 + $0x78] sm:$0xff]
  %v49 = vld [vmem:[%s1 + $0x80] sm:$0xff]
  %v50 = vld [vmem:[%s1 + $0x88] sm:$0xff]
  %v51 = vld [vmem:[%s1 + $0x90] sm:$0xff]
  %v52 = vld [vmem:[%s1 + $0x98] sm:$0xff]
  %v53 = vld [vmem:[%s1 + $0xa0] sm:$0xff]
  %v54 = vld [vmem:[%s1 + $0xa8] sm:$0xff]
  %v55 = vld [vmem:[%s1 + $0xb0] sm:$0xff]
  %v56 = vld [vmem:[%s1 + $0xb8] sm:$0xff]
  %v57 = vld [vmem:[%s1 + $0xc0] sm:$0xff]
  %v58 = vld [vmem:[%s1 + $0xc8] sm:$0xff]
  %v59 = vld [vmem:[%s1 + $0xd0] sm:$0xff]
  %v60 = vld [vmem:[%s1 + $0xd8] sm:$0xff]
  %v61 = vld [vmem:[%s1 + $0xe0] sm:$0xff]
  %v62 = vld [vmem:[%s1 + $0xe8] sm:$0xff]
  %v63 = vld [vmem:[%s1 + $0xf0] sm:$0xff]
  %v64 = vld [vmem:[%s1 + $0xf8] sm:$0xff]
  %v65 = vld [vmem:[%s3] sm:$0x3]
  %v67 = vlaneseq
  %v68 = vshrl.u32 %v67, 7
  %v69 = vsub.s32 0, %v68
  %v70 = vrot.slane %v65, %v69
  %v71 = vlaneseq
  %v72 = vshrl.u32 %v71, 7
  %v73 = vsub.s32 1, %v72
  %v74 = vrot.slane %v65, %v73
  %v78 = vunpack.c.l.b16 %v32
  %v79 = vunpack.c.h.b16 %v32
  %v80 = vpack.c.b16 %v78, %v78
  %v81 = vpack.c.b16 %v79, %v79
  %v116 = vunpack.c.l.b16 %v33
  %v117 = vunpack.c.h.b16 %v33
  %v118 = vunpack.c.l.b16 %v34
  %v119 = vunpack.c.h.b16 %v34
  %v120 = vunpack.c.l.b16 %v35
  %v121 = vunpack.c.h.b16 %v35
  %v122 = vunpack.c.l.b16 %v36
  %v123 = vunpack.c.h.b16 %v36
  %v124 = vunpack.c.l.b16 %v37
  %v125 = vunpack.c.h.b16 %v37
  %v126 = vunpack.c.l.b16 %v38
  %v127 = vunpack.c.h.b16 %v38
  %v128 = vunpack.c.l.b16 %v39
  %v129 = vunpack.c.h.b16 %v39
  %v130 = vunpack.c.l.b16 %v40
  %v131 = vunpack.c.h.b16 %v40
  %v132 = vunpack.c.l.b16 %v41
  %v133 = vunpack.c.h.b16 %v41
  %v134 = vunpack.c.l.b16 %v42
  %v135 = vunpack.c.h.b16 %v42
  %v136 = vunpack.c.l.b16 %v43
  %v137 = vunpack.c.h.b16 %v43
  %v138 = vunpack.c.l.b16 %v44
  %v139 = vunpack.c.h.b16 %v44
  %v140 = vunpack.c.l.b16 %v45
  %v141 = vunpack.c.h.b16 %v45
  %v142 = vunpack.c.l.b16 %v46
  %v143 = vunpack.c.h.b16 %v46
  %v144 = vunpack.c.l.b16 %v47
  %v145 = vunpack.c.h.b16 %v47
  %v146 = vunpack.c.l.b16 %v48
  %v147 = vunpack.c.h.b16 %v48
  %v148 = vunpack.c.l.b16 %v49
  %v149 = vunpack.c.h.b16 %v49
  %v150 = vunpack.c.l.b16 %v50
  %v151 = vunpack.c.h.b16 %v50
  %v152 = vunpack.c.l.b16 %v51
  %v153 = vunpack.c.h.b16 %v51
  %v154 = vunpack.c.l.b16 %v52
  %v155 = vunpack.c.h.b16 %v52
  %v156 = vunpack.c.l.b16 %v53
  %v157 = vunpack.c.h.b16 %v53
  %v158 = vunpack.c.l.b16 %v54
  %v159 = vunpack.c.h.b16 %v54
  %v160 = vunpack.c.l.b16 %v55
  %v161 = vunpack.c.h.b16 %v55
  %v162 = vunpack.c.l.b16 %v56
  %v163 = vunpack.c.h.b16 %v56
  %v164 = vunpack.c.l.b16 %v57
  %v165 = vunpack.c.h.b16 %v57
  %v166 = vunpack.c.l.b16 %v58
  %v167 = vunpack.c.h.b16 %v58
  %v168 = vunpack.c.l.b16 %v59
  %v169 = vunpack.c.h.b16 %v59
  %v170 = vunpack.c.l.b16 %v60
  %v171 = vunpack.c.h.b16 %v60
  %v172 = vunpack.c.l.b16 %v61
  %v173 = vunpack.c.h.b16 %v61
  %v174 = vunpack.c.l.b16 %v62
  %v175 = vunpack.c.h.b16 %v62
  %v176 = vunpack.c.l.b16 %v63
  %v177 = vunpack.c.h.b16 %v63
  %v178 = vunpack.c.l.b16 %v64
  %v179 = vunpack.c.h.b16 %v64
  %v180 = vpack.c.b16 %v118, %v116
  %v181 = vpack.c.b16 %v119, %v117
  %v182 = vpack.c.b16 %v122, %v120
  %v183 = vpack.c.b16 %v123, %v121
  %v184 = vpack.c.b16 %v126, %v124
  %v185 = vpack.c.b16 %v127, %v125
  %v186 = vpack.c.b16 %v130, %v128
  %v187 = vpack.c.b16 %v131, %v129
  %v188 = vpack.c.b16 %v134, %v132
  %v189 = vpack.c.b16 %v135, %v133
  %v190 = vpack.c.b16 %v138, %v136
  %v191 = vpack.c.b16 %v139, %v137
  %v192 = vpack.c.b16 %v142, %v140
  %v193 = vpack.c.b16 %v143, %v141
  %v194 = vpack.c.b16 %v146, %v144
  %v195 = vpack.c.b16 %v147, %v145
  %v196 = vpack.c.b16 %v150, %v148
  %v197 = vpack.c.b16 %v151, %v149
  %v198 = vpack.c.b16 %v154, %v152
  %v199 = vpack.c.b16 %v155, %v153
  %v200 = vpack.c.b16 %v158, %v156
  %v201 = vpack.c.b16 %v159, %v157
  %v202 = vpack.c.b16 %v162, %v160
  %v203 = vpack.c.b16 %v163, %v161
  %v204 = vpack.c.b16 %v166, %v164
  %v205 = vpack.c.b16 %v167, %v165
  %v206 = vpack.c.b16 %v170, %v168
  %v207 = vpack.c.b16 %v171, %v169
  %v208 = vpack.c.b16 %v174, %v172
  %v209 = vpack.c.b16 %v175, %v173
  %v210 = vpack.c.b16 %v178, %v176
  %v211 = vpack.c.b16 %v179, %v177
  %244 = vmatprep.subr.bf16.mxu0 %v181
  %245 = vmatpush1.bf16.msra.mxu0 %v180
  %246 = vmatprep.subr.bf16.mxu0 %v183
  %247 = vmatpush1.bf16.msra.mxu0 %v182
  %248 = vmatprep.subr.bf16.mxu0 %v185
  %249 = vmatpush1.bf16.msra.mxu0 %v184
  %250 = vmatprep.subr.bf16.mxu0 %v187
  %251 = vmatpush1.bf16.msra.mxu0 %v186
  %252 = vmatprep.subr.bf16.mxu0 %v189
  %253 = vmatpush1.bf16.msra.mxu0 %v188
  %254 = vmatprep.subr.bf16.mxu0 %v191
  %255 = vmatpush1.bf16.msra.mxu0 %v190
  %256 = vmatprep.subr.bf16.mxu0 %v193
  %257 = vmatpush1.bf16.msra.mxu0 %v192
  %258 = vmatprep.subr.bf16.mxu0 %v195
  %259 = vmatpush1.bf16.msra.mxu0 %v194
  %260 = vmatprep.subr.bf16.mxu0 %v197
  %261 = vmatpush1.bf16.msra.mxu0 %v196
  %262 = vmatprep.subr.bf16.mxu0 %v199
  %263 = vmatpush1.bf16.msra.mxu0 %v198
  %264 = vmatprep.subr.bf16.mxu0 %v201
  %265 = vmatpush1.bf16.msra.mxu0 %v200
  %266 = vmatprep.subr.bf16.mxu0 %v203
  %267 = vmatpush1.bf16.msra.mxu0 %v202
  %268 = vmatprep.subr.bf16.mxu0 %v205
  %269 = vmatpush1.bf16.msra.mxu0 %v204
  %270 = vmatprep.subr.bf16.mxu0 %v207
  %271 = vmatpush1.bf16.msra.mxu0 %v206
  %272 = vmatprep.subr.bf16.mxu0 %v209
  %273 = vmatpush1.bf16.msra.mxu0 %v208
  %274 = vmatprep.subr.bf16.mxu0 %v211
  %275 = vmatpush1.bf16.msra.mxu0 %v210
  %276 = vmatprep.mubr.bf16.mxu0 %v81
  %277 = vmatmul.mubr.bf16.gmra.mrb[0].mxu0 %v80
  %v278 = vpop.f32.mrb[0].mxu0
  %v279 = vadd.f32 %v70, %v278
  %v280 = vpop.f32.mrb[0].mxu0
  %v281 = vadd.f32 %v74, %v280
  %v282 = vpop.f32.mrb[0].mxu0
  %v283 = vpop.f32.mrb[0].mxu0
  %284 = vdwg.mxu0
  %v287 = vcombine.low %v279, %v281
  %v289 = vunpack.c.l.s4 1983009808
  %v290 = vunpack.c.0.s8 %v289
  %v291 = vlaneseq
  %v292 = vshrl.u32 %v291, 7
  %v293 = vsub.s32 %v290, %v292
  %v294 = vrot.slane %v287, %v293
  %296 = vst [vmem:[#allocation2] sm:$0xf] %v294
  %v297 = vcombine.high %v294, %v294
  %s299 = scalar_lea.vmem [#allocation2], 4
  %300 = vst [vmem:[%s299] sm:$0xf] %v297
  %v301 = vcombine.high %v279, %v281
  %v303 = vunpack.c.l.s4 1983009808
  %v304 = vunpack.c.0.s8 %v303
  %v305 = vlaneseq
  %v306 = vshrl.u32 %v305, 7
  %v307 = vsub.s32 %v304, %v306
  %v308 = vrot.slane %v301, %v307
  %s310 = scalar_lea.vmem [#allocation2], 8
  %311 = vst [vmem:[%s310] sm:$0xf] %v308
  %v312 = vcombine.high %v308, %v308
  %s314 = scalar_lea.vmem [#allocation2], 12
  %315 = vst [vmem:[%s314] sm:$0xf] %v312
  %v316 = vld [vmem:[%s2] sm:$0xff]
  %v317 = vld [vmem:[%s2 + $0x8] sm:$0xff]
  %v318 = vld [vmem:[%s2 + $0x10] sm:$0xff]
  %v319 = vld [vmem:[%s2 + $0x18] sm:$0xff]
  %v320 = vld [vmem:[%s2 + $0x20] sm:$0xff]
  %v321 = vld [vmem:[%s2 + $0x28] sm:$0xff]
  %v322 = vld [vmem:[%s2 + $0x30] sm:$0xff]
  %v323 = vld [vmem:[%s2 + $0x38] sm:$0xff]
  %v324 = vld [vmem:[#allocation2] sm:$0xf]
  %v333 = vunpack.c.l.b16 %v316
  %v334 = vunpack.c.h.b16 %v316
  %v335 = vunpack.c.l.b16 %v317
  %v336 = vunpack.c.h.b16 %v317
  %v337 = vunpack.c.l.b16 %v318
  %v338 = vunpack.c.h.b16 %v318
  %v339 = vunpack.c.l.b16 %v319
  %v340 = vunpack.c.h.b16 %v319
  %v341 = vunpack.c.l.b16 %v320
  %v342 = vunpack.c.h.b16 %v320
  %v343 = vunpack.c.l.b16 %v321
  %v344 = vunpack.c.h.b16 %v321
  %v345 = vunpack.c.l.b16 %v322
  %v346 = vunpack.c.h.b16 %v322
  %v347 = vunpack.c.l.b16 %v323
  %v348 = vunpack.c.h.b16 %v323
  %v349 = vpack.c.b16 %v335, %v333
  %v350 = vpack.c.b16 %v336, %v334
  %v351 = vpack.c.b16 %v339, %v337
  %v352 = vpack.c.b16 %v340, %v338
  %v353 = vpack.c.b16 %v343, %v341
  %v354 = vpack.c.b16 %v344, %v342
  %v355 = vpack.c.b16 %v347, %v345
  %v356 = vpack.c.b16 %v348, %v346
  %vm365 = vcmask 523264
  %v367 = vsel %vm365, 0, 0
  %369 = vmatprep.subr.bf16.mxu0 %v350
  %370 = vmatpush1.bf16.msra.mxu0 %v349
  %371 = vmatprep.subr.bf16.mxu0 %v352
  %372 = vmatpush1.bf16.msra.mxu0 %v351
  %373 = vmatprep.subr.bf16.mxu0 %v354
  %374 = vmatpush1.bf16.msra.mxu0 %v353
  %375 = vmatprep.subr.bf16.mxu0 %v356
  %376 = vmatpush1.bf16.msra.mxu0 %v355
  %377 = vmatprep.subr.bf16.mxu0 0
  %378 = vmatpush1.bf16.msra.mxu0 0
  %379 = vmatprep.subr.bf16.mxu0 0
  %380 = vmatpush1.bf16.msra.mxu0 0
  %381 = vmatprep.subr.bf16.mxu0 0
  %382 = vmatpush1.bf16.msra.mxu0 0
  %383 = vmatprep.subr.bf16.mxu0 0
  %384 = vmatpush1.bf16.msra.mxu0 0
  %385 = vmatprep.subr.bf16.mxu0 0
  %386 = vmatpush1.bf16.msra.mxu0 0
  %387 = vmatprep.subr.bf16.mxu0 0
  %388 = vmatpush1.bf16.msra.mxu0 0
  %389 = vmatprep.subr.bf16.mxu0 0
  %390 = vmatpush1.bf16.msra.mxu0 0
  %391 = vmatprep.subr.bf16.mxu0 0
  %392 = vmatpush1.bf16.msra.mxu0 0
  %393 = vmatprep.subr.bf16.mxu0 0
  %394 = vmatpush1.bf16.msra.mxu0 0
  %395 = vmatprep.subr.bf16.mxu0 0
  %396 = vmatpush1.bf16.msra.mxu0 0
  %397 = vmatprep.subr.bf16.mxu0 0
  %398 = vmatpush1.bf16.msra.mxu0 0
  %399 = vmatprep.subr.bf16.mxu0 0
  %400 = vmatpush1.bf16.msra.mxu0 0
  %401 = vmatprep.mubr.bf16.mxu0 0
  %402 = vmatmul.mubr.bf16.gmra.mrb[0].mxu0 %v367
  %v403 = vpop.f32.mrb[0].mxu0
  %v404 = vadd.f32 0.0, %v403
  %v405 = vpop.f32.mrb[0].mxu0
  %v406 = vadd.f32 0.0, %v405
  %v407 = vpop.f32.mrb[0].mxu0
  %v408 = vpop.f32.mrb[0].mxu0
  %409 = vdwg.mxu0
  %v412 = vcombine.low %v404, %v406
  %v414 = vunpack.c.l.s4 1983009808
  %v415 = vunpack.c.0.s8 %v414
  %v416 = vlaneseq
  %v417 = vshrl.u32 %v416, 7
  %v418 = vsub.s32 %v415, %v417
  %v419 = vrot.slane %v412, %v418
  %v421 = vadd.f32 %v324, %v419
  %v422 = vxor.u32 %v421, 2147483648
  %v423 = vmul.f32 %v422, 1.442695
  %v424 = vpow.pop %v423
  %v425 = vadd.f32 %v424, 1.0
  %v426 = vrcp.pop %v425
  %v427 = vmul.f32 1.0, %v426
  %429 = vrot.lane.b32.xlu0 %v421, 64
  %v430 = vpop.permute.xlu0 %429
  %v431 = vrot.slane %v430, 2
  %v433 = vtanh.pop %v431
  %v434 = vmul.f32 %v427, 0.0
  %v435 = vmul.f32 %v427, %v433
  %437 = vrot.lane.b32.xlu0 %v435, 64
  %v438 = vpop.permute.xlu0 %437
  %v440 = vadd.f32 %v434, %v438
  %v441 = vtanh.pop %v440
  %v443 = vrot.slane %v427, 2
  %446 = vrot.lane.b32.xlu0 %v441, 64
  %v447 = vpop.permute.xlu0 %446
  %v449 = vmul.f32 %v443, %v447
  %v450 = vld [vmem:[%s299] sm:$0xf]
  %v451 = vpack.c.bf16 %v449, %v449
  %v453 = vsel %vm365, %v451, 0
  %455 = vmatprep.subr.bf16.mxu0 %v350
  %456 = vmatpush1.bf16.msra.mxu0 %v349
  %457 = vmatprep.subr.bf16.mxu0 %v352
  %458 = vmatpush1.bf16.msra.mxu0 %v351
  %459 = vmatprep.subr.bf16.mxu0 %v354
  %460 = vmatpush1.bf16.msra.mxu0 %v353
  %461 = vmatprep.subr.bf16.mxu0 %v356
  %462 = vmatpush1.bf16.msra.mxu0 %v355
  %463 = vmatprep.subr.bf16.mxu0 0
  %464 = vmatpush1.bf16.msra.mxu0 0
  %465 = vmatprep.subr.bf16.mxu0 0
  %466 = vmatpush1.bf16.msra.mxu0 0
  %467 = vmatprep.subr.bf16.mxu0 0
  %468 = vmatpush1.bf16.msra.mxu0 0
  %469 = vmatprep.subr.bf16.mxu0 0
  %470 = vmatpush1.bf16.msra.mxu0 0
  %471 = vmatprep.subr.bf16.mxu0 0
  %472 = vmatpush1.bf16.msra.mxu0 0
  %473 = vmatprep.subr.bf16.mxu0 0
  %474 = vmatpush1.bf16.msra.mxu0 0
  %475 = vmatprep.subr.bf16.mxu0 0
  %476 = vmatpush1.bf16.msra.mxu0 0
  %477 = vmatprep.subr.bf16.mxu0 0
  %478 = vmatpush1.bf16.msra.mxu0 0
  %479 = vmatprep.subr.bf16.mxu0 0
  %480 = vmatpush1.bf16.msra.mxu0 0
  %481 = vmatprep.subr.bf16.mxu0 0
  %482 = vmatpush1.bf16.msra.mxu0 0
  %483 = vmatprep.subr.bf16.mxu0 0
  %484 = vmatpush1.bf16.msra.mxu0 0
  %485 = vmatprep.subr.bf16.mxu0 0
  %486 = vmatpush1.bf16.msra.mxu0 0
  %487 = vmatprep.mubr.bf16.mxu0 0
  %488 = vmatmul.mubr.bf16.gmra.mrb[0].mxu0 %v453
  %v489 = vpop.f32.mrb[0].mxu0
  %v490 = vadd.f32 0.0, %v489
  %v491 = vpop.f32.mrb[0].mxu0
  %v492 = vadd.f32 0.0, %v491
  %v493 = vpop.f32.mrb[0].mxu0
  %v494 = vpop.f32.mrb[0].mxu0
  %495 = vdwg.mxu0
  %v498 = vcombine.low %v490, %v492
  %v500 = vunpack.c.l.s4 1983009808
  %v501 = vunpack.c.0.s8 %v500
  %v502 = vlaneseq
  %v503 = vshrl.u32 %v502, 7
  %v504 = vsub.s32 %v501, %v503
  %v505 = vrot.slane %v498, %v504
  %v507 = vadd.f32 %v450, %v505
  %v508 = vxor.u32 %v507, 2147483648
  %v509 = vmul.f32 %v508, 1.442695
  %v510 = vpow.pop %v509
  %v511 = vadd.f32 %v510, 1.0
  %v512 = vrcp.pop %v511
  %v513 = vmul.f32 1.0, %v512
  %515 = vrot.lane.b32.xlu0 %v507, 64
  %v516 = vpop.permute.xlu0 %515
  %v517 = vrot.slane %v516, 2
  %v519 = vtanh.pop %v517
  %v520 = vmul.f32 %v513, %v440
  %v521 = vmul.f32 %v513, %v519
  %523 = vrot.lane.b32.xlu0 %v521, 64
  %v524 = vpop.permute.xlu0 %523
  %v526 = vadd.f32 %v520, %v524
  %v527 = vtanh.pop %v526
  %v529 = vrot.slane %v513, 2
  %532 = vrot.lane.b32.xlu0 %v527, 64
  %v533 = vpop.permute.xlu0 %532
  %v535 = vmul.f32 %v529, %v533
  %v536 = vld [vmem:[%s310] sm:$0xf]
  %v537 = vpack.c.bf16 %v535, %v535
  %v539 = vsel %vm365, %v537, 0
  %541 = vmatprep.subr.bf16.mxu0 %v350
  %542 = vmatpush1.bf16.msra.mxu0 %v349
  %543 = vmatprep.subr.bf16.mxu0 %v352
  %544 = vmatpush1.bf16.msra.mxu0 %v351
  %545 = vmatprep.subr.bf16.mxu0 %v354
  %546 = vmatpush1.bf16.msra.mxu0 %v353
  %547 = vmatprep.subr.bf16.mxu0 %v356
  %548 = vmatpush1.bf16.msra.mxu0 %v355
  %549 = vmatprep.subr.bf16.mxu0 0
  %550 = vmatpush1.bf16.msra.mxu0 0
  %551 = vmatprep.subr.bf16.mxu0 0
  %552 = vmatpush1.bf16.msra.mxu0 0
  %553 = vmatprep.subr.bf16.mxu0 0
  %554 = vmatpush1.bf16.msra.mxu0 0
  %555 = vmatprep.subr.bf16.mxu0 0
  %556 = vmatpush1.bf16.msra.mxu0 0
  %557 = vmatprep.subr.bf16.mxu0 0
  %558 = vmatpush1.bf16.msra.mxu0 0
  %559 = vmatprep.subr.bf16.mxu0 0
  %560 = vmatpush1.bf16.msra.mxu0 0
  %561 = vmatprep.subr.bf16.mxu0 0
  %562 = vmatpush1.bf16.msra.mxu0 0
  %563 = vmatprep.subr.bf16.mxu0 0
  %564 = vmatpush1.bf16.msra.mxu0 0
  %565 = vmatprep.subr.bf16.mxu0 0
  %566 = vmatpush1.bf16.msra.mxu0 0
  %567 = vmatprep.subr.bf16.mxu0 0
  %568 = vmatpush1.bf16.msra.mxu0 0
  %569 = vmatprep.subr.bf16.mxu0 0
  %570 = vmatpush1.bf16.msra.mxu0 0
  %571 = vmatprep.subr.bf16.mxu0 0
  %572 = vmatpush1.bf16.msra.mxu0 0
  %573 = vmatprep.mubr.bf16.mxu0 0
  %574 = vmatmul.mubr.bf16.gmra.mrb[0].mxu0 %v539
  %v575 = vpop.f32.mrb[0].mxu0
  %v576 = vadd.f32 0.0, %v575
  %v577 = vpop.f32.mrb[0].mxu0
  %v578 = vadd.f32 0.0, %v577
  %v579 = vpop.f32.mrb[0].mxu0
  %v580 = vpop.f32.mrb[0].mxu0
  %581 = vdwg.mxu0
  %v584 = vcombine.low %v576, %v578
  %v586 = vunpack.c.l.s4 1983009808
  %v587 = vunpack.c.0.s8 %v586
  %v588 = vlaneseq
  %v589 = vshrl.u32 %v588, 7
  %v590 = vsub.s32 %v587, %v589
  %v591 = vrot.slane %v584, %v590
  %v593 = vadd.f32 %v536, %v591
  %v594 = vxor.u32 %v593, 2147483648
  %v595 = vmul.f32 %v594, 1.442695
  %v596 = vpow.pop %v595
  %v597 = vadd.f32 %v596, 1.0
  %v598 = vrcp.pop %v597
  %v599 = vmul.f32 1.0, %v598
  %601 = vrot.lane.b32.xlu0 %v593, 64
  %v602 = vpop.permute.xlu0 %601
  %v603 = vrot.slane %v602, 2
  %v605 = vtanh.pop %v603
  %v606 = vmul.f32 %v599, %v526
  %v607 = vmul.f32 %v599, %v605
  %609 = vrot.lane.b32.xlu0 %v607, 64
  %v610 = vpop.permute.xlu0 %609
  %v612 = vadd.f32 %v606, %v610
  %v613 = vtanh.pop %v612
  %v615 = vrot.slane %v599, 2
  %618 = vrot.lane.b32.xlu0 %v613, 64
  %v619 = vpop.permute.xlu0 %618
  %v621 = vmul.f32 %v615, %v619
  %v622 = vld [vmem:[%s314] sm:$0xf]
  %v623 = vpack.c.bf16 %v621, %v621
  %v625 = vsel %vm365, %v623, 0
  %627 = vmatprep.subr.bf16.mxu0 %v350
  %628 = vmatpush1.bf16.msra.mxu0 %v349
  %629 = vmatprep.subr.bf16.mxu0 %v352
  %630 = vmatpush1.bf16.msra.mxu0 %v351
  %631 = vmatprep.subr.bf16.mxu0 %v354
  %632 = vmatpush1.bf16.msra.mxu0 %v353
  %633 = vmatprep.subr.bf16.mxu0 %v356
  %634 = vmatpush1.bf16.msra.mxu0 %v355
  %635 = vmatprep.subr.bf16.mxu0 0
  %636 = vmatpush1.bf16.msra.mxu0 0
  %637 = vmatprep.subr.bf16.mxu0 0
  %638 = vmatpush1.bf16.msra.mxu0 0
  %639 = vmatprep.subr.bf16.mxu0 0
  %640 = vmatpush1.bf16.msra.mxu0 0
  %641 = vmatprep.subr.bf16.mxu0 0
  %642 = vmatpush1.bf16.msra.mxu0 0
  %643 = vmatprep.subr.bf16.mxu0 0
  %644 = vmatpush1.bf16.msra.mxu0 0
  %645 = vmatprep.subr.bf16.mxu0 0
  %646 = vmatpush1.bf16.msra.mxu0 0
  %647 = vmatprep.subr.bf16.mxu0 0
  %648 = vmatpush1.bf16.msra.mxu0 0
  %649 = vmatprep.subr.bf16.mxu0 0
  %650 = vmatpush1.bf16.msra.mxu0 0
  %651 = vmatprep.subr.bf16.mxu0 0
  %652 = vmatpush1.bf16.msra.mxu0 0
  %653 = vmatprep.subr.bf16.mxu0 0
  %654 = vmatpush1.bf16.msra.mxu0 0
  %655 = vmatprep.subr.bf16.mxu0 0
  %656 = vmatpush1.bf16.msra.mxu0 0
  %657 = vmatprep.subr.bf16.mxu0 0
  %658 = vmatpush1.bf16.msra.mxu0 0
  %659 = vmatprep.mubr.bf16.mxu0 0
  %660 = vmatmul.mubr.bf16.gmra.mrb[0].mxu0 %v625
  %v661 = vpop.f32.mrb[0].mxu0
  %v662 = vadd.f32 0.0, %v661
  %v663 = vpop.f32.mrb[0].mxu0
  %v664 = vadd.f32 0.0, %v663
  %v665 = vpop.f32.mrb[0].mxu0
  %v666 = vpop.f32.mrb[0].mxu0
  %667 = vdwg.mxu0
  %v670 = vcombine.low %v662, %v664
  %v672 = vunpack.c.l.s4 1983009808
  %v673 = vunpack.c.0.s8 %v672
  %v674 = vlaneseq
  %v675 = vshrl.u32 %v674, 7
  %v676 = vsub.s32 %v673, %v675
  %v677 = vrot.slane %v670, %v676
  %v679 = vadd.f32 %v622, %v677
  %v680 = vxor.u32 %v679, 2147483648
  %v681 = vmul.f32 %v680, 1.442695
  %v682 = vpow.pop %v681
  %v683 = vadd.f32 %v682, 1.0
  %v684 = vrcp.pop %v683
  %v685 = vmul.f32 1.0, %v684
  %687 = vrot.lane.b32.xlu0 %v679, 64
  %v688 = vpop.permute.xlu0 %687
  %v689 = vrot.slane %v688, 2
  %v691 = vtanh.pop %v689
  %v692 = vmul.f32 %v685, %v612
  %v693 = vmul.f32 %v685, %v691
  %695 = vrot.lane.b32.xlu0 %v693, 64
  %v696 = vpop.permute.xlu0 %695
  %v698 = vadd.f32 %v692, %v696
  %v699 = vtanh.pop %v698
  %v701 = vrot.slane %v685, 2
  %704 = vrot.lane.b32.xlu0 %v699, 64
  %v705 = vpop.permute.xlu0 %704
  %v707 = vmul.f32 %v701, %v705
  %v708 = vld [vmem:[%s4] sm:$0xff]
  %v709 = vld [vmem:[%s4 + $0x8] sm:$0xff]
  %v710 = vld [vmem:[%s4 + $0x10] sm:$0xff]
  %v711 = vld [vmem:[%s4 + $0x18] sm:$0xff]
  %v712 = vld [vmem:[%s4 + $0x20] sm:$0xff]
  %v713 = vld [vmem:[%s4 + $0x28] sm:$0xff]
  %v714 = vld [vmem:[%s4 + $0x30] sm:$0xff]
  %v715 = vld [vmem:[%s4 + $0x38] sm:$0xff]
  %v716 = vld [vmem:[%s5] sm:$0x1]
  %v718 = vlaneseq
  %v719 = vshrl.u32 %v718, 7
  %v720 = vsub.s32 0, %v719
  %v721 = vrot.slane %v716, %v720
  %v724 = vsel %vm365, %v707, 0
  %726 = vmatprep.subr.mxu0 0.0
  %727 = vmatpush1.msra.mxu0 %v708
  %728 = vmatprep.subr.mxu0 0.0
  %729 = vmatpush1.msra.mxu0 %v709
  %730 = vmatprep.subr.mxu0 0.0
  %731 = vmatpush1.msra.mxu0 %v710
  %732 = vmatprep.subr.mxu0 0.0
  %733 = vmatpush1.msra.mxu0 %v711
  %734 = vmatprep.subr.mxu0 0.0
  %735 = vmatpush1.msra.mxu0 %v712
  %736 = vmatprep.subr.mxu0 0.0
  %737 = vmatpush1.msra.mxu0 %v713
  %738 = vmatprep.subr.mxu0 0.0
  %739 = vmatpush1.msra.mxu0 %v714
  %740 = vmatprep.subr.mxu0 0.0
  %741 = vmatpush1.msra.mxu0 %v715
  %742 = vmatprep.subr.mxu0 0.0
  %743 = vmatpush1.msra.mxu0 0.0
  %744 = vmatprep.subr.mxu0 0.0
  %745 = vmatpush1.msra.mxu0 0.0
  %746 = vmatprep.subr.mxu0 0.0
  %747 = vmatpush1.msra.mxu0 0.0
  %748 = vmatprep.subr.mxu0 0.0
  %749 = vmatpush1.msra.mxu0 0.0
  %750 = vmatprep.subr.mxu0 0.0
  %751 = vmatpush1.msra.mxu0 0.0
  %752 = vmatprep.subr.mxu0 0.0
  %753 = vmatpush1.msra.mxu0 0.0
  %754 = vmatprep.subr.mxu0 0.0
  %755 = vmatpush1.msra.mxu0 0.0
  %756 = vmatprep.subr.mxu0 0.0
  %757 = vmatpush1.msra.mxu0 0.0
  %758 = vmatprep.subr.mxu0 0.0
  %759 = vmatpush1.msra.mxu0 0.0
  %760 = vmatprep.subr.mxu0 0.0
  %761 = vmatpush1.msra.mxu0 0.0
  %762 = vmatprep.subr.mxu0 0.0
  %763 = vmatpush1.msra.mxu0 0.0
  %764 = vmatprep.subr.mxu0 0.0
  %765 = vmatpush1.msra.mxu0 0.0
  %766 = vmatprep.subr.mxu0 0.0
  %767 = vmatpush1.msra.mxu0 0.0
  %768 = vmatprep.subr.mxu0 0.0
  %769 = vmatpush1.msra.mxu0 0.0
  %770 = vmatprep.subr.mxu0 0.0
  %771 = vmatpush1.msra.mxu0 0.0
  %772 = vmatprep.subr.mxu0 0.0
  %773 = vmatpush1.msra.mxu0 0.0
  %774 = vmatprep.subr.mxu0 0.0
  %775 = vmatpush1.msra.mxu0 0.0
  %776 = vmatprep.subr.mxu0 0.0
  %777 = vmatpush1.msra.mxu0 0.0
  %778 = vmatprep.subr.mxu0 0.0
  %779 = vmatpush1.msra.mxu0 0.0
  %780 = vmatprep.subr.mxu0 0.0
  %781 = vmatpush1.msra.mxu0 0.0
  %782 = vmatprep.subr.mxu0 0.0
  %783 = vmatpush1.msra.mxu0 0.0
  %784 = vmatprep.subr.mxu0 0.0
  %785 = vmatpush1.msra.mxu0 0.0
  %786 = vmatprep.subr.mxu0 0.0
  %787 = vmatpush1.msra.mxu0 0.0
  %788 = vmatprep.subr.mxu0 0.0
  %789 = vmatpush1.msra.mxu0 0.0
  %790 = vmatprep.mubr.f32.mxu0 0.0
  %791 = vmatmul.mubr.f32.gmra.mrb[0].mxu0 %v724
  %v792 = vpop.f32.mrb[0].mxu0
  %v793 = vadd.f32 %v721, %v792
  %v794 = vpop.f32.mrb[0].mxu0
  %795 = vdwg.mxu0
  %v796 = vmax.f32 %v793, 0.0
  %v797 = vld [vmem:[%s6] sm:$0xff]
  %v798 = vld [vmem:[%s6 + $0x8] sm:$0xff]
  %v799 = vld [vmem:[%s6 + $0x10] sm:$0xff]
  %v800 = vld [vmem:[%s6 + $0x18] sm:$0xff]
  %v801 = vld [vmem:[%s6 + $0x20] sm:$0xff]
  %v802 = vld [vmem:[%s6 + $0x28] sm:$0xff]
  %v803 = vld [vmem:[%s6 + $0x30] sm:$0xff]
  %v804 = vld [vmem:[%s6 + $0x38] sm:$0xff]
  %v805 = vld [vmem:[#allocation3] sm:$0x1]
  %v807 = vlaneseq
  %v808 = vshrl.u32 %v807, 7
  %v809 = vsub.s32 0, %v808
  %v810 = vrot.slane %v805, %v809
  %v813 = vsel %vm365, %v796, 0
  %815 = vmatprep.subr.mxu0 0.0
  %816 = vmatpush1.msra.mxu0 %v797
  %817 = vmatprep.subr.mxu0 0.0
  %818 = vmatpush1.msra.mxu0 %v798
  %819 = vmatprep.subr.mxu0 0.0
  %820 = vmatpush1.msra.mxu0 %v799
  %821 = vmatprep.subr.mxu0 0.0
  %822 = vmatpush1.msra.mxu0 %v800
  %823 = vmatprep.subr.mxu0 0.0
  %824 = vmatpush1.msra.mxu0 %v801
  %825 = vmatprep.subr.mxu0 0.0
  %826 = vmatpush1.msra.mxu0 %v802
  %827 = vmatprep.subr.mxu0 0.0
  %828 = vmatpush1.msra.mxu0 %v803
  %829 = vmatprep.subr.mxu0 0.0
  %830 = vmatpush1.msra.mxu0 %v804
  %831 = vmatprep.subr.mxu0 0.0
  %832 = vmatpush1.msra.mxu0 0.0
  %833 = vmatprep.subr.mxu0 0.0
  %834 = vmatpush1.msra.mxu0 0.0
  %835 = vmatprep.subr.mxu0 0.0
  %836 = vmatpush1.msra.mxu0 0.0
  %837 = vmatprep.subr.mxu0 0.0
  %838 = vmatpush1.msra.mxu0 0.0
  %839 = vmatprep.subr.mxu0 0.0
  %840 = vmatpush1.msra.mxu0 0.0
  %841 = vmatprep.subr.mxu0 0.0
  %842 = vmatpush1.msra.mxu0 0.0
  %843 = vmatprep.subr.mxu0 0.0
  %844 = vmatpush1.msra.mxu0 0.0
  %845 = vmatprep.subr.mxu0 0.0
  %846 = vmatpush1.msra.mxu0 0.0
  %847 = vmatprep.subr.mxu0 0.0
  %848 = vmatpush1.msra.mxu0 0.0
  %849 = vmatprep.subr.mxu0 0.0
  %850 = vmatpush1.msra.mxu0 0.0
  %851 = vmatprep.subr.mxu0 0.0
  %852 = vmatpush1.msra.mxu0 0.0
  %853 = vmatprep.subr.mxu0 0.0
  %854 = vmatpush1.msra.mxu0 0.0
  %855 = vmatprep.subr.mxu0 0.0
  %856 = vmatpush1.msra.mxu0 0.0
  %857 = vmatprep.subr.mxu0 0.0
  %858 = vmatpush1.msra.mxu0 0.0
  %859 = vmatprep.subr.mxu0 0.0
  %860 = vmatpush1.msra.mxu0 0.0
  %861 = vmatprep.subr.mxu0 0.0
  %862 = vmatpush1.msra.mxu0 0.0
  %863 = vmatprep.subr.mxu0 0.0
  %864 = vmatpush1.msra.mxu0 0.0
  %865 = vmatprep.subr.mxu0 0.0
  %866 = vmatpush1.msra.mxu0 0.0
  %867 = vmatprep.subr.mxu0 0.0
  %868 = vmatpush1.msra.mxu0 0.0
  %869 = vmatprep.subr.mxu0 0.0
  %870 = vmatpush1.msra.mxu0 0.0
  %871 = vmatprep.subr.mxu0 0.0
  %872 = vmatpush1.msra.mxu0 0.0
  %873 = vmatprep.subr.mxu0 0.0
  %874 = vmatpush1.msra.mxu0 0.0
  %875 = vmatprep.subr.mxu0 0.0
  %876 = vmatpush1.msra.mxu0 0.0
  %877 = vmatprep.subr.mxu0 0.0
  %878 = vmatpush1.msra.mxu0 0.0
  %879 = vmatprep.mubr.f32.mxu0 0.0
  %880 = vmatmul.mubr.f32.gmra.mrb[0].mxu0 %v813
  %v881 = vpop.f32.mrb[0].mxu0
  %v882 = vadd.f32 %v810, %v881
  %v883 = vpop.f32.mrb[0].mxu0
  %884 = vdwg.mxu0
  %v885 = vxor.u32 %v882, 2147483648
  %v886 = vmul.f32 %v885, 1.442695
  %v887 = vpow.pop %v886
  %v888 = vadd.f32 %v887, 1.0
  %v889 = vrcp.pop %v888
  %v890 = vmul.f32 1.0, %v889
  %vm891 = vcmask 1024
  %892 = vst.msk [vmem:[%s8] sm:$0x3] %vm891, %v890
  // Predicated region
  $region34: #{cnn_lstm_forward.3} parent=0 // pred_check
    _
  $region35: #{cnn_lstm_forward.3} parent=0 // pred_check_branch
    %894 = sbr.rel (0) target = $region37
  $region36: #{cnn_lstm_forward.3} parent=0 // pred_region
    _
  $region37: #{cnn_lstm_forward.3} parent=0 // pred_fallthru
    _
  // Predicated region
  $region38: #{cnn_lstm_forward.3} parent=0 // pred_check
    _
  $region39: #{cnn_lstm_forward.3} parent=0 // pred_check_branch
    %896 = sbr.rel (0) target = $region41
  $region40: #{cnn_lstm_forward.3} parent=0 // pred_region
    _
  $region41: #{cnn_lstm_forward.3} parent=0 // pred_fallthru
    _

// kernel: cnn_lstm_forward.2
$region0: #{cnn_lstm_forward.2}
  #allocation0 [shape = 'u32[]', space=smem, size = 0x4, offset = 0x4, fixed_abs, tag = 'smem constant byte address 0x4 - core index']
  #allocation1 [shape = 'u32[144,128]{1,0:T(1,128)}', space=vmem, size = 0x12000, scoped, tag = 'internal scratch']
  #allocation2 [shape = 'f32[18,2,18,32]{3,2,1,0:T(8,128)}', space=vmem, size = 0x6c000, scoped, tag = 'scratch operand']
  #allocation3 [shape = 'f32[256,32]{1,0:T(8,128)}', space=vmem, size = 0x20000, scoped, tag = 'scratch operand']
  #allocation4 [shape = 'f32[10,2,10,32]{3,2,1,0:T(8,128)}', space=vmem, size = 0x28000, scoped, tag = 'scratch operand']
  #allocation5 [shape = 'f32[64,64]{1,0:T(8,128)}', space=vmem, size = 0x8000, scoped, tag = 'scratch operand']
  %s0 = inlined_call_operand.vmem [shape: f32[16,2,16], index: 0, kind: input, shape index: {}]
  %s1 = inlined_call_operand.vmem [shape: f32[9,32], index: 1, kind: input, shape index: {}]
  %s2 = inlined_call_operand.vmem [shape: f32[1,32], index: 2, kind: input, shape index: {}]
  %s3 = inlined_call_operand.vmem [shape: bf16[288,64], index: 3, kind: input, shape index: {}]
  %s4 = inlined_call_operand.vmem [shape: f32[1,64], index: 4, kind: input, shape index: {}]
  %s5 = inlined_call_operand.vmem [shape: bf16[4,2,256], index: 5, kind: output, shape index: {}]
  %s6 = sld [smem:[#allocation0]]
  $region30: #{cnn_lstm_forward.2} parent=0
    _
  %s8 = ssub.s32 1, %s6
  %s9 = scalar_select 0, %s8, %s6
  // Predicated region
  $region2: #{cnn_lstm_forward.2} parent=0 // pred_check
    _
  $region3: #{cnn_lstm_forward.2} parent=0 // pred_check_branch
    %11 = sbr.rel (0) target = $region5
  $region4: #{cnn_lstm_forward.2} parent=0 // pred_region
    _
  $region5: #{cnn_lstm_forward.2} parent=0 // pred_fallthru
    _
  // Predicated region
  $region6: #{cnn_lstm_forward.2} parent=0 // pred_check
    _
  $region7: #{cnn_lstm_forward.2} parent=0 // pred_check_branch
    %13 = sbr.rel (0) target = $region9
  $region8: #{cnn_lstm_forward.2} parent=0 // pred_region
    _
  $region9: #{cnn_lstm_forward.2} parent=0 // pred_fallthru
    _
  // Predicated region
  $region10: #{cnn_lstm_forward.2} parent=0 // pred_check
    _
  $region11: #{cnn_lstm_forward.2} parent=0 // pred_check_branch
    %15 = sbr.rel (0) target = $region13
  $region12: #{cnn_lstm_forward.2} parent=0 // pred_region
    _
  $region13: #{cnn_lstm_forward.2} parent=0 // pred_fallthru
    _
  // Predicated region
  $region14: #{cnn_lstm_forward.2} parent=0 // pred_check
    _
  $region15: #{cnn_lstm_forward.2} parent=0 // pred_check_branch
    %17 = sbr.rel (0) target = $region17
  $region16: #{cnn_lstm_forward.2} parent=0 // pred_region
    _
  $region17: #{cnn_lstm_forward.2} parent=0 // pred_fallthru
    _
  // Predicated region
  $region18: #{cnn_lstm_forward.2} parent=0 // pred_check
    _
  $region19: #{cnn_lstm_forward.2} parent=0 // pred_check_branch
    %19 = sbr.rel (0) target = $region21
  $region20: #{cnn_lstm_forward.2} parent=0 // pred_region
    _
  $region21: #{cnn_lstm_forward.2} parent=0 // pred_fallthru
    _
  %vm21 = vcmask 261120
  %22 = vst.msk [vmem:[#allocation2] sm:$0xff] %vm21, 0.0
  %23 = vst.msk [vmem:[#allocation2 + $0x8] sm:$0xff] %vm21, 0.0
  %vm24 = vcmask 254976
  %25 = vst.msk [vmem:[#allocation2 + $0x10] sm:$0x3] %vm24, 0.0
  %26 = vst.msk [vmem:[#allocation2 + $0x18] sm:$0xff] %vm21, 0.0
  %27 = vst.msk [vmem:[#allocation2 + $0x20] sm:$0xff] %vm21, 0.0
  %28 = vst.msk [vmem:[#allocation2 + $0x28] sm:$0x3] %vm24, 0.0
  %s29 = scalar_lea.vmem [#allocation2], 816
  %30 = vst.msk [vmem:[%s29] sm:$0xff] %vm21, 0.0
  %31 = vst.msk [vmem:[%s29 + $0x8] sm:$0xff] %vm21, 0.0
  %32 = vst.msk [vmem:[%s29 + $0x10] sm:$0x3] %vm24, 0.0
  %33 = vst.msk [vmem:[%s29 + $0x18] sm:$0xff] %vm21, 0.0
  %34 = vst.msk [vmem:[%s29 + $0x20] sm:$0xff] %vm21, 0.0
  %35 = vst.msk [vmem:[%s29 + $0x28] sm:$0x3] %vm24, 0.0
  %vm36 = vcmask 253952
  %37 = vst.msk [vmem:[#allocation2] sm:$0x1] %vm36, 0.0
  %38 = vst.msk [vmem:[#allocation2 + $0x18] sm:$0x1] %vm36, 0.0
  %39 = vst.msk [vmem:[#allocation2 + $0x30] sm:$0x1] %vm36, 0.0
  %40 = vst.msk [vmem:[#allocation2 + $0x48] sm:$0x1] %vm36, 0.0
  %41 = vst.msk [vmem:[#allocation2 + $0x60] sm:$0x1] %vm36, 0.0
  %42 = vst.msk [vmem:[#allocation2 + $0x78] sm:$0x1] %vm36, 0.0
  %43 = vst.msk [vmem:[#allocation2 + $0x90] sm:$0x1] %vm36, 0.0
  %44 = vst.msk [vmem:[#allocation2 + $0xa8] sm:$0x1] %vm36, 0.0
  %45 = vst.msk [vmem:[#allocation2 + $0xc0] sm:$0x1] %vm36, 0.0
  %46 = vst.msk [vmem:[#allocation2 + $0xd8] sm:$0x1] %vm36, 0.0
  %47 = vst.msk [vmem:[#allocation2 + $0xf0] sm:$0x1] %vm36, 0.0
  %48 = vst.msk [vmem:[#allocation2 + $0x108] sm:$0x1] %vm36, 0.0
  %49 = vst.msk [vmem:[#allocation2 + $0x120] sm:$0x1] %vm36, 0.0
  %50 = vst.msk [vmem:[#allocation2 + $0x138] sm:$0x1] %vm36, 0.0
  %51 = vst.msk [vmem:[#allocation2 + $0x150] sm:$0x1] %vm36, 0.0
  %52 = vst.msk [vmem:[#allocation2 + $0x168] sm:$0x1] %vm36, 0.0
  %53 = vst.msk [vmem:[#allocation2 + $0x180] sm:$0x1] %vm36, 0.0
  %54 = vst.msk [vmem:[#allocation2 + $0x198] sm:$0x1] %vm36, 0.0
  %55 = vst.msk [vmem:[#allocation2 + $0x1b0] sm:$0x1] %vm36, 0.0
  %56 = vst.msk [vmem:[#allocation2 + $0x1c8] sm:$0x1] %vm36, 0.0
  %57 = vst.msk [vmem:[#allocation2 + $0x1e0] sm:$0x1] %vm36, 0.0
  %58 = vst.msk [vmem:[#allocation2 + $0x1f8] sm:$0x1] %vm36, 0.0
  %59 = vst.msk [vmem:[#allocation2 + $0x210] sm:$0x1] %vm36, 0.0
  %60 = vst.msk [vmem:[#allocation2 + $0x228] sm:$0x1] %vm36, 0.0
  %61 = vst.msk [vmem:[#allocation2 + $0x240] sm:$0x1] %vm36, 0.0
  %62 = vst.msk [vmem:[#allocation2 + $0x258] sm:$0x1] %vm36, 0.0
  %63 = vst.msk [vmem:[#allocation2 + $0x270] sm:$0x1] %vm36, 0.0
  %64 = vst.msk [vmem:[#allocation2 + $0x288] sm:$0x1] %vm36, 0.0
  %65 = vst.msk [vmem:[#allocation2 + $0x2a0] sm:$0x1] %vm36, 0.0
  %66 = vst.msk [vmem:[#allocation2 + $0x2b8] sm:$0x1] %vm36, 0.0
  %67 = vst.msk [vmem:[#allocation2 + $0x2d0] sm:$0x1] %vm36, 0.0
  %68 = vst.msk [vmem:[#allocation2 + $0x2e8] sm:$0x1] %vm36, 0.0
  %69 = vst.msk [vmem:[#allocation2 + $0x300] sm:$0x1] %vm36, 0.0
  %70 = vst.msk [vmem:[#allocation2 + $0x318] sm:$0x1] %vm36, 0.0
  %71 = vst.msk [vmem:[#allocation2 + $0x330] sm:$0x1] %vm36, 0.0
  %72 = vst.msk [vmem:[#allocation2 + $0x348] sm:$0x1] %vm36, 0.0
  %73 = vst.msk [vmem:[#allocation2 + $0x11] sm:$0x1] %vm36, 0.0
  %74 = vst.msk [vmem:[#allocation2 + $0x29] sm:$0x1] %vm36, 0.0
  %75 = vst.msk [vmem:[#allocation2 + $0x41] sm:$0x1] %vm36, 0.0
  %76 = vst.msk [vmem:[#allocation2 + $0x59] sm:$0x1] %vm36, 0.0
  %77 = vst.msk [vmem:[#allocation2 + $0x71] sm:$0x1] %vm36, 0.0
  %78 = vst.msk [vmem:[#allocation2 + $0x89] sm:$0x1] %vm36, 0.0
  %79 = vst.msk [vmem:[#allocation2 + $0xa1] sm:$0x1] %vm36, 0.0
  %80 = vst.msk [vmem:[#allocation2 + $0xb9] sm:$0x1] %vm36, 0.0
  %81 = vst.msk [vmem:[#allocation2 + $0xd1] sm:$0x1] %vm36, 0.0
  %82 = vst.msk [vmem:[#allocation2 + $0xe9] sm:$0x1] %vm36, 0.0
  %83 = vst.msk [vmem:[#allocation2 + $0x101] sm:$0x1] %vm36, 0.0
  %84 = vst.msk [vmem:[#allocation2 + $0x119] sm:$0x1] %vm36, 0.0
  %85 = vst.msk [vmem:[#allocation2 + $0x131] sm:$0x1] %vm36, 0.0
  %86 = vst.msk [vmem:[#allocation2 + $0x149] sm:$0x1] %vm36, 0.0
  %87 = vst.msk [vmem:[#allocation2 + $0x161] sm:$0x1] %vm36, 0.0
  %88 = vst.msk [vmem:[#allocation2 + $0x179] sm:$0x1] %vm36, 0.0
  %89 = vst.msk [vmem:[#allocation2 + $0x191] sm:$0x1] %vm36, 0.0
  %90 = vst.msk [vmem:[#allocation2 + $0x1a9] sm:$0x1] %vm36, 0.0
  %91 = vst.msk [vmem:[#allocation2 + $0x1c1] sm:$0x1] %vm36, 0.0
  %92 = vst.msk [vmem:[#allocation2 + $0x1d9] sm:$0x1] %vm36, 0.0
  %93 = vst.msk [vmem:[#allocation2 + $0x1f1] sm:$0x1] %vm36, 0.0
  %94 = vst.msk [vmem:[#allocation2 + $0x209] sm:$0x1] %vm36, 0.0
  %95 = vst.msk [vmem:[#allocation2 + $0x221] sm:$0x1] %vm36, 0.0
  %96 = vst.msk [vmem:[#allocation2 + $0x239] sm:$0x1] %vm36, 0.0
  %97 = vst.msk [vmem:[#allocation2 + $0x251] sm:$0x1] %vm36, 0.0
  %98 = vst.msk [vmem:[#allocation2 + $0x269] sm:$0x1] %vm36, 0.0
  %99 = vst.msk [vmem:[#allocation2 + $0x281] sm:$0x1] %vm36, 0.0
  %100 = vst.msk [vmem:[#allocation2 + $0x299] sm:$0x1] %vm36, 0.0
  %101 = vst.msk [vmem:[#allocation2 + $0x2b1] sm:$0x1] %vm36, 0.0
  %102 = vst.msk [vmem:[#allocation2 + $0x2c9] sm:$0x1] %vm36, 0.0
  %103 = vst.msk [vmem:[#allocation2 + $0x2e1] sm:$0x1] %vm36, 0.0
  %104 = vst.msk [vmem:[#allocation2 + $0x2f9] sm:$0x1] %vm36, 0.0
  %105 = vst.msk [vmem:[#allocation2 + $0x311] sm:$0x1] %vm36, 0.0
  %106 = vst.msk [vmem:[#allocation2 + $0x329] sm:$0x1] %vm36, 0.0
  %107 = vst.msk [vmem:[#allocation2 + $0x341] sm:$0x1] %vm36, 0.0
  %108 = vst.msk [vmem:[#allocation2 + $0x359] sm:$0x1] %vm36, 0.0
  %v109 = vld [vmem:[%s0] sm:$0x3]
  %v110 = vld [vmem:[%s0 + $0x2] sm:$0x3]
  %v111 = vld [vmem:[%s0 + $0x4] sm:$0x3]
  %v112 = vld [vmem:[%s0 + $0x6] sm:$0x3]
  %v113 = vld [vmem:[%s0 + $0x8] sm:$0x3]
  %v114 = vld [vmem:[%s0 + $0xa] sm:$0x3]
  %v115 = vld [vmem:[%s0 + $0xc] sm:$0x3]
  %v116 = vld [vmem:[%s0 + $0xe] sm:$0x3]
  %v117 = vld [vmem:[%s0 + $0x10] sm:$0x3]
  %v118 = vld [vmem:[%s0 + $0x12] sm:$0x3]
  %v119 = vld [vmem:[%s0 + $0x14] sm:$0x3]
  %v120 = vld [vmem:[%s0 + $0x16] sm:$0x3]
  %v121 = vld [vmem:[%s0 + $0x18] sm:$0x3]
  %v122 = vld [vmem:[%s0 + $0x1a] sm:$0x3]
  %v123 = vld [vmem:[%s0 + $0x1c] sm:$0x3]
  %v124 = vld [vmem:[%s0 + $0x1e] sm:$0x3]
  %v125 = vlaneseq
  %v126 = vshrl.u32 %v125, 7
  %v127 = vsub.s32 0, %v126
  %v128 = vrot.slane %v109, %v127
  %130 = vbcast.lane.b32.xlu0 %v128, 256
  %v131 = vpop.permute.xlu0 %130
  %s133 = sor.u32 256, 8
  %134 = vbcast.lane.b32.xlu0 %v128, %s133
  %v135 = vpop.permute.xlu0 %134
  %v136 = vlaneseq
  %v137 = vshrl.u32 %v136, 7
  %v138 = vsub.s32 1, %v137
  %v139 = vrot.slane %v109, %v138
  %141 = vbcast.lane.b32.xlu0 %v139, 256
  %v142 = vpop.permute.xlu0 %141
  %s144 = sor.u32 256, 8
  %145 = vbcast.lane.b32.xlu0 %v139, %s144
  %v146 = vpop.permute.xlu0 %145
  %v147 = vlaneseq
  %v148 = vshrl.u32 %v147, 7
  %v149 = vsub.s32 0, %v148
  %v150 = vrot.slane %v110, %v149
  %152 = vbcast.lane.b32.xlu0 %v150, 256
  %v153 = vpop.permute.xlu0 %152
  %s155 = sor.u32 256, 8
  %156 = vbcast.lane.b32.xlu0 %v150, %s155
  %v157 = vpop.permute.xlu0 %156
  %v158 = vlaneseq
  %v159 = vshrl.u32 %v158, 7
  %v160 = vsub.s32 1, %v159
  %v161 = vrot.slane %v110, %v160
  %163 = vbcast.lane.b32.xlu0 %v161, 256
  %v164 = vpop.permute.xlu0 %163
  %s166 = sor.u32 256, 8
  %167 = vbcast.lane.b32.xlu0 %v161, %s166
  %v168 = vpop.permute.xlu0 %167
  %v169 = vlaneseq
  %v170 = vshrl.u32 %v169, 7
  %v171 = vsub.s32 0, %v170
  %v172 = vrot.slane %v111, %v171
  %174 = vbcast.lane.b32.xlu0 %v172, 256
  %v175 = vpop.permute.xlu0 %174
  %s177 = sor.u32 256, 8
  %178 = vbcast.lane.b32.xlu0 %v172, %s177
  %v179 = vpop.permute.xlu0 %178
  %v180 = vlaneseq
  %v181 = vshrl.u32 %v180, 7
  %v182 = vsub.s32 1, %v181
  %v183 = vrot.slane %v111, %v182
  %185 = vbcast.lane.b32.xlu0 %v183, 256
  %v186 = vpop.permute.xlu0 %185
  %s188 = sor.u32 256, 8
  %189 = vbcast.lane.b32.xlu0 %v183, %s188
  %v190 = vpop.permute.xlu0 %189
  %v191 = vlaneseq
  %v192 = vshrl.u32 %v191, 7
  %v193 = vsub.s32 0, %v192
  %v194 = vrot.slane %v112, %v193
  %196 = vbcast.lane.b32.xlu0 %v194, 256
  %v197 = vpop.permute.xlu0 %196
  %s199 = sor.u32 256, 8
  %200 = vbcast.lane.b32.xlu0 %v194, %s199
  %v201 = vpop.permute.xlu0 %200
  %v202 = vlaneseq
  %v203 = vshrl.u32 %v202, 7
  %v204 = vsub.s32 1, %v203
  %v205 = vrot.slane %v112, %v204
  %207 = vbcast.lane.b32.xlu0 %v205, 256
  %v208 = vpop.permute.xlu0 %207
  %s210 = sor.u32 256, 8
  %211 = vbcast.lane.b32.xlu0 %v205, %s210
  %v212 = vpop.permute.xlu0 %211
  %v213 = vlaneseq
  %v214 = vshrl.u32 %v213, 7
  %v215 = vsub.s32 0, %v214
  %v216 = vrot.slane %v113, %v215
  %218 = vbcast.lane.b32.xlu0 %v216, 256
  %v219 = vpop.permute.xlu0 %218
  %s221 = sor.u32 256, 8
  %222 = vbcast.lane.b32.xlu0 %v216, %s221
  %v223 = vpop.permute.xlu0 %222
  %v224 = vlaneseq
  %v225 = vshrl.u32 %v224, 7
  %v226 = vsub.s32 1, %v225
  %v227 = vrot.slane %v113, %v226
  %229 = vbcast.lane.b32.xlu0 %v227, 256
  %v230 = vpop.permute.xlu0 %229
  %s232 = sor.u32 256, 8
  %233 = vbcast.lane.b32.xlu0 %v227, %s232
  %v234 = vpop.permute.xlu0 %233
  %v235 = vlaneseq
  %v236 = vshrl.u32 %v235, 7
  %v237 = vsub.s32 0, %v236
  %v238 = vrot.slane %v114, %v237
  %240 = vbcast.lane.b32.xlu0 %v238, 256
  %v241 = vpop.permute.xlu0 %240
  %s243 = sor.u32 256, 8
  %244 = vbcast.lane.b32.xlu0 %v238, %s243
  %v245 = vpop.permute.xlu0 %244
  %v246 = vlaneseq
  %v247 = vshrl.u32 %v246, 7
  %v248 = vsub.s32 1, %v247
  %v249 = vrot.slane %v114, %v248
  %251 = vbcast.lane.b32.xlu0 %v249, 256
  %v252 = vpop.permute.xlu0 %251
  %s254 = sor.u32 256, 8
  %255 = vbcast.lane.b32.xlu0 %v249, %s254
  %v256 = vpop.permute.xlu0 %255
  %v257 = vlaneseq
  %v258 = vshrl.u32 %v257, 7
  %v259 = vsub.s32 0, %v258
  %v260 = vrot.slane %v115, %v259
  %262 = vbcast.lane.b32.xlu0 %v260, 256
  %v263 = vpop.permute.xlu0 %262
  %s265 = sor.u32 256, 8
  %266 = vbcast.lane.b32.xlu0 %v260, %s265
  %v267 = vpop.permute.xlu0 %266
  %v268 = vlaneseq
  %v269 = vshrl.u32 %v268, 7
  %v270 = vsub.s32 1, %v269
  %v271 = vrot.slane %v115, %v270
  %273 = vbcast.lane.b32.xlu0 %v271, 256
  %v274 = vpop.permute.xlu0 %273
  %s276 = sor.u32 256, 8
  %277 = vbcast.lane.b32.xlu0 %v271, %s276
  %v278 = vpop.permute.xlu0 %277
  %v279 = vlaneseq
  %v280 = vshrl.u32 %v279, 7
  %v281 = vsub.s32 0, %v280
  %v282 = vrot.slane %v116, %v281
  %284 = vbcast.lane.b32.xlu0 %v282, 256
  %v285 = vpop.permute.xlu0 %284
  %s287 = sor.u32 256, 8
  %288 = vbcast.lane.b32.xlu0 %v282, %s287
  %v289 = vpop.permute.xlu0 %288
  %v290 = vlaneseq
  %v291 = vshrl.u32 %v290, 7
  %v292 = vsub.s32 1, %v291
  %v293 = vrot.slane %v116, %v292
  %295 = vbcast.lane.b32.xlu0 %v293, 256
  %v296 = vpop.permute.xlu0 %295
  %s298 = sor.u32 256, 8
  %299 = vbcast.lane.b32.xlu0 %v293, %s298
  %v300 = vpop.permute.xlu0 %299
  %v301 = vlaneseq
  %v302 = vshrl.u32 %v301, 7
  %v303 = vsub.s32 0, %v302
  %v304 = vrot.slane %v117, %v303
  %306 = vbcast.lane.b32.xlu0 %v304, 256
  %v307 = vpop.permute.xlu0 %306
  %s309 = sor.u32 256, 8
  %310 = vbcast.lane.b32.xlu0 %v304, %s309
  %v311 = vpop.permute.xlu0 %310
  %v312 = vlaneseq
  %v313 = vshrl.u32 %v312, 7
  %v314 = vsub.s32 1, %v313
  %v315 = vrot.slane %v117, %v314
  %317 = vbcast.lane.b32.xlu0 %v315, 256
  %v318 = vpop.permute.xlu0 %317
  %s320 = sor.u32 256, 8
  %321 = vbcast.lane.b32.xlu0 %v315, %s320
  %v322 = vpop.permute.xlu0 %321
  %v323 = vlaneseq
  %v324 = vshrl.u32 %v323, 7
  %v325 = vsub.s32 0, %v324
  %v326 = vrot.slane %v118, %v325
  %328 = vbcast.lane.b32.xlu0 %v326, 256
  %v329 = vpop.permute.xlu0 %328
  %s331 = sor.u32 256, 8
  %332 = vbcast.lane.b32.xlu0 %v326, %s331
  %v333 = vpop.permute.xlu0 %332
  %v334 = vlaneseq
  %v335 = vshrl.u32 %v334, 7
  %v336 = vsub.s32 1, %v335
  %v337 = vrot.slane %v118, %v336
  %339 = vbcast.lane.b32.xlu0 %v337, 256
  %v340 = vpop.permute.xlu0 %339
  %s342 = sor.u32 256, 8
  %343 = vbcast.lane.b32.xlu0 %v337, %s342
  %v344 = vpop.permute.xlu0 %343
  %v345 = vlaneseq
  %v346 = vshrl.u32 %v345, 7
  %v347 = vsub.s32 0, %v346
  %v348 = vrot.slane %v119, %v347
  %350 = vbcast.lane.b32.xlu0 %v348, 256
  %v351 = vpop.permute.xlu0 %350
  %s353 = sor.u32 256, 8
  %354 = vbcast.lane.b32.xlu0 %v348, %s353
  %v355 = vpop.permute.xlu0 %354
  %v356 = vlaneseq
  %v357 = vshrl.u32 %v356, 7
  %v358 = vsub.s32 1, %v357
  %v359 = vrot.slane %v119, %v358
  %361 = vbcast.lane.b32.xlu0 %v359, 256
  %v362 = vpop.permute.xlu0 %361
  %s364 = sor.u32 256, 8
  %365 = vbcast.lane.b32.xlu0 %v359, %s364
  %v366 = vpop.permute.xlu0 %365
  %v367 = vlaneseq
  %v368 = vshrl.u32 %v367, 7
  %v369 = vsub.s32 0, %v368
  %v370 = vrot.slane %v120, %v369
  %372 = vbcast.lane.b32.xlu0 %v370, 256
  %v373 = vpop.permute.xlu0 %372
  %s375 = sor.u32 256, 8
  %376 = vbcast.lane.b32.xlu0 %v370, %s375
  %v377 = vpop.permute.xlu0 %376
  %v378 = vlaneseq
  %v379 = vshrl.u32 %v378, 7
  %v380 = vsub.s32 1, %v379
  %v381 = vrot.slane %v120, %v380
  %383 = vbcast.lane.b32.xlu0 %v381, 256
  %v384 = vpop.permute.xlu0 %383
  %s386 = sor.u32 256, 8
  %387 = vbcast.lane.b32.xlu0 %v381, %s386
  %v388 = vpop.permute.xlu0 %387
  %v389 = vlaneseq
  %v390 = vshrl.u32 %v389, 7
  %v391 = vsub.s32 0, %v390
  %v392 = vrot.slane %v121, %v391
  %394 = vbcast.lane.b32.xlu0 %v392, 256
  %v395 = vpop.permute.xlu0 %394
  %s397 = sor.u32 256, 8
  %398 = vbcast.lane.b32.xlu0 %v392, %s397
  %v399 = vpop.permute.xlu0 %398
  %v400 = vlaneseq
  %v401 = vshrl.u32 %v400, 7
  %v402 = vsub.s32 1, %v401
  %v403 = vrot.slane %v121, %v402
  %405 = vbcast.lane.b32.xlu0 %v403, 256
  %v406 = vpop.permute.xlu0 %405
  %s408 = sor.u32 256, 8
  %409 = vbcast.lane.b32.xlu0 %v403, %s408
  %v410 = vpop.permute.xlu0 %409
  %v411 = vlaneseq
  %v412 = vshrl.u32 %v411, 7
  %v413 = vsub.s32 0, %v412
  %v414 = vrot.slane %v122, %v413
  %416 = vbcast.lane.b32.xlu0 %v414, 256
  %v417 = vpop.permute.xlu0 %416
  %s419 = sor.u32 256, 8
  %420 = vbcast.lane.b32.xlu0 %v414, %s419
  %v421 = vpop.permute.xlu0 %420
  %v422 = vlaneseq
  %v423 = vshrl.u32 %v422, 7
  %v424 = vsub.s32 1, %v423
  %v425 = vrot.slane %v122, %v424
  %427 = vbcast.lane.b32.xlu0 %v425, 256
  %v428 = vpop.permute.xlu0 %427
  %s430 = sor.u32 256, 8
  %431 = vbcast.lane.b32.xlu0 %v425, %s430
  %v432 = vpop.permute.xlu0 %431
  %v433 = vlaneseq
  %v434 = vshrl.u32 %v433, 7
  %v435 = vsub.s32 0, %v434
  %v436 = vrot.slane %v123, %v435
  %438 = vbcast.lane.b32.xlu0 %v436, 256
  %v439 = vpop.permute.xlu0 %438
  %s441 = sor.u32 256, 8
  %442 = vbcast.lane.b32.xlu0 %v436, %s441
  %v443 = vpop.permute.xlu0 %442
  %v444 = vlaneseq
  %v445 = vshrl.u32 %v444, 7
  %v446 = vsub.s32 1, %v445
  %v447 = vrot.slane %v123, %v446
  %449 = vbcast.lane.b32.xlu0 %v447, 256
  %v450 = vpop.permute.xlu0 %449
  %s452 = sor.u32 256, 8
  %453 = vbcast.lane.b32.xlu0 %v447, %s452
  %v454 = vpop.permute.xlu0 %453
  %v455 = vlaneseq
  %v456 = vshrl.u32 %v455, 7
  %v457 = vsub.s32 0, %v456
  %v458 = vrot.slane %v124, %v457
  %460 = vbcast.lane.b32.xlu0 %v458, 256
  %v461 = vpop.permute.xlu0 %460
  %s463 = sor.u32 256, 8
  %464 = vbcast.lane.b32.xlu0 %v458, %s463
  %v465 = vpop.permute.xlu0 %464
  %v466 = vlaneseq
  %v467 = vshrl.u32 %v466, 7
  %v468 = vsub.s32 1, %v467
  %v469 = vrot.slane %v124, %v468
  %471 = vbcast.lane.b32.xlu0 %v469, 256
  %v472 = vpop.permute.xlu0 %471
  %s474 = sor.u32 256, 8
  %475 = vbcast.lane.b32.xlu0 %v469, %s474
  %v476 = vpop.permute.xlu0 %475
  %s477 = scalar_lea.vmem [#allocation2], 48
  %478 = vst.msk [vmem:[%s477 + $0x1] sm:$0xff] %vm21, %v131
  %479 = vst.msk [vmem:[%s477 + $0x9] sm:$0xff] %vm21, %v135
  %480 = vst.msk [vmem:[%s477 + $0x19] sm:$0xff] %vm21, %v142
  %481 = vst.msk [vmem:[%s477 + $0x21] sm:$0xff] %vm21, %v146
  %482 = vst.msk [vmem:[%s477 + $0x31] sm:$0xff] %vm21, %v153
  %483 = vst.msk [vmem:[%s477 + $0x39] sm:$0xff] %vm21, %v157
  %484 = vst.msk [vmem:[%s477 + $0x49] sm:$0xff] %vm21, %v164
  %485 = vst.msk [vmem:[%s477 + $0x51] sm:$0xff] %vm21, %v168
  %486 = vst.msk [vmem:[%s477 + $0x61] sm:$0xff] %vm21, %v175
  %487 = vst.msk [vmem:[%s477 + $0x69] sm:$0xff] %vm21, %v179
  %488 = vst.msk [vmem:[%s477 + $0x79] sm:$0xff] %vm21, %v186
  %489 = vst.msk [vmem:[%s477 + $0x81] sm:$0xff] %vm21, %v190
  %490 = vst.msk [vmem:[%s477 + $0x91] sm:$0xff] %vm21, %v197
  %491 = vst.msk [vmem:[%s477 + $0x99] sm:$0xff] %vm21, %v201
  %492 = vst.msk [vmem:[%s477 + $0xa9] sm:$0xff] %vm21, %v208
  %493 = vst.msk [vmem:[%s477 + $0xb1] sm:$0xff] %vm21, %v212
  %494 = vst.msk [vmem:[%s477 + $0xc1] sm:$0xff] %vm21, %v219
  %495 = vst.msk [vmem:[%s477 + $0xc9] sm:$0xff] %vm21, %v223
  %496 = vst.msk [vmem:[%s477 + $0xd9] sm:$0xff] %vm21, %v230
  %497 = vst.msk [vmem:[%s477 + $0xe1] sm:$0xff] %vm21, %v234
  %498 = vst.msk [vmem:[%s477 + $0xf1] sm:$0xff] %vm21, %v241
  %499 = vst.msk [vmem:[%s477 + $0xf9] sm:$0xff] %vm21, %v245
  %500 = vst.msk [vmem:[%s477 + $0x109] sm:$0xff] %vm21, %v252
  %501 = vst.msk [vmem:[%s477 + $0x111] sm:$0xff] %vm21, %v256
  %502 = vst.msk [vmem:[%s477 + $0x121] sm:$0xff] %vm21, %v263
  %503 = vst.msk [vmem:[%s477 + $0x129] sm:$0xff] %vm21, %v267
  %504 = vst.msk [vmem:[%s477 + $0x139] sm:$0xff] %vm21, %v274
  %505 = vst.msk [vmem:[%s477 + $0x141] sm:$0xff] %vm21, %v278
  %506 = vst.msk [vmem:[%s477 + $0x151] sm:$0xff] %vm21, %v285
  %507 = vst.msk [vmem:[%s477 + $0x159] sm:$0xff] %vm21, %v289
  %508 = vst.msk [vmem:[%s477 + $0x169] sm:$0xff] %vm21, %v296
  %509 = vst.msk [vmem:[%s477 + $0x171] sm:$0xff] %vm21, %v300
  %510 = vst.msk [vmem:[%s477 + $0x181] sm:$0xff] %vm21, %v307
  %511 = vst.msk [vmem:[%s477 + $0x189] sm:$0xff] %vm21, %v311
  %512 = vst.msk [vmem:[%s477 + $0x199] sm:$0xff] %vm21, %v318
  %513 = vst.msk [vmem:[%s477 + $0x1a1] sm:$0xff] %vm21, %v322
  %514 = vst.msk [vmem:[%s477 + $0x1b1] sm:$0xff] %vm21, %v329
  %515 = vst.msk [vmem:[%s477 + $0x1b9] sm:$0xff] %vm21, %v333
  %516 = vst.msk [vmem:[%s477 + $0x1c9] sm:$0xff] %vm21, %v340
  %517 = vst.msk [vmem:[%s477 + $0x1d1] sm:$0xff] %vm21, %v344
  %518 = vst.msk [vmem:[%s477 + $0x1e1] sm:$0xff] %vm21, %v351
  %519 = vst.msk [vmem:[%s477 + $0x1e9] sm:$0xff] %vm21, %v355
  %520 = vst.msk [vmem:[%s477 + $0x1f9] sm:$0xff] %vm21, %v362
  %521 = vst.msk [vmem:[%s477 + $0x201] sm:$0xff] %vm21, %v366
  %522 = vst.msk [vmem:[%s477 + $0x211] sm:$0xff] %vm21, %v373
  %523 = vst.msk [vmem:[%s477 + $0x219] sm:$0xff] %vm21, %v377
  %524 = vst.msk [vmem:[%s477 + $0x229] sm:$0xff] %vm21, %v384
  %525 = vst.msk [vmem:[%s477 + $0x231] sm:$0xff] %vm21, %v388
  %526 = vst.msk [vmem:[%s477 + $0x241] sm:$0xff] %vm21, %v395
  %527 = vst.msk [vmem:[%s477 + $0x249] sm:$0xff] %vm21, %v399
  %528 = vst.msk [vmem:[%s477 + $0x259] sm:$0xff] %vm21, %v406
  %529 = vst.msk [vmem:[%s477 + $0x261] sm:$0xff] %vm21, %v410
  %530 = vst.msk [vmem:[%s477 + $0x271] sm:$0xff] %vm21, %v417
  %531 = vst.msk [vmem:[%s477 + $0x279] sm:$0xff] %vm21, %v421
  %532 = vst.msk [vmem:[%s477 + $0x289] sm:$0xff] %vm21, %v428
  %533 = vst.msk [vmem:[%s477 + $0x291] sm:$0xff] %vm21, %v432
  %534 = vst.msk [vmem:[%s477 + $0x2a1] sm:$0xff] %vm21, %v439
  %535 = vst.msk [vmem:[%s477 + $0x2a9] sm:$0xff] %vm21, %v443
  %536 = vst.msk [vmem:[%s477 + $0x2b9] sm:$0xff] %vm21, %v450
  %537 = vst.msk [vmem:[%s477 + $0x2c1] sm:$0xff] %vm21, %v454
  %538 = vst.msk [vmem:[%s477 + $0x2d1] sm:$0xff] %vm21, %v461
  %539 = vst.msk [vmem:[%s477 + $0x2d9] sm:$0xff] %vm21, %v465
  %540 = vst.msk [vmem:[%s477 + $0x2e9] sm:$0xff] %vm21, %v472
  %541 = vst.msk [vmem:[%s477 + $0x2f1] sm:$0xff] %vm21, %v476
  %v542 = vld [vmem:[%s1] sm:$0xff]
  %v543 = vld [vmem:[%s1 + $0x8] sm:$0x1]
  %v544 = vld [vmem:[#allocation2] sm:$0xff]
  %v545 = vld [vmem:[#allocation2 + $0x8] sm:$0xff]
  %v546 = vld [vmem:[#allocation2 + $0x18] sm:$0xff]
  %v547 = vld [vmem:[#allocation2 + $0x20] sm:$0xff]
  %v548 = vld [vmem:[#allocation2 + $0x30] sm:$0xff]
  %v549 = vld [vmem:[#allocation2 + $0x38] sm:$0xff]
  %v550 = vld [vmem:[#allocation2 + $0x48] sm:$0xff]
  %v551 = vld [vmem:[#allocation2 + $0x50] sm:$0xff]
  %v552 = vld [vmem:[#allocation2 + $0x60] sm:$0xff]
  %v553 = vld [vmem:[#allocation2 + $0x68] sm:$0xff]
  %v554 = vld [vmem:[#allocation2 + $0x78] sm:$0xff]
  %v555 = vld [vmem:[#allocation2 + $0x80] sm:$0xff]
  %v556 = vld [vmem:[#allocation2 + $0x90] sm:$0xff]
  %v557 = vld [vmem:[#allocation2 + $0x98] sm:$0xff]
  %v558 = vld [vmem:[#allocation2 + $0xa8] sm:$0xff]
  %v559 = vld [vmem:[#allocation2 + $0xb0] sm:$0xff]
  %v560 = vld [vmem:[#allocation2 + $0xc0] sm:$0xff]
  %v561 = vld [vmem:[#allocation2 + $0xc8] sm:$0xff]
  %v562 = vld [vmem:[#allocation2 + $0xd8] sm:$0xff]
  %v563 = vld [vmem:[#allocation2 + $0xe0] sm:$0xff]
  %v564 = vld [vmem:[#allocation2 + $0xf0] sm:$0xff]
  %v565 = vld [vmem:[#allocation2 + $0xf8] sm:$0xff]
  %v566 = vld [vmem:[#allocation2 + $0x108] sm:$0xff]
  %v567 = vld [vmem:[#allocation2 + $0x110] sm:$0xff]
  %v568 = vld [vmem:[#allocation2 + $0x120] sm:$0xff]
  %v569 = vld [vmem:[#allocation2 + $0x128] sm:$0xff]
  %v570 = vld [vmem:[#allocation2 + $0x138] sm:$0xff]
  %v571 = vld [vmem:[#allocation2 + $0x140] sm:$0xff]
  %v572 = vld [vmem:[#allocation2 + $0x150] sm:$0xff]
  %v573 = vld [vmem:[#allocation2 + $0x158] sm:$0xff]
  %v574 = vld [vmem:[#allocation2 + $0x168] sm:$0xff]
  %v575 = vld [vmem:[#allocation2 + $0x170] sm:$0xff]
  %v576 = vld [vmem:[#allocation2 + $0x180] sm:$0xff]
  %v577 = vld [vmem:[#allocation2 + $0x188] sm:$0xff]
  %v578 = vld [vmem:[#allocation2 + $0x198] sm:$0xff]
  %v579 = vld [vmem:[#allocation2 + $0x1a0] sm:$0xff]
  %v580 = vld [vmem:[#allocation2 + $0x1b0] sm:$0xff]
  %v581 = vld [vmem:[#allocation2 + $0x1b8] sm:$0xff]
  %v582 = vld [vmem:[#allocation2 + $0x1c8] sm:$0xff]
  %v583 = vld [vmem:[#allocation2 + $0x1d0] sm:$0xff]
  %v584 = vld [vmem:[#allocation2 + $0x1e0] sm:$0xff]
  %v585 = vld [vmem:[#allocation2 + $0x1e8] sm:$0xff]
  %v586 = vld [vmem:[#allocation2 + $0x1f8] sm:$0xff]
  %v587 = vld [vmem:[#allocation2 + $0x200] sm:$0xff]
  %v588 = vld [vmem:[#allocation2 + $0x210] sm:$0xff]
  %v589 = vld [vmem:[#allocation2 + $0x218] sm:$0xff]
  %v590 = vld [vmem:[#allocation2 + $0x228] sm:$0xff]
  %v591 = vld [vmem:[#allocation2 + $0x230] sm:$0xff]
  %v592 = vld [vmem:[#allocation2 + $0x240] sm:$0xff]
  %v593 = vld [vmem:[#allocation2 + $0x248] sm:$0xff]
  %v594 = vld [vmem:[#allocation2 + $0x258] sm:$0xff]
  %v595 = vld [vmem:[#allocation2 + $0x260] sm:$0xff]
  %v596 = vld [vmem:[#allocation2 + $0x270] sm:$0xff]
  %v597 = vld [vmem:[#allocation2 + $0x278] sm:$0xff]
  %v598 = vld [vmem:[#allocation2 + $0x288] sm:$0xff]
  %v599 = vld [vmem:[#allocation2 + $0x290] sm:$0xff]
  %v600 = vld [vmem:[#allocation2 + $0x2a0] sm:$0xff]
  %v601 = vld [vmem:[#allocation2 + $0x2a8] sm:$0xff]
  %v602 = vld [vmem:[#allocation2 + $0x2b8] sm:$0xff]
  %v603 = vld [vmem:[#allocation2 + $0x2c0] sm:$0xff]
  %v604 = vld [vmem:[#allocation2 + $0x2d0] sm:$0xff]
  %v605 = vld [vmem:[#allocation2 + $0x2d8] sm:$0xff]
  %v606 = vld [vmem:[#allocation2 + $0x2e8] sm:$0xff]
  %v607 = vld [vmem:[#allocation2 + $0x2f0] sm:$0xff]
  %v608 = vlaneseq
  %v609 = vshrl.u32 %v608, 7
  %v610 = vsub.s32 0, %v609
  %v611 = vrot.slane %v542, %v610
  %v612 = vmul.f32 %v544, %v611
  %v613 = vmul.f32 %v545, %v611
  %v614 = vmul.f32 %v546, %v611
  %v615 = vmul.f32 %v547, %v611
  %v616 = vmul.f32 %v548, %v611
  %v617 = vmul.f32 %v549, %v611
  %v618 = vmul.f32 %v550, %v611
  %v619 = vmul.f32 %v551, %v611
  %v620 = vmul.f32 %v552, %v611
  %v621 = vmul.f32 %v553, %v611
  %v622 = vmul.f32 %v554, %v611
  %v623 = vmul.f32 %v555, %v611
  %v624 = vmul.f32 %v556, %v611
  %v625 = vmul.f32 %v557, %v611
  %v626 = vmul.f32 %v558, %v611
  %v627 = vmul.f32 %v559, %v611
  %v628 = vmul.f32 %v560, %v611
  %v629 = vmul.f32 %v561, %v611
  %v630 = vmul.f32 %v562, %v611
  %v631 = vmul.f32 %v563, %v611
  %v632 = vmul.f32 %v564, %v611
  %v633 = vmul.f32 %v565, %v611
  %v634 = vmul.f32 %v566, %v611
  %v635 = vmul.f32 %v567, %v611
  %v636 = vmul.f32 %v568, %v611
  %v637 = vmul.f32 %v569, %v611
  %v638 = vmul.f32 %v570, %v611
  %v639 = vmul.f32 %v571, %v611
  %v640 = vmul.f32 %v572, %v611
  %v641 = vmul.f32 %v573, %v611
  %v642 = vmul.f32 %v574, %v611
  %v643 = vmul.f32 %v575, %v611
  %v644 = vmul.f32 %v576, %v611
  %v645 = vmul.f32 %v577, %v611
  %v646 = vmul.f32 %v578, %v611
  %v647 = vmul.f32 %v579, %v611
  %v648 = vmul.f32 %v580, %v611
  %v649 = vmul.f32 %v581, %v611
  %v650 = vmul.f32 %v582, %v611
  %v651 = vmul.f32 %v583, %v611
  %v652 = vmul.f32 %v584, %v611
  %v653 = vmul.f32 %v585, %v611
  %v654 = vmul.f32 %v586, %v611
  %v655 = vmul.f32 %v587, %v611
  %v656 = vmul.f32 %v588, %v611
  %v657 = vmul.f32 %v589, %v611
  %v658 = vmul.f32 %v590, %v611
  %v659 = vmul.f32 %v591, %v611
  %v660 = vmul.f32 %v592, %v611
  %v661 = vmul.f32 %v593, %v611
  %v662 = vmul.f32 %v594, %v611
  %v663 = vmul.f32 %v595, %v611
  %v664 = vmul.f32 %v596, %v611
  %v665 = vmul.f32 %v597, %v611
  %v666 = vmul.f32 %v598, %v611
  %v667 = vmul.f32 %v599, %v611
  %v668 = vmul.f32 %v600, %v611
  %v669 = vmul.f32 %v601, %v611
  %v670 = vmul.f32 %v602, %v611
  %v671 = vmul.f32 %v603, %v611
  %v672 = vmul.f32 %v604, %v611
  %v673 = vmul.f32 %v605, %v611
  %v674 = vmul.f32 %v606, %v611
  %v675 = vmul.f32 %v607, %v611
  %v676 = vadd.f32 %v612, 0.0
  %v677 = vadd.f32 %v613, 0.0
  %v678 = vadd.f32 %v614, 0.0
  %v679 = vadd.f32 %v615, 0.0
  %v680 = vadd.f32 %v616, 0.0
  %v681 = vadd.f32 %v617, 0.0
  %v682 = vadd.f32 %v618, 0.0
  %v683 = vadd.f32 %v619, 0.0
  %v684 = vadd.f32 %v620, 0.0
  %v685 = vadd.f32 %v621, 0.0
  %v686 = vadd.f32 %v622, 0.0
  %v687 = vadd.f32 %v623, 0.0
  %v688 = vadd.f32 %v624, 0.0
  %v689 = vadd.f32 %v625, 0.0
  %v690 = vadd.f32 %v626, 0.0
  %v691 = vadd.f32 %v627, 0.0
  %v692 = vadd.f32 %v628, 0.0
  %v693 = vadd.f32 %v629, 0.0
  %v694 = vadd.f32 %v630, 0.0
  %v695 = vadd.f32 %v631, 0.0
  %v696 = vadd.f32 %v632, 0.0
  %v697 = vadd.f32 %v633, 0.0
  %v698 = vadd.f32 %v634, 0.0
  %v699 = vadd.f32 %v635, 0.0
  %v700 = vadd.f32 %v636, 0.0
  %v701 = vadd.f32 %v637, 0.0
  %v702 = vadd.f32 %v638, 0.0
  %v703 = vadd.f32 %v639, 0.0
  %v704 = vadd.f32 %v640, 0.0
  %v705 = vadd.f32 %v641, 0.0
  %v706 = vadd.f32 %v642, 0.0
  %v707 = vadd.f32 %v643, 0.0
  %v708 = vadd.f32 %v644, 0.0
  %v709 = vadd.f32 %v645, 0.0
  %v710 = vadd.f32 %v646, 0.0
  %v711 = vadd.f32 %v647, 0.0
  %v712 = vadd.f32 %v648, 0.0
  %v713 = vadd.f32 %v649, 0.0
  %v714 = vadd.f32 %v650, 0.0
  %v715 = vadd.f32 %v651, 0.0
  %v716 = vadd.f32 %v652, 0.0
  %v717 = vadd.f32 %v653, 0.0
  %v718 = vadd.f32 %v654, 0.0
  %v719 = vadd.f32 %v655, 0.0
  %v720 = vadd.f32 %v656, 0.0
  %v721 = vadd.f32 %v657, 0.0
  %v722 = vadd.f32 %v658, 0.0
  %v723 = vadd.f32 %v659, 0.0
  %v724 = vadd.f32 %v660, 0.0
  %v725 = vadd.f32 %v661, 0.0
  %v726 = vadd.f32 %v662, 0.0
  %v727 = vadd.f32 %v663, 0.0
  %v728 = vadd.f32 %v664, 0.0
  %v729 = vadd.f32 %v665, 0.0
  %v730 = vadd.f32 %v666, 0.0
  %v731 = vadd.f32 %v667, 0.0
  %v732 = vadd.f32 %v668, 0.0
  %v733 = vadd.f32 %v669, 0.0
  %v734 = vadd.f32 %v670, 0.0
  %v735 = vadd.f32 %v671, 0.0
  %v736 = vadd.f32 %v672, 0.0
  %v737 = vadd.f32 %v673, 0.0
  %v738 = vadd.f32 %v674, 0.0
  %v739 = vadd.f32 %v675, 0.0
  %v740 = vld [vmem:[#allocation2 + $0x1] sm:$0xff]
  %v741 = vld [vmem:[#allocation2 + $0x9] sm:$0xff]
  %v742 = vld [vmem:[#allocation2 + $0x19] sm:$0xff]
  %v743 = vld [vmem:[#allocation2 + $0x21] sm:$0xff]
  %v744 = vld [vmem:[#allocation2 + $0x31] sm:$0xff]
  %v745 = vld [vmem:[#allocation2 + $0x39] sm:$0xff]
  %v746 = vld [vmem:[#allocation2 + $0x49] sm:$0xff]
  %v747 = vld [vmem:[#allocation2 + $0x51] sm:$0xff]
  %v748 = vld [vmem:[#allocation2 + $0x61] sm:$0xff]
  %v749 = vld [vmem:[#allocation2 + $0x69] sm:$0xff]
  %v750 = vld [vmem:[#allocation2 + $0x79] sm:$0xff]
  %v751 = vld [vmem:[#allocation2 + $0x81] sm:$0xff]
  %v752 = vld [vmem:[#allocation2 + $0x91] sm:$0xff]
  %v753 = vld [vmem:[#allocation2 + $0x99] sm:$0xff]
  %v754 = vld [vmem:[#allocation2 + $0xa9] sm:$0xff]
  %v755 = vld [vmem:[#allocation2 + $0xb1] sm:$0xff]
  %v756 = vld [vmem:[#allocation2 + $0xc1] sm:$0xff]
  %v757 = vld [vmem:[#allocation2 + $0xc9] sm:$0xff]
  %v758 = vld [vmem:[#allocation2 + $0xd9] sm:$0xff]
  %v759 = vld [vmem:[#allocation2 + $0xe1] sm:$0xff]
  %v760 = vld [vmem:[#allocation2 + $0xf1] sm:$0xff]
  %v761 = vld [vmem:[#allocation2 + $0xf9] sm:$0xff]
  %v762 = vld [vmem:[#allocation2 + $0x109] sm:$0xff]
  %v763 = vld [vmem:[#allocation2 + $0x111] sm:$0xff]
  %v764 = vld [vmem:[#allocation2 + $0x121] sm:$0xff]
  %v765 = vld [vmem:[#allocation2 + $0x129] sm:$0xff]
  %v766 = vld [vmem:[#allocation2 + $0x139] sm:$0xff]
  %v767 = vld [vmem:[#allocation2 + $0x141] sm:$0xff]
  %v768 = vld [vmem:[#allocation2 + $0x151] sm:$0xff]
  %v769 = vld [vmem:[#allocation2 + $0x159] sm:$0xff]
  %v770 = vld [vmem:[#allocation2 + $0x169] sm:$0xff]
  %v771 = vld [vmem:[#allocation2 + $0x171] sm:$0xff]
  %v772 = vld [vmem:[#allocation2 + $0x181] sm:$0xff]
  %v773 = vld [vmem:[#allocation2 + $0x189] sm:$0xff]
  %v774 = vld [vmem:[#allocation2 + $0x199] sm:$0xff]
  %v775 = vld [vmem:[#allocation2 + $0x1a1] sm:$0xff]
  %v776 = vld [vmem:[#allocation2 + $0x1b1] sm:$0xff]
  %v777 = vld [vmem:[#allocation2 + $0x1b9] sm:$0xff]
  %v778 = vld [vmem:[#allocation2 + $0x1c9] sm:$0xff]
  %v779 = vld [vmem:[#allocation2 + $0x1d1] sm:$0xff]
  %v780 = vld [vmem:[#allocation2 + $0x1e1] sm:$0xff]
  %v781 = vld [vmem:[#allocation2 + $0x1e9] sm:$0xff]
  %v782 = vld [vmem:[#allocation2 + $0x1f9] sm:$0xff]
  %v783 = vld [vmem:[#allocation2 + $0x201] sm:$0xff]
  %v784 = vld [vmem:[#allocation2 + $0x211] sm:$0xff]
  %v785 = vld [vmem:[#allocation2 + $0x219] sm:$0xff]
  %v786 = vld [vmem:[#allocation2 + $0x229] sm:$0xff]
  %v787 = vld [vmem:[#allocation2 + $0x231] sm:$0xff]
  %v788 = vld [vmem:[#allocation2 + $0x241] sm:$0xff]
  %v789 = vld [vmem:[#allocation2 + $0x249] sm:$0xff]
  %v790 = vld [vmem:[#allocation2 + $0x259] sm:$0xff]
  %v791 = vld [vmem:[#allocation2 + $0x261] sm:$0xff]
  %v792 = vld [vmem:[#allocation2 + $0x271] sm:$0xff]
  %v793 = vld [vmem:[#allocation2 + $0x279] sm:$0xff]
  %v794 = vld [vmem:[#allocation2 + $0x289] sm:$0xff]
  %v795 = vld [vmem:[#allocation2 + $0x291] sm:$0xff]
  %v796 = vld [vmem:[#allocation2 + $0x2a1] sm:$0xff]
  %v797 = vld [vmem:[#allocation2 + $0x2a9] sm:$0xff]
  %v798 = vld [vmem:[#allocation2 + $0x2b9] sm:$0xff]
  %v799 = vld [vmem:[#allocation2 + $0x2c1] sm:$0xff]
  %v800 = vld [vmem:[#allocation2 + $0x2d1] sm:$0xff]
  %v801 = vld [vmem:[#allocation2 + $0x2d9] sm:$0xff]
  %v802 = vld [vmem:[#allocation2 + $0x2e9] sm:$0xff]
  %v803 = vld [vmem:[#allocation2 + $0x2f1] sm:$0xff]
  %v804 = vlaneseq
  %v805 = vshrl.u32 %v804, 7
  %v806 = vsub.s32 1, %v805
  %v807 = vrot.slane %v542, %v806
  %v808 = vmul.f32 %v740, %v807
  %v809 = vmul.f32 %v741, %v807
  %v810 = vmul.f32 %v742, %v807
  %v811 = vmul.f32 %v743, %v807
  %v812 = vmul.f32 %v744, %v807
  %v813 = vmul.f32 %v745, %v807
  %v814 = vmul.f32 %v746, %v807
  %v815 = vmul.f32 %v747, %v807
  %v816 = vmul.f32 %v748, %v807
  %v817 = vmul.f32 %v749, %v807
  %v818 = vmul.f32 %v750, %v807
  %v819 = vmul.f32 %v751, %v807
  %v820 = vmul.f32 %v752, %v807
  %v821 = vmul.f32 %v753, %v807
  %v822 = vmul.f32 %v754, %v807
  %v823 = vmul.f32 %v755, %v807
  %v824 = vmul.f32 %v756, %v807
  %v825 = vmul.f32 %v757, %v807
  %v826 = vmul.f32 %v758, %v807
  %v827 = vmul.f32 %v759, %v807
  %v828 = vmul.f32 %v760, %v807
  %v829 = vmul.f32 %v761, %v807
  %v830 = vmul.f32 %v762, %v807
  %v831 = vmul.f32 %v763, %v807
  %v832 = vmul.f32 %v764, %v807
  %v833 = vmul.f32 %v765, %v807
  %v834 = vmul.f32 %v766, %v807
  %v835 = vmul.f32 %v767, %v807
  %v836 = vmul.f32 %v768, %v807
  %v837 = vmul.f32 %v769, %v807
  %v838 = vmul.f32 %v770, %v807
  %v839 = vmul.f32 %v771, %v807
  %v840 = vmul.f32 %v772, %v807
  %v841 = vmul.f32 %v773, %v807
  %v842 = vmul.f32 %v774, %v807
  %v843 = vmul.f32 %v775, %v807
  %v844 = vmul.f32 %v776, %v807
  %v845 = vmul.f32 %v777, %v807
  %v846 = vmul.f32 %v778, %v807
  %v847 = vmul.f32 %v779, %v807
  %v848 = vmul.f32 %v780, %v807
  %v849 = vmul.f32 %v781, %v807
  %v850 = vmul.f32 %v782, %v807
  %v851 = vmul.f32 %v783, %v807
  %v852 = vmul.f32 %v784, %v807
  %v853 = vmul.f32 %v785, %v807
  %v854 = vmul.f32 %v786, %v807
  %v855 = vmul.f32 %v787, %v807
  %v856 = vmul.f32 %v788, %v807
  %v857 = vmul.f32 %v789, %v807
  %v858 = vmul.f32 %v790, %v807
  %v859 = vmul.f32 %v791, %v807
  %v860 = vmul.f32 %v792, %v807
  %v861 = vmul.f32 %v793, %v807
  %v862 = vmul.f32 %v794, %v807
  %v863 = vmul.f32 %v795, %v807
  %v864 = vmul.f32 %v796, %v807
  %v865 = vmul.f32 %v797, %v807
  %v866 = vmul.f32 %v798, %v807
  %v867 = vmul.f32 %v799, %v807
  %v868 = vmul.f32 %v800, %v807
  %v869 = vmul.f32 %v801, %v807
  %v870 = vmul.f32 %v802, %v807
  %v871 = vmul.f32 %v803, %v807
  %v872 = vadd.f32 %v676, %v808
  %v873 = vadd.f32 %v677, %v809
  %v874 = vadd.f32 %v678, %v810
  %v875 = vadd.f32 %v679, %v811
  %v876 = vadd.f32 %v680, %v812
  %v877 = vadd.f32 %v681, %v813
  %v878 = vadd.f32 %v682, %v814
  %v879 = vadd.f32 %v683, %v815
  %v880 = vadd.f32 %v684, %v816
  %v881 = vadd.f32 %v685, %v817
  %v882 = vadd.f32 %v686, %v818
  %v883 = vadd.f32 %v687, %v819
  %v884 = vadd.f32 %v688, %v820
  %v885 = vadd.f32 %v689, %v821
  %v886 = vadd.f32 %v690, %v822
  %v887 = vadd.f32 %v691, %v823
  %v888 = vadd.f32 %v692, %v824
  %v889 = vadd.f32 %v693, %v825
  %v890 = vadd.f32 %v694, %v826
  %v891 = vadd.f32 %v695, %v827
  %v892 = vadd.f32 %v696, %v828
  %v893 = vadd.f32 %v697, %v829
  %v894 = vadd.f32 %v698, %v830
  %v895 = vadd.f32 %v699, %v831
  %v896 = vadd.f32 %v700, %v832
  %v897 = vadd.f32 %v701, %v833
  %v898 = vadd.f32 %v702, %v834
  %v899 = vadd.f32 %v703, %v835
  %v900 = vadd.f32 %v704, %v836
  %v901 = vadd.f32 %v705, %v837
  %v902 = vadd.f32 %v706, %v838
  %v903 = vadd.f32 %v707, %v839
  %v904 = vadd.f32 %v708, %v840
  %v905 = vadd.f32 %v709, %v841
  %v906 = vadd.f32 %v710, %v842
  %v907 = vadd.f32 %v711, %v843
  %v908 = vadd.f32 %v712, %v844
  %v909 = vadd.f32 %v713, %v845
  %v910 = vadd.f32 %v714, %v846
  %v911 = vadd.f32 %v715, %v847
  %v912 = vadd.f32 %v716, %v848
  %v913 = vadd.f32 %v717, %v849
  %v914 = vadd.f32 %v718, %v850
  %v915 = vadd.f32 %v719, %v851
  %v916 = vadd.f32 %v720, %v852
  %v917 = vadd.f32 %v721, %v853
  %v918 = vadd.f32 %v722, %v854
  %v919 = vadd.f32 %v723, %v855
  %v920 = vadd.f32 %v724, %v856
  %v921 = vadd.f32 %v725, %v857
  %v922 = vadd.f32 %v726, %v858
  %v923 = vadd.f32 %v727, %v859
  %v924 = vadd.f32 %v728, %v860
  %v925 = vadd.f32 %v729, %v861
  %v926 = vadd.f32 %v730, %v862
  %v927 = vadd.f32 %v731, %v863
  %v928 = vadd.f32 %v732, %v864
  %v929 = vadd.f32 %v733, %v865
  %v930 = vadd.f32 %v734, %v866
  %v931 = vadd.f32 %v735, %v867
  %v932 = vadd.f32 %v736, %v868
  %v933 = vadd.f32 %v737, %v869
  %v934 = vadd.f32 %v738, %v870
  %v935 = vadd.f32 %v739, %v871
  %v936 = vld [vmem:[#allocation2 + $0x2] sm:$0xff]
  %v937 = vld [vmem:[#allocation2 + $0xa] sm:$0xff]
  %v938 = vld [vmem:[#allocation2 + $0x1a] sm:$0xff]
  %v939 = vld [vmem:[#allocation2 + $0x22] sm:$0xff]
  %v940 = vld [vmem:[#allocation2 + $0x32] sm:$0xff]
  %v941 = vld [vmem:[#allocation2 + $0x3a] sm:$0xff]
  %v942 = vld [vmem:[#allocation2 + $0x4a] sm:$0xff]
  %v943 = vld [vmem:[#allocation2 + $0x52] sm:$0xff]
  %v944 = vld [vmem:[#allocation2 + $0x62] sm:$0xff]
  %v945 = vld [vmem:[#allocation2 + $0x6a] sm:$0xff]
  %v946 = vld [vmem:[#allocation2 + $0x7a] sm:$0xff]
  %v947 = vld [vmem:[#allocation2 + $0x82] sm:$0xff]
  %v948 = vld [vmem:[#allocation2 + $0x92] sm:$0xff]
  %v949 = vld [vmem:[#allocation2 + $0x9a] sm:$0xff]
  %v950 = vld [vmem:[#allocation2 + $0xaa] sm:$0xff]
  %v951 = vld [vmem:[#allocation2 + $0xb2] sm:$0xff]
  %v952 = vld [vmem:[#allocation2 + $0xc2] sm:$0xff]
  %v953 = vld [vmem:[#allocation2 + $0xca] sm:$0xff]
  %v954 = vld [vmem:[#allocation2 + $0xda] sm:$0xff]
  %v955 = vld [vmem:[#allocation2 + $0xe2] sm:$0xff]
  %v956 = vld [vmem:[#allocation2 + $0xf2] sm:$0xff]
  %v957 = vld [vmem:[#allocation2 + $0xfa] sm:$0xff]
  %v958 = vld [vmem:[#allocation2 + $0x10a] sm:$0xff]
  %v959 = vld [vmem:[#allocation2 + $0x112] sm:$0xff]
  %v960 = vld [vmem:[#allocation2 + $0x122] sm:$0xff]
  %v961 = vld [vmem:[#allocation2 + $0x12a] sm:$0xff]
  %v962 = vld [vmem:[#allocation2 + $0x13a] sm:$0xff]
  %v963 = vld [vmem:[#allocation2 + $0x142] sm:$0xff]
  %v964 = vld [vmem:[#allocation2 + $0x152] sm:$0xff]
  %v965 = vld [vmem:[#allocation2 + $0x15a] sm:$0xff]
  %v966 = vld [vmem:[#allocation2 + $0x16a] sm:$0xff]
  %v967 = vld [vmem:[#allocation2 + $0x172] sm:$0xff]
  %v968 = vld [vmem:[#allocation2 + $0x182] sm:$0xff]
  %v969 = vld [vmem:[#allocation2 + $0x18a] sm:$0xff]
  %v970 = vld [vmem:[#allocation2 + $0x19a] sm:$0xff]
  %v971 = vld [vmem:[#allocation2 + $0x1a2] sm:$0xff]
  %v972 = vld [vmem:[#allocation2 + $0x1b2] sm:$0xff]
  %v973 = vld [vmem:[#allocation2 + $0x1ba] sm:$0xff]
  %v974 = vld [vmem:[#allocation2 + $0x1ca] sm:$0xff]
  %v975 = vld [vmem:[#allocation2 + $0x1d2] sm:$0xff]
  %v976 = vld [vmem:[#allocation2 + $0x1e2] sm:$0xff]
  %v977 = vld [vmem:[#allocation2 + $0x1ea] sm:$0xff]
  %v978 = vld [vmem:[#allocation2 + $0x1fa] sm:$0xff]
  %v979 = vld [vmem:[#allocation2 + $0x202] sm:$0xff]
  %v980 = vld [vmem:[#allocation2 + $0x212] sm:$0xff]
  %v981 = vld [vmem:[#allocation2 + $0x21a] sm:$0xff]
  %v982 = vld [vmem:[#allocation2 + $0x22a] sm:$0xff]
  %v983 = vld [vmem:[#allocation2 + $0x232] sm:$0xff]
  %v984 = vld [vmem:[#allocation2 + $0x242] sm:$0xff]
  %v985 = vld [vmem:[#allocation2 + $0x24a] sm:$0xff]
  %v986 = vld [vmem:[#allocation2 + $0x25a] sm:$0xff]
  %v987 = vld [vmem:[#allocation2 + $0x262] sm:$0xff]
  %v988 = vld [vmem:[#allocation2 + $0x272] sm:$0xff]
  %v989 = vld [vmem:[#allocation2 + $0x27a] sm:$0xff]
  %v990 = vld [vmem:[#allocation2 + $0x28a] sm:$0xff]
  %v991 = vld [vmem:[#allocation2 + $0x292] sm:$0xff]
  %v992 = vld [vmem:[#allocation2 + $0x2a2] sm:$0xff]
  %v993 = vld [vmem:[#allocation2 + $0x2aa] sm:$0xff]
  %v994 = vld [vmem:[#allocation2 + $0x2ba] sm:$0xff]
  %v995 = vld [vmem:[#allocation2 + $0x2c2] sm:$0xff]
  %v996 = vld [vmem:[#allocation2 + $0x2d2] sm:$0xff]
  %v997 = vld [vmem:[#allocation2 + $0x2da] sm:$0xff]
  %v998 = vld [vmem:[#allocation2 + $0x2ea] sm:$0xff]
  %v999 = vld [vmem:[#allocation2 + $0x2f2] sm:$0xff]
  %v1000 = vlaneseq
  %v1001 = vshrl.u32 %v1000, 7
  %v1002 = vsub.s32 2, %v1001
  %v1003 = vrot.slane %v542, %v1002
  %v1004 = vmul.f32 %v936, %v1003
  %v1005 = vmul.f32 %v937, %v1003
  %v1006 = vmul.f32 %v938, %v1003
  %v1007 = vmul.f32 %v939, %v1003
  %v1008 = vmul.f32 %v940, %v1003
  %v1009 = vmul.f32 %v941, %v1003
  %v1010 = vmul.f32 %v942, %v1003
  %v1011 = vmul.f32 %v943, %v1003
  %v1012 = vmul.f32 %v944, %v1003
  %v1013 = vmul.f32 %v945, %v1003
  %v1014 = vmul.f32 %v946, %v1003
  %v1015 = vmul.f32 %v947, %v1003
  %v1016 = vmul.f32 %v948, %v1003
  %v1017 = vmul.f32 %v949, %v1003
  %v1018 = vmul.f32 %v950, %v1003
  %v1019 = vmul.f32 %v951, %v1003
  %v1020 = vmul.f32 %v952, %v1003
  %v1021 = vmul.f32 %v953, %v1003
  %v1022 = vmul.f32 %v954, %v1003
  %v1023 = vmul.f32 %v955, %v1003
  %v1024 = vmul.f32 %v956, %v1003
  %v1025 = vmul.f32 %v957, %v1003
  %v1026 = vmul.f32 %v958, %v1003
  %v1027 = vmul.f32 %v959, %v1003
  %v1028 = vmul.f32 %v960, %v1003
  %v1029 = vmul.f32 %v961, %v1003
  %v1030 = vmul.f32 %v962, %v1003
  %v1031 = vmul.f32 %v963, %v1003
  %v1032 = vmul.f32 %v964, %v1003
  %v1033 = vmul.f32 %v965, %v1003
  %v1034 = vmul.f32 %v966, %v1003
  %v1035 = vmul.f32 %v967, %v1003
  %v1036 = vmul.f32 %v968, %v1003
  %v1037 = vmul.f32 %v969, %v1003
  %v1038 = vmul.f32 %v970, %v1003
  %v1039 = vmul.f32 %v971, %v1003
  %v1040 = vmul.f32 %v972, %v1003
  %v1041 = vmul.f32 %v973, %v1003
  %v1042 = vmul.f32 %v974, %v1003
  %v1043 = vmul.f32 %v975, %v1003
  %v1044 = vmul.f32 %v976, %v1003
  %v1045 = vmul.f32 %v977, %v1003
  %v1046 = vmul.f32 %v978, %v1003
  %v1047 = vmul.f32 %v979, %v1003
  %v1048 = vmul.f32 %v980, %v1003
  %v1049 = vmul.f32 %v981, %v1003
  %v1050 = vmul.f32 %v982, %v1003
  %v1051 = vmul.f32 %v983, %v1003
  %v1052 = vmul.f32 %v984, %v1003
  %v1053 = vmul.f32 %v985, %v1003
  %v1054 = vmul.f32 %v986, %v1003
  %v1055 = vmul.f32 %v987, %v1003
  %v1056 = vmul.f32 %v988, %v1003
  %v1057 = vmul.f32 %v989, %v1003
  %v1058 = vmul.f32 %v990, %v1003
  %v1059 = vmul.f32 %v991, %v1003
  %v1060 = vmul.f32 %v992, %v1003
  %v1061 = vmul.f32 %v993, %v1003
  %v1062 = vmul.f32 %v994, %v1003
  %v1063 = vmul.f32 %v995, %v1003
  %v1064 = vmul.f32 %v996, %v1003
  %v1065 = vmul.f32 %v997, %v1003
  %v1066 = vmul.f32 %v998, %v1003
  %v1067 = vmul.f32 %v999, %v1003
  %v1068 = vadd.f32 %v872, %v1004
  %v1069 = vadd.f32 %v873, %v1005
  %v1070 = vadd.f32 %v874, %v1006
  %v1071 = vadd.f32 %v875, %v1007
  %v1072 = vadd.f32 %v876, %v1008
  %v1073 = vadd.f32 %v877, %v1009
  %v1074 = vadd.f32 %v878, %v1010
  %v1075 = vadd.f32 %v879, %v1011
  %v1076 = vadd.f32 %v880, %v1012
  %v1077 = vadd.f32 %v881, %v1013
  %v1078 = vadd.f32 %v882, %v1014
  %v1079 = vadd.f32 %v883, %v1015
  %v1080 = vadd.f32 %v884, %v1016
  %v1081 = vadd.f32 %v885, %v1017
  %v1082 = vadd.f32 %v886, %v1018
  %v1083 = vadd.f32 %v887, %v1019
  %v1084 = vadd.f32 %v888, %v1020
  %v1085 = vadd.f32 %v889, %v1021
  %v1086 = vadd.f32 %v890, %v1022
  %v1087 = vadd.f32 %v891, %v1023
  %v1088 = vadd.f32 %v892, %v1024
  %v1089 = vadd.f32 %v893, %v1025
  %v1090 = vadd.f32 %v894, %v1026
  %v1091 = vadd.f32 %v895, %v1027
  %v1092 = vadd.f32 %v896, %v1028
  %v1093 = vadd.f32 %v897, %v1029
  %v1094 = vadd.f32 %v898, %v1030
  %v1095 = vadd.f32 %v899, %v1031
  %v1096 = vadd.f32 %v900, %v1032
  %v1097 = vadd.f32 %v901, %v1033
  %v1098 = vadd.f32 %v902, %v1034
  %v1099 = vadd.f32 %v903, %v1035
  %v1100 = vadd.f32 %v904, %v1036
  %v1101 = vadd.f32 %v905, %v1037
  %v1102 = vadd.f32 %v906, %v1038
  %v1103 = vadd.f32 %v907, %v1039
  %v1104 = vadd.f32 %v908, %v1040
  %v1105 = vadd.f32 %v909, %v1041
  %v1106 = vadd.f32 %v910, %v1042
  %v1107 = vadd.f32 %v911, %v1043
  %v1108 = vadd.f32 %v912, %v1044
  %v1109 = vadd.f32 %v913, %v1045
  %v1110 = vadd.f32 %v914, %v1046
  %v1111 = vadd.f32 %v915, %v1047
  %v1112 = vadd.f32 %v916, %v1048
  %v1113 = vadd.f32 %v917, %v1049
  %v1114 = vadd.f32 %v918, %v1050
  %v1115 = vadd.f32 %v919, %v1051
  %v1116 = vadd.f32 %v920, %v1052
  %v1117 = vadd.f32 %v921, %v1053
  %v1118 = vadd.f32 %v922, %v1054
  %v1119 = vadd.f32 %v923, %v1055
  %v1120 = vadd.f32 %v924, %v1056
  %v1121 = vadd.f32 %v925, %v1057
  %v1122 = vadd.f32 %v926, %v1058
  %v1123 = vadd.f32 %v927, %v1059
  %v1124 = vadd.f32 %v928, %v1060
  %v1125 = vadd.f32 %v929, %v1061
  %v1126 = vadd.f32 %v930, %v1062
  %v1127 = vadd.f32 %v931, %v1063
  %v1128 = vadd.f32 %v932, %v1064
  %v1129 = vadd.f32 %v933, %v1065
  %v1130 = vadd.f32 %v934, %v1066
  %v1131 = vadd.f32 %v935, %v1067
  %v1132 = vld [vmem:[%s477] sm:$0xff]
  %v1133 = vld [vmem:[%s477 + $0x8] sm:$0xff]
  %v1134 = vld [vmem:[%s477 + $0x18] sm:$0xff]
  %v1135 = vld [vmem:[%s477 + $0x20] sm:$0xff]
  %v1136 = vld [vmem:[%s477 + $0x30] sm:$0xff]
  %v1137 = vld [vmem:[%s477 + $0x38] sm:$0xff]
  %v1138 = vld [vmem:[%s477 + $0x48] sm:$0xff]
  %v1139 = vld [vmem:[%s477 + $0x50] sm:$0xff]
  %v1140 = vld [vmem:[%s477 + $0x60] sm:$0xff]
  %v1141 = vld [vmem:[%s477 + $0x68] sm:$0xff]
  %v1142 = vld [vmem:[%s477 + $0x78] sm:$0xff]
  %v1143 = vld [vmem:[%s477 + $0x80] sm:$0xff]
  %v1144 = vld [vmem:[%s477 + $0x90] sm:$0xff]
  %v1145 = vld [vmem:[%s477 + $0x98] sm:$0xff]
  %v1146 = vld [vmem:[%s477 + $0xa8] sm:$0xff]
  %v1147 = vld [vmem:[%s477 + $0xb0] sm:$0xff]
  %v1148 = vld [vmem:[%s477 + $0xc0] sm:$0xff]
  %v1149 = vld [vmem:[%s477 + $0xc8] sm:$0xff]
  %v1150 = vld [vmem:[%s477 + $0xd8] sm:$0xff]
  %v1151 = vld [vmem:[%s477 + $0xe0] sm:$0xff]
  %v1152 = vld [vmem:[%s477 + $0xf0] sm:$0xff]
  %v1153 = vld [vmem:[%s477 + $0xf8] sm:$0xff]
  %v1154 = vld [vmem:[%s477 + $0x108] sm:$0xff]
  %v1155 = vld [vmem:[%s477 + $0x110] sm:$0xff]
  %v1156 = vld [vmem:[%s477 + $0x120] sm:$0xff]
  %v1157 = vld [vmem:[%s477 + $0x128] sm:$0xff]
  %v1158 = vld [vmem:[%s477 + $0x138] sm:$0xff]
  %v1159 = vld [vmem:[%s477 + $0x140] sm:$0xff]
  %v1160 = vld [vmem:[%s477 + $0x150] sm:$0xff]
  %v1161 = vld [vmem:[%s477 + $0x158] sm:$0xff]
  %v1162 = vld [vmem:[%s477 + $0x168] sm:$0xff]
  %v1163 = vld [vmem:[%s477 + $0x170] sm:$0xff]
  %v1164 = vld [vmem:[%s477 + $0x180] sm:$0xff]
  %v1165 = vld [vmem:[%s477 + $0x188] sm:$0xff]
  %v1166 = vld [vmem:[%s477 + $0x198] sm:$0xff]
  %v1167 = vld [vmem:[%s477 + $0x1a0] sm:$0xff]
  %v1168 = vld [vmem:[%s477 + $0x1b0] sm:$0xff]
  %v1169 = vld [vmem:[%s477 + $0x1b8] sm:$0xff]
  %v1170 = vld [vmem:[%s477 + $0x1c8] sm:$0xff]
  %v1171 = vld [vmem:[%s477 + $0x1d0] sm:$0xff]
  %v1172 = vld [vmem:[%s477 + $0x1e0] sm:$0xff]
  %v1173 = vld [vmem:[%s477 + $0x1e8] sm:$0xff]
  %v1174 = vld [vmem:[%s477 + $0x1f8] sm:$0xff]
  %v1175 = vld [vmem:[%s477 + $0x200] sm:$0xff]
  %v1176 = vld [vmem:[%s477 + $0x210] sm:$0xff]
  %v1177 = vld [vmem:[%s477 + $0x218] sm:$0xff]
  %v1178 = vld [vmem:[%s477 + $0x228] sm:$0xff]
  %v1179 = vld [vmem:[%s477 + $0x230] sm:$0xff]
  %v1180 = vld [vmem:[%s477 + $0x240] sm:$0xff]
  %v1181 = vld [vmem:[%s477 + $0x248] sm:$0xff]
  %v1182 = vld [vmem:[%s477 + $0x258] sm:$0xff]
  %v1183 = vld [vmem:[%s477 + $0x260] sm:$0xff]
  %v1184 = vld [vmem:[%s477 + $0x270] sm:$0xff]
  %v1185 = vld [vmem:[%s477 + $0x278] sm:$0xff]
  %v1186 = vld [vmem:[%s477 + $0x288] sm:$0xff]
  %v1187 = vld [vmem:[%s477 + $0x290] sm:$0xff]
  %v1188 = vld [vmem:[%s477 + $0x2a0] sm:$0xff]
  %v1189 = vld [vmem:[%s477 + $0x2a8] sm:$0xff]
  %v1190 = vld [vmem:[%s477 + $0x2b8] sm:$0xff]
  %v1191 = vld [vmem:[%s477 + $0x2c0] sm:$0xff]
  %v1192 = vld [vmem:[%s477 + $0x2d0] sm:$0xff]
  %v1193 = vld [vmem:[%s477 + $0x2d8] sm:$0xff]
  %v1194 = vld [vmem:[%s477 + $0x2e8] sm:$0xff]
  %v1195 = vld [vmem:[%s477 + $0x2f0] sm:$0xff]
  %v1196 = vlaneseq
  %v1197 = vshrl.u32 %v1196, 7
  %v1198 = vsub.s32 3, %v1197
  %v1199 = vrot.slane %v542, %v1198
  %v1200 = vmul.f32 %v1132, %v1199
  %v1201 = vmul.f32 %v1133, %v1199
  %v1202 = vmul.f32 %v1134, %v1199
  %v1203 = vmul.f32 %v1135, %v1199
  %v1204 = vmul.f32 %v1136, %v1199
  %v1205 = vmul.f32 %v1137, %v1199
  %v1206 = vmul.f32 %v1138, %v1199
  %v1207 = vmul.f32 %v1139, %v1199
  %v1208 = vmul.f32 %v1140, %v1199
  %v1209 = vmul.f32 %v1141, %v1199
  %v1210 = vmul.f32 %v1142, %v1199
  %v1211 = vmul.f32 %v1143, %v1199
  %v1212 = vmul.f32 %v1144, %v1199
  %v1213 = vmul.f32 %v1145, %v1199
  %v1214 = vmul.f32 %v1146, %v1199
  %v1215 = vmul.f32 %v1147, %v1199
  %v1216 = vmul.f32 %v1148, %v1199
  %v1217 = vmul.f32 %v1149, %v1199
  %v1218 = vmul.f32 %v1150, %v1199
  %v1219 = vmul.f32 %v1151, %v1199
  %v1220 = vmul.f32 %v1152, %v1199
  %v1221 = vmul.f32 %v1153, %v1199
  %v1222 = vmul.f32 %v1154, %v1199
  %v1223 = vmul.f32 %v1155, %v1199
  %v1224 = vmul.f32 %v1156, %v1199
  %v1225 = vmul.f32 %v1157, %v1199
  %v1226 = vmul.f32 %v1158, %v1199
  %v1227 = vmul.f32 %v1159, %v1199
  %v1228 = vmul.f32 %v1160, %v1199
  %v1229 = vmul.f32 %v1161, %v1199
  %v1230 = vmul.f32 %v1162, %v1199
  %v1231 = vmul.f32 %v1163, %v1199
  %v1232 = vmul.f32 %v1164, %v1199
  %v1233 = vmul.f32 %v1165, %v1199
  %v1234 = vmul.f32 %v1166, %v1199
  %v1235 = vmul.f32 %v1167, %v1199
  %v1236 = vmul.f32 %v1168, %v1199
  %v1237 = vmul.f32 %v1169, %v1199
  %v1238 = vmul.f32 %v1170, %v1199
  %v1239 = vmul.f32 %v1171, %v1199
  %v1240 = vmul.f32 %v1172, %v1199
  %v1241 = vmul.f32 %v1173, %v1199
  %v1242 = vmul.f32 %v1174, %v1199
  %v1243 = vmul.f32 %v1175, %v1199
  %v1244 = vmul.f32 %v1176, %v1199
  %v1245 = vmul.f32 %v1177, %v1199
  %v1246 = vmul.f32 %v1178, %v1199
  %v1247 = vmul.f32 %v1179, %v1199
  %v1248 = vmul.f32 %v1180, %v1199
  %v1249 = vmul.f32 %v1181, %v1199
  %v1250 = vmul.f32 %v1182, %v1199
  %v1251 = vmul.f32 %v1183, %v1199
  %v1252 = vmul.f32 %v1184, %v1199
  %v1253 = vmul.f32 %v1185, %v1199
  %v1254 = vmul.f32 %v1186, %v1199
  %v1255 = vmul.f32 %v1187, %v1199
  %v1256 = vmul.f32 %v1188, %v1199
  %v1257 = vmul.f32 %v1189, %v1199
  %v1258 = vmul.f32 %v1190, %v1199
  %v1259 = vmul.f32 %v1191, %v1199
  %v1260 = vmul.f32 %v1192, %v1199
  %v1261 = vmul.f32 %v1193, %v1199
  %v1262 = vmul.f32 %v1194, %v1199
  %v1263 = vmul.f32 %v1195, %v1199
  %v1264 = vadd.f32 %v1068, %v1200
  %v1265 = vadd.f32 %v1069, %v1201
  %v1266 = vadd.f32 %v1070, %v1202
  %v1267 = vadd.f32 %v1071, %v1203
  %v1268 = vadd.f32 %v1072, %v1204
  %v1269 = vadd.f32 %v1073, %v1205
  %v1270 = vadd.f32 %v1074, %v1206
  %v1271 = vadd.f32 %v1075, %v1207
  %v1272 = vadd.f32 %v1076, %v1208
  %v1273 = vadd.f32 %v1077, %v1209
  %v1274 = vadd.f32 %v1078, %v1210
  %v1275 = vadd.f32 %v1079, %v1211
  %v1276 = vadd.f32 %v1080, %v1212
  %v1277 = vadd.f32 %v1081, %v1213
  %v1278 = vadd.f32 %v1082, %v1214
  %v1279 = vadd.f32 %v1083, %v1215
  %v1280 = vadd.f32 %v1084, %v1216
  %v1281 = vadd.f32 %v1085, %v1217
  %v1282 = vadd.f32 %v1086, %v1218
  %v1283 = vadd.f32 %v1087, %v1219
  %v1284 = vadd.f32 %v1088, %v1220
  %v1285 = vadd.f32 %v1089, %v1221
  %v1286 = vadd.f32 %v1090, %v1222
  %v1287 = vadd.f32 %v1091, %v1223
  %v1288 = vadd.f32 %v1092, %v1224
  %v1289 = vadd.f32 %v1093, %v1225
  %v1290 = vadd.f32 %v1094, %v1226
  %v1291 = vadd.f32 %v1095, %v1227
  %v1292 = vadd.f32 %v1096, %v1228
  %v1293 = vadd.f32 %v1097, %v1229
  %v1294 = vadd.f32 %v1098, %v1230
  %v1295 = vadd.f32 %v1099, %v1231
  %v1296 = vadd.f32 %v1100, %v1232
  %v1297 = vadd.f32 %v1101, %v1233
  %v1298 = vadd.f32 %v1102, %v1234
  %v1299 = vadd.f32 %v1103, %v1235
  %v1300 = vadd.f32 %v1104, %v1236
  %v1301 = vadd.f32 %v1105, %v1237
  %v1302 = vadd.f32 %v1106, %v1238
  %v1303 = vadd.f32 %v1107, %v1239
  %v1304 = vadd.f32 %v1108, %v1240
  %v1305 = vadd.f32 %v1109, %v1241
  %v1306 = vadd.f32 %v1110, %v1242
  %v1307 = vadd.f32 %v1111, %v1243
  %v1308 = vadd.f32 %v1112, %v1244
  %v1309 = vadd.f32 %v1113, %v1245
  %v1310 = vadd.f32 %v1114, %v1246
  %v1311 = vadd.f32 %v1115, %v1247
  %v1312 = vadd.f32 %v1116, %v1248
  %v1313 = vadd.f32 %v1117, %v1249
  %v1314 = vadd.f32 %v1118, %v1250
  %v1315 = vadd.f32 %v1119, %v1251
  %v1316 = vadd.f32 %v1120, %v1252
  %v1317 = vadd.f32 %v1121, %v1253
  %v1318 = vadd.f32 %v1122, %v1254
  %v1319 = vadd.f32 %v1123, %v1255
  %v1320 = vadd.f32 %v1124, %v1256
  %v1321 = vadd.f32 %v1125, %v1257
  %v1322 = vadd.f32 %v1126, %v1258
  %v1323 = vadd.f32 %v1127, %v1259
  %v1324 = vadd.f32 %v1128, %v1260
  %v1325 = vadd.f32 %v1129, %v1261
  %v1326 = vadd.f32 %v1130, %v1262
  %v1327 = vadd.f32 %v1131, %v1263
  %v1328 = vld [vmem:[%s477 + $0x1] sm:$0xff]
  %v1329 = vld [vmem:[%s477 + $0x9] sm:$0xff]
  %v1330 = vld [vmem:[%s477 + $0x19] sm:$0xff]
  %v1331 = vld [vmem:[%s477 + $0x21] sm:$0xff]
  %v1332 = vld [vmem:[%s477 + $0x31] sm:$0xff]
  %v1333 = vld [vmem:[%s477 + $0x39] sm:$0xff]
  %v1334 = vld [vmem:[%s477 + $0x49] sm:$0xff]
  %v1335 = vld [vmem:[%s477 + $0x51] sm:$0xff]
  %v1336 = vld [vmem:[%s477 + $0x61] sm:$0xff]
  %v1337 = vld [vmem:[%s477 + $0x69] sm:$0xff]
  %v1338 = vld [vmem:[%s477 + $0x79] sm:$0xff]
  %v1339 = vld [vmem:[%s477 + $0x81] sm:$0xff]
  %v1340 = vld [vmem:[%s477 + $0x91] sm:$0xff]
  %v1341 = vld [vmem:[%s477 + $0x99] sm:$0xff]
  %v1342 = vld [vmem:[%s477 + $0xa9] sm:$0xff]
  %v1343 = vld [vmem:[%s477 + $0xb1] sm:$0xff]
  %v1344 = vld [vmem:[%s477 + $0xc1] sm:$0xff]
  %v1345 = vld [vmem:[%s477 + $0xc9] sm:$0xff]
  %v1346 = vld [vmem:[%s477 + $0xd9] sm:$0xff]
  %v1347 = vld [vmem:[%s477 + $0xe1] sm:$0xff]
  %v1348 = vld [vmem:[%s477 + $0xf1] sm:$0xff]
  %v1349 = vld [vmem:[%s477 + $0xf9] sm:$0xff]
  %v1350 = vld [vmem:[%s477 + $0x109] sm:$0xff]
  %v1351 = vld [vmem:[%s477 + $0x111] sm:$0xff]
  %v1352 = vld [vmem:[%s477 + $0x121] sm:$0xff]
  %v1353 = vld [vmem:[%s477 + $0x129] sm:$0xff]
  %v1354 = vld [vmem:[%s477 + $0x139] sm:$0xff]
  %v1355 = vld [vmem:[%s477 + $0x141] sm:$0xff]
  %v1356 = vld [vmem:[%s477 + $0x151] sm:$0xff]
  %v1357 = vld [vmem:[%s477 + $0x159] sm:$0xff]
  %v1358 = vld [vmem:[%s477 + $0x169] sm:$0xff]
  %v1359 = vld [vmem:[%s477 + $0x171] sm:$0xff]
  %v1360 = vld [vmem:[%s477 + $0x181] sm:$0xff]
  %v1361 = vld [vmem:[%s477 + $0x189] sm:$0xff]
  %v1362 = vld [vmem:[%s477 + $0x199] sm:$0xff]
  %v1363 = vld [vmem:[%s477 + $0x1a1] sm:$0xff]
  %v1364 = vld [vmem:[%s477 + $0x1b1] sm:$0xff]
  %v1365 = vld [vmem:[%s477 + $0x1b9] sm:$0xff]
  %v1366 = vld [vmem:[%s477 + $0x1c9] sm:$0xff]
  %v1367 = vld [vmem:[%s477 + $0x1d1] sm:$0xff]
  %v1368 = vld [vmem:[%s477 + $0x1e1] sm:$0xff]
  %v1369 = vld [vmem:[%s477 + $0x1e9] sm:$0xff]
  %v1370 = vld [vmem:[%s477 + $0x1f9] sm:$0xff]
  %v1371 = vld [vmem:[%s477 + $0x201] sm:$0xff]
  %v1372 = vld [vmem:[%s477 + $0x211] sm:$0xff]
  %v1373 = vld [vmem:[%s477 + $0x219] sm:$0xff]
  %v1374 = vld [vmem:[%s477 + $0x229] sm:$0xff]
  %v1375 = vld [vmem:[%s477 + $0x231] sm:$0xff]
  %v1376 = vld [vmem:[%s477 + $0x241] sm:$0xff]
  %v1377 = vld [vmem:[%s477 + $0x249] sm:$0xff]
  %v1378 = vld [vmem:[%s477 + $0x259] sm:$0xff]
  %v1379 = vld [vmem:[%s477 + $0x261] sm:$0xff]
  %v1380 = vld [vmem:[%s477 + $0x271] sm:$0xff]
  %v1381 = vld [vmem:[%s477 + $0x279] sm:$0xff]
  %v1382 = vld [vmem:[%s477 + $0x289] sm:$0xff]
  %v1383 = vld [vmem:[%s477 + $0x291] sm:$0xff]
  %v1384 = vld [vmem:[%s477 + $0x2a1] sm:$0xff]
  %v1385 = vld [vmem:[%s477 + $0x2a9] sm:$0xff]
  %v1386 = vld [vmem:[%s477 + $0x2b9] sm:$0xff]
  %v1387 = vld [vmem:[%s477 + $0x2c1] sm:$0xff]
  %v1388 = vld [vmem:[%s477 + $0x2d1] sm:$0xff]
  %v1389 = vld [vmem:[%s477 + $0x2d9] sm:$0xff]
  %v1390 = vld [vmem:[%s477 + $0x2e9] sm:$0xff]
  %v1391 = vld [vmem:[%s477 + $0x2f1] sm:$0xff]
  %v1392 = vlaneseq
  %v1393 = vshrl.u32 %v1392, 7
  %v1394 = vsub.s32 4, %v1393
  %v1395 = vrot.slane %v542, %v1394
  %v1396 = vmul.f32 %v1328, %v1395
  %v1397 = vmul.f32 %v1329, %v1395
  %v1398 = vmul.f32 %v1330, %v1395
  %v1399 = vmul.f32 %v1331, %v1395
  %v1400 = vmul.f32 %v1332, %v1395
  %v1401 = vmul.f32 %v1333, %v1395
  %v1402 = vmul.f32 %v1334, %v1395
  %v1403 = vmul.f32 %v1335, %v1395
  %v1404 = vmul.f32 %v1336, %v1395
  %v1405 = vmul.f32 %v1337, %v1395
  %v1406 = vmul.f32 %v1338, %v1395
  %v1407 = vmul.f32 %v1339, %v1395
  %v1408 = vmul.f32 %v1340, %v1395
  %v1409 = vmul.f32 %v1341, %v1395
  %v1410 = vmul.f32 %v1342, %v1395
  %v1411 = vmul.f32 %v1343, %v1395
  %v1412 = vmul.f32 %v1344, %v1395
  %v1413 = vmul.f32 %v1345, %v1395
  %v1414 = vmul.f32 %v1346, %v1395
  %v1415 = vmul.f32 %v1347, %v1395
  %v1416 = vmul.f32 %v1348, %v1395
  %v1417 = vmul.f32 %v1349, %v1395
  %v1418 = vmul.f32 %v1350, %v1395
  %v1419 = vmul.f32 %v1351, %v1395
  %v1420 = vmul.f32 %v1352, %v1395
  %v1421 = vmul.f32 %v1353, %v1395
  %v1422 = vmul.f32 %v1354, %v1395
  %v1423 = vmul.f32 %v1355, %v1395
  %v1424 = vmul.f32 %v1356, %v1395
  %v1425 = vmul.f32 %v1357, %v1395
  %v1426 = vmul.f32 %v1358, %v1395
  %v1427 = vmul.f32 %v1359, %v1395
  %v1428 = vmul.f32 %v1360, %v1395
  %v1429 = vmul.f32 %v1361, %v1395
  %v1430 = vmul.f32 %v1362, %v1395
  %v1431 = vmul.f32 %v1363, %v1395
  %v1432 = vmul.f32 %v1364, %v1395
  %v1433 = vmul.f32 %v1365, %v1395
  %v1434 = vmul.f32 %v1366, %v1395
  %v1435 = vmul.f32 %v1367, %v1395
  %v1436 = vmul.f32 %v1368, %v1395
  %v1437 = vmul.f32 %v1369, %v1395
  %v1438 = vmul.f32 %v1370, %v1395
  %v1439 = vmul.f32 %v1371, %v1395
  %v1440 = vmul.f32 %v1372, %v1395
  %v1441 = vmul.f32 %v1373, %v1395
  %v1442 = vmul.f32 %v1374, %v1395
  %v1443 = vmul.f32 %v1375, %v1395
  %v1444 = vmul.f32 %v1376, %v1395
  %v1445 = vmul.f32 %v1377, %v1395
  %v1446 = vmul.f32 %v1378, %v1395
  %v1447 = vmul.f32 %v1379, %v1395
  %v1448 = vmul.f32 %v1380, %v1395
  %v1449 = vmul.f32 %v1381, %v1395
  %v1450 = vmul.f32 %v1382, %v1395
  %v1451 = vmul.f32 %v1383, %v1395
  %v1452 = vmul.f32 %v1384, %v1395
  %v1453 = vmul.f32 %v1385, %v1395
  %v1454 = vmul.f32 %v1386, %v1395
  %v1455 = vmul.f32 %v1387, %v1395
  %v1456 = vmul.f32 %v1388, %v1395
  %v1457 = vmul.f32 %v1389, %v1395
  %v1458 = vmul.f32 %v1390, %v1395
  %v1459 = vmul.f32 %v1391, %v1395
  %v1460 = vadd.f32 %v1264, %v1396
  %v1461 = vadd.f32 %v1265, %v1397
  %v1462 = vadd.f32 %v1266, %v1398
  %v1463 = vadd.f32 %v1267, %v1399
  %v1464 = vadd.f32 %v1268, %v1400
  %v1465 = vadd.f32 %v1269, %v1401
  %v1466 = vadd.f32 %v1270, %v1402
  %v1467 = vadd.f32 %v1271, %v1403
  %v1468 = vadd.f32 %v1272, %v1404
  %v1469 = vadd.f32 %v1273, %v1405
  %v1470 = vadd.f32 %v1274, %v1406
  %v1471 = vadd.f32 %v1275, %v1407
  %v1472 = vadd.f32 %v1276, %v1408
  %v1473 = vadd.f32 %v1277, %v1409
  %v1474 = vadd.f32 %v1278, %v1410
  %v1475 = vadd.f32 %v1279, %v1411
  %v1476 = vadd.f32 %v1280, %v1412
  %v1477 = vadd.f32 %v1281, %v1413
  %v1478 = vadd.f32 %v1282, %v1414
  %v1479 = vadd.f32 %v1283, %v1415
  %v1480 = vadd.f32 %v1284, %v1416
  %v1481 = vadd.f32 %v1285, %v1417
  %v1482 = vadd.f32 %v1286, %v1418
  %v1483 = vadd.f32 %v1287, %v1419
  %v1484 = vadd.f32 %v1288, %v1420
  %v1485 = vadd.f32 %v1289, %v1421
  %v1486 = vadd.f32 %v1290, %v1422
  %v1487 = vadd.f32 %v1291, %v1423
  %v1488 = vadd.f32 %v1292, %v1424
  %v1489 = vadd.f32 %v1293, %v1425
  %v1490 = vadd.f32 %v1294, %v1426
  %v1491 = vadd.f32 %v1295, %v1427
  %v1492 = vadd.f32 %v1296, %v1428
  %v1493 = vadd.f32 %v1297, %v1429
  %v1494 = vadd.f32 %v1298, %v1430
  %v1495 = vadd.f32 %v1299, %v1431
  %v1496 = vadd.f32 %v1300, %v1432
  %v1497 = vadd.f32 %v1301, %v1433
  %v1498 = vadd.f32 %v1302, %v1434
  %v1499 = vadd.f32 %v1303, %v1435
  %v1500 = vadd.f32 %v1304, %v1436
  %v1501 = vadd.f32 %v1305, %v1437
  %v1502 = vadd.f32 %v1306, %v1438
  %v1503 = vadd.f32 %v1307, %v1439
  %v1504 = vadd.f32 %v1308, %v1440
  %v1505 = vadd.f32 %v1309, %v1441
  %v1506 = vadd.f32 %v1310, %v1442
  %v1507 = vadd.f32 %v1311, %v1443
  %v1508 = vadd.f32 %v1312, %v1444
  %v1509 = vadd.f32 %v1313, %v1445
  %v1510 = vadd.f32 %v1314, %v1446
  %v1511 = vadd.f32 %v1315, %v1447
  %v1512 = vadd.f32 %v1316, %v1448
  %v1513 = vadd.f32 %v1317, %v1449
  %v1514 = vadd.f32 %v1318, %v1450
  %v1515 = vadd.f32 %v1319, %v1451
  %v1516 = vadd.f32 %v1320, %v1452
  %v1517 = vadd.f32 %v1321, %v1453
  %v1518 = vadd.f32 %v1322, %v1454
  %v1519 = vadd.f32 %v1323, %v1455
  %v1520 = vadd.f32 %v1324, %v1456
  %v1521 = vadd.f32 %v1325, %v1457
  %v1522 = vadd.f32 %v1326, %v1458
  %v1523 = vadd.f32 %v1327, %v1459
  %v1524 = vld [vmem:[%s477 + $0x2] sm:$0xff]
  %v1525 = vld [vmem:[%s477 + $0xa] sm:$0xff]
  %v1526 = vld [vmem:[%s477 + $0x1a] sm:$0xff]
  %v1527 = vld [vmem:[%s477 + $0x22] sm:$0xff]
  %v1528 = vld [vmem:[%s477 + $0x32] sm:$0xff]
  %v1529 = vld [vmem:[%s477 + $0x3a] sm:$0xff]
  %v1530 = vld [vmem:[%s477 + $0x4a] sm:$0xff]
  %v1531 = vld [vmem:[%s477 + $0x52] sm:$0xff]
  %v1532 = vld [vmem:[%s477 + $0x62] sm:$0xff]
  %v1533 = vld [vmem:[%s477 + $0x6a] sm:$0xff]
  %v1534 = vld [vmem:[%s477 + $0x7a] sm:$0xff]
  %v1535 = vld [vmem:[%s477 + $0x82] sm:$0xff]
  %v1536 = vld [vmem:[%s477 + $0x92] sm:$0xff]
  %v1537 = vld [vmem:[%s477 + $0x9a] sm:$0xff]
  %v1538 = vld [vmem:[%s477 + $0xaa] sm:$0xff]
  %v1539 = vld [vmem:[%s477 + $0xb2] sm:$0xff]
  %v1540 = vld [vmem:[%s477 + $0xc2] sm:$0xff]
  %v1541 = vld [vmem:[%s477 + $0xca] sm:$0xff]
  %v1542 = vld [vmem:[%s477 + $0xda] sm:$0xff]
  %v1543 = vld [vmem:[%s477 + $0xe2] sm:$0xff]
  %v1544 = vld [vmem:[%s477 + $0xf2] sm:$0xff]
  %v1545 = vld [vmem:[%s477 + $0xfa] sm:$0xff]
  %v1546 = vld [vmem:[%s477 + $0x10a] sm:$0xff]
  %v1547 = vld [vmem:[%s477 + $0x112] sm:$0xff]
  %v1548 = vld [vmem:[%s477 + $0x122] sm:$0xff]
  %v1549 = vld [vmem:[%s477 + $0x12a] sm:$0xff]
  %v1550 = vld [vmem:[%s477 + $0x13a] sm:$0xff]
  %v1551 = vld [vmem:[%s477 + $0x142] sm:$0xff]
  %v1552 = vld [vmem:[%s477 + $0x152] sm:$0xff]
  %v1553 = vld [vmem:[%s477 + $0x15a] sm:$0xff]
  %v1554 = vld [vmem:[%s477 + $0x16a] sm:$0xff]
  %v1555 = vld [vmem:[%s477 + $0x172] sm:$0xff]
  %v1556 = vld [vmem:[%s477 + $0x182] sm:$0xff]
  %v1557 = vld [vmem:[%s477 + $0x18a] sm:$0xff]
  %v1558 = vld [vmem:[%s477 + $0x19a] sm:$0xff]
  %v1559 = vld [vmem:[%s477 + $0x1a2] sm:$0xff]
  %v1560 = vld [vmem:[%s477 + $0x1b2] sm:$0xff]
  %v1561 = vld [vmem:[%s477 + $0x1ba] sm:$0xff]
  %v1562 = vld [vmem:[%s477 + $0x1ca] sm:$0xff]
  %v1563 = vld [vmem:[%s477 + $0x1d2] sm:$0xff]
  %v1564 = vld [vmem:[%s477 + $0x1e2] sm:$0xff]
  %v1565 = vld [vmem:[%s477 + $0x1ea] sm:$0xff]
  %v1566 = vld [vmem:[%s477 + $0x1fa] sm:$0xff]
  %v1567 = vld [vmem:[%s477 + $0x202] sm:$0xff]
  %v1568 = vld [vmem:[%s477 + $0x212] sm:$0xff]
  %v1569 = vld [vmem:[%s477 + $0x21a] sm:$0xff]
  %v1570 = vld [vmem:[%s477 + $0x22a] sm:$0xff]
  %v1571 = vld [vmem:[%s477 + $0x232] sm:$0xff]
  %v1572 = vld [vmem:[%s477 + $0x242] sm:$0xff]
  %v1573 = vld [vmem:[%s477 + $0x24a] sm:$0xff]
  %v1574 = vld [vmem:[%s477 + $0x25a] sm:$0xff]
  %v1575 = vld [vmem:[%s477 + $0x262] sm:$0xff]
  %v1576 = vld [vmem:[%s477 + $0x272] sm:$0xff]
  %v1577 = vld [vmem:[%s477 + $0x27a] sm:$0xff]
  %v1578 = vld [vmem:[%s477 + $0x28a] sm:$0xff]
  %v1579 = vld [vmem:[%s477 + $0x292] sm:$0xff]
  %v1580 = vld [vmem:[%s477 + $0x2a2] sm:$0xff]
  %v1581 = vld [vmem:[%s477 + $0x2aa] sm:$0xff]
  %v1582 = vld [vmem:[%s477 + $0x2ba] sm:$0xff]
  %v1583 = vld [vmem:[%s477 + $0x2c2] sm:$0xff]
  %v1584 = vld [vmem:[%s477 + $0x2d2] sm:$0xff]
  %v1585 = vld [vmem:[%s477 + $0x2da] sm:$0xff]
  %v1586 = vld [vmem:[%s477 + $0x2ea] sm:$0xff]
  %v1587 = vld [vmem:[%s477 + $0x2f2] sm:$0xff]
  %v1588 = vlaneseq
  %v1589 = vshrl.u32 %v1588, 7
  %v1590 = vsub.s32 5, %v1589
  %v1591 = vrot.slane %v542, %v1590
  %v1592 = vmul.f32 %v1524, %v1591
  %v1593 = vmul.f32 %v1525, %v1591
  %v1594 = vmul.f32 %v1526, %v1591
  %v1595 = vmul.f32 %v1527, %v1591
  %v1596 = vmul.f32 %v1528, %v1591
  %v1597 = vmul.f32 %v1529, %v1591
  %v1598 = vmul.f32 %v1530, %v1591
  %v1599 = vmul.f32 %v1531, %v1591
  %v1600 = vmul.f32 %v1532, %v1591
  %v1601 = vmul.f32 %v1533, %v1591
  %v1602 = vmul.f32 %v1534, %v1591
  %v1603 = vmul.f32 %v1535, %v1591
  %v1604 = vmul.f32 %v1536, %v1591
  %v1605 = vmul.f32 %v1537, %v1591
  %v1606 = vmul.f32 %v1538, %v1591
  %v1607 = vmul.f32 %v1539, %v1591
  %v1608 = vmul.f32 %v1540, %v1591
  %v1609 = vmul.f32 %v1541, %v1591
  %v1610 = vmul.f32 %v1542, %v1591
  %v1611 = vmul.f32 %v1543, %v1591
  %v1612 = vmul.f32 %v1544, %v1591
  %v1613 = vmul.f32 %v1545, %v1591
  %v1614 = vmul.f32 %v1546, %v1591
  %v1615 = vmul.f32 %v1547, %v1591
  %v1616 = vmul.f32 %v1548, %v1591
  %v1617 = vmul.f32 %v1549, %v1591
  %v1618 = vmul.f32 %v1550, %v1591
  %v1619 = vmul.f32 %v1551, %v1591
  %v1620 = vmul.f32 %v1552, %v1591
  %v1621 = vmul.f32 %v1553, %v1591
  %v1622 = vmul.f32 %v1554, %v1591
  %v1623 = vmul.f32 %v1555, %v1591
  %v1624 = vmul.f32 %v1556, %v1591
  %v1625 = vmul.f32 %v1557, %v1591
  %v1626 = vmul.f32 %v1558, %v1591
  %v1627 = vmul.f32 %v1559, %v1591
  %v1628 = vmul.f32 %v1560, %v1591
  %v1629 = vmul.f32 %v1561, %v1591
  %v1630 = vmul.f32 %v1562, %v1591
  %v1631 = vmul.f32 %v1563, %v1591
  %v1632 = vmul.f32 %v1564, %v1591
  %v1633 = vmul.f32 %v1565, %v1591
  %v1634 = vmul.f32 %v1566, %v1591
  %v1635 = vmul.f32 %v1567, %v1591
  %v1636 = vmul.f32 %v1568, %v1591
  %v1637 = vmul.f32 %v1569, %v1591
  %v1638 = vmul.f32 %v1570, %v1591
  %v1639 = vmul.f32 %v1571, %v1591
  %v1640 = vmul.f32 %v1572, %v1591
  %v1641 = vmul.f32 %v1573, %v1591
  %v1642 = vmul.f32 %v1574, %v1591
  %v1643 = vmul.f32 %v1575, %v1591
  %v1644 = vmul.f32 %v1576, %v1591
  %v1645 = vmul.f32 %v1577, %v1591
  %v1646 = vmul.f32 %v1578, %v1591
  %v1647 = vmul.f32 %v1579, %v1591
  %v1648 = vmul.f32 %v1580, %v1591
  %v1649 = vmul.f32 %v1581, %v1591
  %v1650 = vmul.f32 %v1582, %v1591
  %v1651 = vmul.f32 %v1583, %v1591
  %v1652 = vmul.f32 %v1584, %v1591
  %v1653 = vmul.f32 %v1585, %v1591
  %v1654 = vmul.f32 %v1586, %v1591
  %v1655 = vmul.f32 %v1587, %v1591
  %v1656 = vadd.f32 %v1460, %v1592
  %v1657 = vadd.f32 %v1461, %v1593
  %v1658 = vadd.f32 %v1462, %v1594
  %v1659 = vadd.f32 %v1463, %v1595
  %v1660 = vadd.f32 %v1464, %v1596
  %v1661 = vadd.f32 %v1465, %v1597
  %v1662 = vadd.f32 %v1466, %v1598
  %v1663 = vadd.f32 %v1467, %v1599
  %v1664 = vadd.f32 %v1468, %v1600
  %v1665 = vadd.f32 %v1469, %v1601
  %v1666 = vadd.f32 %v1470, %v1602
  %v1667 = vadd.f32 %v1471, %v1603
  %v1668 = vadd.f32 %v1472, %v1604
  %v1669 = vadd.f32 %v1473, %v1605
  %v1670 = vadd.f32 %v1474, %v1606
  %v1671 = vadd.f32 %v1475, %v1607
  %v1672 = vadd.f32 %v1476, %v1608
  %v1673 = vadd.f32 %v1477, %v1609
  %v1674 = vadd.f32 %v1478, %v1610
  %v1675 = vadd.f32 %v1479, %v1611
  %v1676 = vadd.f32 %v1480, %v1612
  %v1677 = vadd.f32 %v1481, %v1613
  %v1678 = vadd.f32 %v1482, %v1614
  %v1679 = vadd.f32 %v1483, %v1615
  %v1680 = vadd.f32 %v1484, %v1616
  %v1681 = vadd.f32 %v1485, %v1617
  %v1682 = vadd.f32 %v1486, %v1618
  %v1683 = vadd.f32 %v1487, %v1619
  %v1684 = vadd.f32 %v1488, %v1620
  %v1685 = vadd.f32 %v1489, %v1621
  %v1686 = vadd.f32 %v1490, %v1622
  %v1687 = vadd.f32 %v1491, %v1623
  %v1688 = vadd.f32 %v1492, %v1624
  %v1689 = vadd.f32 %v1493, %v1625
  %v1690 = vadd.f32 %v1494, %v1626
  %v1691 = vadd.f32 %v1495, %v1627
  %v1692 = vadd.f32 %v1496, %v1628
  %v1693 = vadd.f32 %v1497, %v1629
  %v1694 = vadd.f32 %v1498, %v1630
  %v1695 = vadd.f32 %v1499, %v1631
  %v1696 = vadd.f32 %v1500, %v1632
  %v1697 = vadd.f32 %v1501, %v1633
  %v1698 = vadd.f32 %v1502, %v1634
  %v1699 = vadd.f32 %v1503, %v1635
  %v1700 = vadd.f32 %v1504, %v1636
  %v1701 = vadd.f32 %v1505, %v1637
  %v1702 = vadd.f32 %v1506, %v1638
  %v1703 = vadd.f32 %v1507, %v1639
  %v1704 = vadd.f32 %v1508, %v1640
  %v1705 = vadd.f32 %v1509, %v1641
  %v1706 = vadd.f32 %v1510, %v1642
  %v1707 = vadd.f32 %v1511, %v1643
  %v1708 = vadd.f32 %v1512, %v1644
  %v1709 = vadd.f32 %v1513, %v1645
  %v1710 = vadd.f32 %v1514, %v1646
  %v1711 = vadd.f32 %v1515, %v1647
  %v1712 = vadd.f32 %v1516, %v1648
  %v1713 = vadd.f32 %v1517, %v1649
  %v1714 = vadd.f32 %v1518, %v1650
  %v1715 = vadd.f32 %v1519, %v1651
  %v1716 = vadd.f32 %v1520, %v1652
  %v1717 = vadd.f32 %v1521, %v1653
  %v1718 = vadd.f32 %v1522, %v1654
  %v1719 = vadd.f32 %v1523, %v1655
  %s1720 = scalar_lea.vmem [#allocation2], 96
  %v1721 = vld [vmem:[%s1720] sm:$0xff]
  %v1722 = vld [vmem:[%s1720 + $0x8] sm:$0xff]
  %v1723 = vld [vmem:[%s1720 + $0x18] sm:$0xff]
  %v1724 = vld [vmem:[%s1720 + $0x20] sm:$0xff]
  %v1725 = vld [vmem:[%s1720 + $0x30] sm:$0xff]
  %v1726 = vld [vmem:[%s1720 + $0x38] sm:$0xff]
  %v1727 = vld [vmem:[%s1720 + $0x48] sm:$0xff]
  %v1728 = vld [vmem:[%s1720 + $0x50] sm:$0xff]
  %v1729 = vld [vmem:[%s1720 + $0x60] sm:$0xff]
  %v1730 = vld [vmem:[%s1720 + $0x68] sm:$0xff]
  %v1731 = vld [vmem:[%s1720 + $0x78] sm:$0xff]
  %v1732 = vld [vmem:[%s1720 + $0x80] sm:$0xff]
  %v1733 = vld [vmem:[%s1720 + $0x90] sm:$0xff]
  %v1734 = vld [vmem:[%s1720 + $0x98] sm:$0xff]
  %v1735 = vld [vmem:[%s1720 + $0xa8] sm:$0xff]
  %v1736 = vld [vmem:[%s1720 + $0xb0] sm:$0xff]
  %v1737 = vld [vmem:[%s1720 + $0xc0] sm:$0xff]
  %v1738 = vld [vmem:[%s1720 + $0xc8] sm:$0xff]
  %v1739 = vld [vmem:[%s1720 + $0xd8] sm:$0xff]
  %v1740 = vld [vmem:[%s1720 + $0xe0] sm:$0xff]
  %v1741 = vld [vmem:[%s1720 + $0xf0] sm:$0xff]
  %v1742 = vld [vmem:[%s1720 + $0xf8] sm:$0xff]
  %v1743 = vld [vmem:[%s1720 + $0x108] sm:$0xff]
  %v1744 = vld [vmem:[%s1720 + $0x110] sm:$0xff]
  %v1745 = vld [vmem:[%s1720 + $0x120] sm:$0xff]
  %v1746 = vld [vmem:[%s1720 + $0x128] sm:$0xff]
  %v1747 = vld [vmem:[%s1720 + $0x138] sm:$0xff]
  %v1748 = vld [vmem:[%s1720 + $0x140] sm:$0xff]
  %v1749 = vld [vmem:[%s1720 + $0x150] sm:$0xff]
  %v1750 = vld [vmem:[%s1720 + $0x158] sm:$0xff]
  %v1751 = vld [vmem:[%s1720 + $0x168] sm:$0xff]
  %v1752 = vld [vmem:[%s1720 + $0x170] sm:$0xff]
  %v1753 = vld [vmem:[%s1720 + $0x180] sm:$0xff]
  %v1754 = vld [vmem:[%s1720 + $0x188] sm:$0xff]
  %v1755 = vld [vmem:[%s1720 + $0x198] sm:$0xff]
  %v1756 = vld [vmem:[%s1720 + $0x1a0] sm:$0xff]
  %v1757 = vld [vmem:[%s1720 + $0x1b0] sm:$0xff]
  %v1758 = vld [vmem:[%s1720 + $0x1b8] sm:$0xff]
  %v1759 = vld [vmem:[%s1720 + $0x1c8] sm:$0xff]
  %v1760 = vld [vmem:[%s1720 + $0x1d0] sm:$0xff]
  %v1761 = vld [vmem:[%s1720 + $0x1e0] sm:$0xff]
  %v1762 = vld [vmem:[%s1720 + $0x1e8] sm:$0xff]
  %v1763 = vld [vmem:[%s1720 + $0x1f8] sm:$0xff]
  %v1764 = vld [vmem:[%s1720 + $0x200] sm:$0xff]
  %v1765 = vld [vmem:[%s1720 + $0x210] sm:$0xff]
  %v1766 = vld [vmem:[%s1720 + $0x218] sm:$0xff]
  %v1767 = vld [vmem:[%s1720 + $0x228] sm:$0xff]
  %v1768 = vld [vmem:[%s1720 + $0x230] sm:$0xff]
  %v1769 = vld [vmem:[%s1720 + $0x240] sm:$0xff]
  %v1770 = vld [vmem:[%s1720 + $0x248] sm:$0xff]
  %v1771 = vld [vmem:[%s1720 + $0x258] sm:$0xff]
  %v1772 = vld [vmem:[%s1720 + $0x260] sm:$0xff]
  %v1773 = vld [vmem:[%s1720 + $0x270] sm:$0xff]
  %v1774 = vld [vmem:[%s1720 + $0x278] sm:$0xff]
  %v1775 = vld [vmem:[%s1720 + $0x288] sm:$0xff]
  %v1776 = vld [vmem:[%s1720 + $0x290] sm:$0xff]
  %v1777 = vld [vmem:[%s1720 + $0x2a0] sm:$0xff]
  %v1778 = vld [vmem:[%s1720 + $0x2a8] sm:$0xff]
  %v1779 = vld [vmem:[%s1720 + $0x2b8] sm:$0xff]
  %v1780 = vld [vmem:[%s1720 + $0x2c0] sm:$0xff]
  %v1781 = vld [vmem:[%s1720 + $0x2d0] sm:$0xff]
  %v1782 = vld [vmem:[%s1720 + $0x2d8] sm:$0xff]
  %v1783 = vld [vmem:[%s1720 + $0x2e8] sm:$0xff]
  %v1784 = vld [vmem:[%s1720 + $0x2f0] sm:$0xff]
  %v1785 = vlaneseq
  %v1786 = vshrl.u32 %v1785, 7
  %v1787 = vsub.s32 6, %v1786
  %v1788 = vrot.slane %v542, %v1787
  %v1789 = vmul.f32 %v1721, %v1788
  %v1790 = vmul.f32 %v1722, %v1788
  %v1791 = vmul.f32 %v1723, %v1788
  %v1792 = vmul.f32 %v1724, %v1788
  %v1793 = vmul.f32 %v1725, %v1788
  %v1794 = vmul.f32 %v1726, %v1788
  %v1795 = vmul.f32 %v1727, %v1788
  %v1796 = vmul.f32 %v1728, %v1788
  %v1797 = vmul.f32 %v1729, %v1788
  %v1798 = vmul.f32 %v1730, %v1788
  %v1799 = vmul.f32 %v1731, %v1788
  %v1800 = vmul.f32 %v1732, %v1788
  %v1801 = vmul.f32 %v1733, %v1788
  %v1802 = vmul.f32 %v1734, %v1788
  %v1803 = vmul.f32 %v1735, %v1788
  %v1804 = vmul.f32 %v1736, %v1788
  %v1805 = vmul.f32 %v1737, %v1788
  %v1806 = vmul.f32 %v1738, %v1788
  %v1807 = vmul.f32 %v1739, %v1788
  %v1808 = vmul.f32 %v1740, %v1788
  %v1809 = vmul.f32 %v1741, %v1788
  %v1810 = vmul.f32 %v1742, %v1788
  %v1811 = vmul.f32 %v1743, %v1788
  %v1812 = vmul.f32 %v1744, %v1788
  %v1813 = vmul.f32 %v1745, %v1788
  %v1814 = vmul.f32 %v1746, %v1788
  %v1815 = vmul.f32 %v1747, %v1788
  %v1816 = vmul.f32 %v1748, %v1788
  %v1817 = vmul.f32 %v1749, %v1788
  %v1818 = vmul.f32 %v1750, %v1788
  %v1819 = vmul.f32 %v1751, %v1788
  %v1820 = vmul.f32 %v1752, %v1788
  %v1821 = vmul.f32 %v1753, %v1788
  %v1822 = vmul.f32 %v1754, %v1788
  %v1823 = vmul.f32 %v1755, %v1788
  %v1824 = vmul.f32 %v1756, %v1788
  %v1825 = vmul.f32 %v1757, %v1788
  %v1826 = vmul.f32 %v1758, %v1788
  %v1827 = vmul.f32 %v1759, %v1788
  %v1828 = vmul.f32 %v1760, %v1788
  %v1829 = vmul.f32 %v1761, %v1788
  %v1830 = vmul.f32 %v1762, %v1788
  %v1831 = vmul.f32 %v1763, %v1788
  %v1832 = vmul.f32 %v1764, %v1788
  %v1833 = vmul.f32 %v1765, %v1788
  %v1834 = vmul.f32 %v1766, %v1788
  %v1835 = vmul.f32 %v1767, %v1788
  %v1836 = vmul.f32 %v1768, %v1788
  %v1837 = vmul.f32 %v1769, %v1788
  %v1838 = vmul.f32 %v1770, %v1788
  %v1839 = vmul.f32 %v1771, %v1788
  %v1840 = vmul.f32 %v1772, %v1788
  %v1841 = vmul.f32 %v1773, %v1788
  %v1842 = vmul.f32 %v1774, %v1788
  %v1843 = vmul.f32 %v1775, %v1788
  %v1844 = vmul.f32 %v1776, %v1788
  %v1845 = vmul.f32 %v1777, %v1788
  %v1846 = vmul.f32 %v1778, %v1788
  %v1847 = vmul.f32 %v1779, %v1788
  %v1848 = vmul.f32 %v1780, %v1788
  %v1849 = vmul.f32 %v1781, %v1788
  %v1850 = vmul.f32 %v1782, %v1788
  %v1851 = vmul.f32 %v1783, %v1788
  %v1852 = vmul.f32 %v1784, %v1788
  %v1853 = vadd.f32 %v1656, %v1789
  %v1854 = vadd.f32 %v1657, %v1790
  %v1855 = vadd.f32 %v1658, %v1791
  %v1856 = vadd.f32 %v1659, %v1792
  %v1857 = vadd.f32 %v1660, %v1793
  %v1858 = vadd.f32 %v1661, %v1794
  %v1859 = vadd.f32 %v1662, %v1795
  %v1860 = vadd.f32 %v1663, %v1796
  %v1861 = vadd.f32 %v1664, %v1797
  %v1862 = vadd.f32 %v1665, %v1798
  %v1863 = vadd.f32 %v1666, %v1799
  %v1864 = vadd.f32 %v1667, %v1800
  %v1865 = vadd.f32 %v1668, %v1801
  %v1866 = vadd.f32 %v1669, %v1802
  %v1867 = vadd.f32 %v1670, %v1803
  %v1868 = vadd.f32 %v1671, %v1804
  %v1869 = vadd.f32 %v1672, %v1805
  %v1870 = vadd.f32 %v1673, %v1806
  %v1871 = vadd.f32 %v1674, %v1807
  %v1872 = vadd.f32 %v1675, %v1808
  %v1873 = vadd.f32 %v1676, %v1809
  %v1874 = vadd.f32 %v1677, %v1810
  %v1875 = vadd.f32 %v1678, %v1811
  %v1876 = vadd.f32 %v1679, %v1812
  %v1877 = vadd.f32 %v1680, %v1813
  %v1878 = vadd.f32 %v1681, %v1814
  %v1879 = vadd.f32 %v1682, %v1815
  %v1880 = vadd.f32 %v1683, %v1816
  %v1881 = vadd.f32 %v1684, %v1817
  %v1882 = vadd.f32 %v1685, %v1818
  %v1883 = vadd.f32 %v1686, %v1819
  %v1884 = vadd.f32 %v1687, %v1820
  %v1885 = vadd.f32 %v1688, %v1821
  %v1886 = vadd.f32 %v1689, %v1822
  %v1887 = vadd.f32 %v1690, %v1823
  %v1888 = vadd.f32 %v1691, %v1824
  %v1889 = vadd.f32 %v1692, %v1825
  %v1890 = vadd.f32 %v1693, %v1826
  %v1891 = vadd.f32 %v1694, %v1827
  %v1892 = vadd.f32 %v1695, %v1828
  %v1893 = vadd.f32 %v1696, %v1829
  %v1894 = vadd.f32 %v1697, %v1830
  %v1895 = vadd.f32 %v1698, %v1831
  %v1896 = vadd.f32 %v1699, %v1832
  %v1897 = vadd.f32 %v1700, %v1833
  %v1898 = vadd.f32 %v1701, %v1834
  %v1899 = vadd.f32 %v1702, %v1835
  %v1900 = vadd.f32 %v1703, %v1836
  %v1901 = vadd.f32 %v1704, %v1837
  %v1902 = vadd.f32 %v1705, %v1838
  %v1903 = vadd.f32 %v1706, %v1839
  %v1904 = vadd.f32 %v1707, %v1840
  %v1905 = vadd.f32 %v1708, %v1841
  %v1906 = vadd.f32 %v1709, %v1842
  %v1907 = vadd.f32 %v1710, %v1843
  %v1908 = vadd.f32 %v1711, %v1844
  %v1909 = vadd.f32 %v1712, %v1845
  %v1910 = vadd.f32 %v1713, %v1846
  %v1911 = vadd.f32 %v1714, %v1847
  %v1912 = vadd.f32 %v1715, %v1848
  %v1913 = vadd.f32 %v1716, %v1849
  %v1914 = vadd.f32 %v1717, %v1850
  %v1915 = vadd.f32 %v1718, %v1851
  %v1916 = vadd.f32 %v1719, %v1852
  %v1917 = vld [vmem:[%s1720 + $0x1] sm:$0xff]
  %v1918 = vld [vmem:[%s1720 + $0x9] sm:$0xff]
  %v1919 = vld [vmem:[%s1720 + $0x19] sm:$0xff]
  %v1920 = vld [vmem:[%s1720 + $0x21] sm:$0xff]
  %v1921 = vld [vmem:[%s1720 + $0x31] sm:$0xff]
  %v1922 = vld [vmem:[%s1720 + $0x39] sm:$0xff]
  %v1923 = vld [vmem:[%s1720 + $0x49] sm:$0xff]
  %v1924 = vld [vmem:[%s1720 + $0x51] sm:$0xff]
  %v1925 = vld [vmem:[%s1720 + $0x61] sm:$0xff]
  %v1926 = vld [vmem:[%s1720 + $0x69] sm:$0xff]
  %v1927 = vld [vmem:[%s1720 + $0x79] sm:$0xff]
  %v1928 = vld [vmem:[%s1720 + $0x81] sm:$0xff]
  %v1929 = vld [vmem:[%s1720 + $0x91] sm:$0xff]
  %v1930 = vld [vmem:[%s1720 + $0x99] sm:$0xff]
  %v1931 = vld [vmem:[%s1720 + $0xa9] sm:$0xff]
  %v1932 = vld [vmem:[%s1720 + $0xb1] sm:$0xff]
  %v1933 = vld [vmem:[%s1720 + $0xc1] sm:$0xff]
  %v1934 = vld [vmem:[%s1720 + $0xc9] sm:$0xff]
  %v1935 = vld [vmem:[%s1720 + $0xd9] sm:$0xff]
  %v1936 = vld [vmem:[%s1720 + $0xe1] sm:$0xff]
  %v1937 = vld [vmem:[%s1720 + $0xf1] sm:$0xff]
  %v1938 = vld [vmem:[%s1720 + $0xf9] sm:$0xff]
  %v1939 = vld [vmem:[%s1720 + $0x109] sm:$0xff]
  %v1940 = vld [vmem:[%s1720 + $0x111] sm:$0xff]
  %v1941 = vld [vmem:[%s1720 + $0x121] sm:$0xff]
  %v1942 = vld [vmem:[%s1720 + $0x129] sm:$0xff]
  %v1943 = vld [vmem:[%s1720 + $0x139] sm:$0xff]
  %v1944 = vld [vmem:[%s1720 + $0x141] sm:$0xff]
  %v1945 = vld [vmem:[%s1720 + $0x151] sm:$0xff]
  %v1946 = vld [vmem:[%s1720 + $0x159] sm:$0xff]
  %v1947 = vld [vmem:[%s1720 + $0x169] sm:$0xff]
  %v1948 = vld [vmem:[%s1720 + $0x171] sm:$0xff]
  %v1949 = vld [vmem:[%s1720 + $0x181] sm:$0xff]
  %v1950 = vld [vmem:[%s1720 + $0x189] sm:$0xff]
  %v1951 = vld [vmem:[%s1720 + $0x199] sm:$0xff]
  %v1952 = vld [vmem:[%s1720 + $0x1a1] sm:$0xff]
  %v1953 = vld [vmem:[%s1720 + $0x1b1] sm:$0xff]
  %v1954 = vld [vmem:[%s1720 + $0x1b9] sm:$0xff]
  %v1955 = vld [vmem:[%s1720 + $0x1c9] sm:$0xff]
  %v1956 = vld [vmem:[%s1720 + $0x1d1] sm:$0xff]
  %v1957 = vld [vmem:[%s1720 + $0x1e1] sm:$0xff]
  %v1958 = vld [vmem:[%s1720 + $0x1e9] sm:$0xff]
  %v1959 = vld [vmem:[%s1720 + $0x1f9] sm:$0xff]
  %v1960 = vld [vmem:[%s1720 + $0x201] sm:$0xff]
  %v1961 = vld [vmem:[%s1720 + $0x211] sm:$0xff]
  %v1962 = vld [vmem:[%s1720 + $0x219] sm:$0xff]
  %v1963 = vld [vmem:[%s1720 + $0x229] sm:$0xff]
  %v1964 = vld [vmem:[%s1720 + $0x231] sm:$0xff]
  %v1965 = vld [vmem:[%s1720 + $0x241] sm:$0xff]
  %v1966 = vld [vmem:[%s1720 + $0x249] sm:$0xff]
  %v1967 = vld [vmem:[%s1720 + $0x259] sm:$0xff]
  %v1968 = vld [vmem:[%s1720 + $0x261] sm:$0xff]
  %v1969 = vld [vmem:[%s1720 + $0x271] sm:$0xff]
  %v1970 = vld [vmem:[%s1720 + $0x279] sm:$0xff]
  %v1971 = vld [vmem:[%s1720 + $0x289] sm:$0xff]
  %v1972 = vld [vmem:[%s1720 + $0x291] sm:$0xff]
  %v1973 = vld [vmem:[%s1720 + $0x2a1] sm:$0xff]
  %v1974 = vld [vmem:[%s1720 + $0x2a9] sm:$0xff]
  %v1975 = vld [vmem:[%s1720 + $0x2b9] sm:$0xff]
  %v1976 = vld [vmem:[%s1720 + $0x2c1] sm:$0xff]
  %v1977 = vld [vmem:[%s1720 + $0x2d1] sm:$0xff]
  %v1978 = vld [vmem:[%s1720 + $0x2d9] sm:$0xff]
  %v1979 = vld [vmem:[%s1720 + $0x2e9] sm:$0xff]
  %v1980 = vld [vmem:[%s1720 + $0x2f1] sm:$0xff]
  %v1981 = vlaneseq
  %v1982 = vshrl.u32 %v1981, 7
  %v1983 = vsub.s32 7, %v1982
  %v1984 = vrot.slane %v542, %v1983
  %v1985 = vmul.f32 %v1917, %v1984
  %v1986 = vmul.f32 %v1918, %v1984
  %v1987 = vmul.f32 %v1919, %v1984
  %v1988 = vmul.f32 %v1920, %v1984
  %v1989 = vmul.f32 %v1921, %v1984
  %v1990 = vmul.f32 %v1922, %v1984
  %v1991 = vmul.f32 %v1923, %v1984
  %v1992 = vmul.f32 %v1924, %v1984
  %v1993 = vmul.f32 %v1925, %v1984
  %v1994 = vmul.f32 %v1926, %v1984
  %v1995 = vmul.f32 %v1927, %v1984
  %v1996 = vmul.f32 %v1928, %v1984
  %v1997 = vmul.f32 %v1929, %v1984
  %v1998 = vmul.f32 %v1930, %v1984
  %v1999 = vmul.f32 %v1931, %v1984
  %v2000 = vmul.f32 %v1932, %v1984
  %v2001 = vmul.f32 %v1933, %v1984
  %v2002 = vmul.f32 %v1934, %v1984
  %v2003 = vmul.f32 %v1935, %v1984
  %v2004 = vmul.f32 %v1936, %v1984
  %v2005 = vmul.f32 %v1937, %v1984
  %v2006 = vmul.f32 %v1938, %v1984
  %v2007 = vmul.f32 %v1939, %v1984
  %v2008 = vmul.f32 %v1940, %v1984
  %v2009 = vmul.f32 %v1941, %v1984
  %v2010 = vmul.f32 %v1942, %v1984
  %v2011 = vmul.f32 %v1943, %v1984
  %v2012 = vmul.f32 %v1944, %v1984
  %v2013 = vmul.f32 %v1945, %v1984
  %v2014 = vmul.f32 %v1946, %v1984
  %v2015 = vmul.f32 %v1947, %v1984
  %v2016 = vmul.f32 %v1948, %v1984
  %v2017 = vmul.f32 %v1949, %v1984
  %v2018 = vmul.f32 %v1950, %v1984
  %v2019 = vmul.f32 %v1951, %v1984
  %v2020 = vmul.f32 %v1952, %v1984
  %v2021 = vmul.f32 %v1953, %v1984
  %v2022 = vmul.f32 %v1954, %v1984
  %v2023 = vmul.f32 %v1955, %v1984
  %v2024 = vmul.f32 %v1956, %v1984
  %v2025 = vmul.f32 %v1957, %v1984
  %v2026 = vmul.f32 %v1958, %v1984
  %v2027 = vmul.f32 %v1959, %v1984
  %v2028 = vmul.f32 %v1960, %v1984
  %v2029 = vmul.f32 %v1961, %v1984
  %v2030 = vmul.f32 %v1962, %v1984
  %v2031 = vmul.f32 %v1963, %v1984
  %v2032 = vmul.f32 %v1964, %v1984
  %v2033 = vmul.f32 %v1965, %v1984
  %v2034 = vmul.f32 %v1966, %v1984
  %v2035 = vmul.f32 %v1967, %v1984
  %v2036 = vmul.f32 %v1968, %v1984
  %v2037 = vmul.f32 %v1969, %v1984
  %v2038 = vmul.f32 %v1970, %v1984
  %v2039 = vmul.f32 %v1971, %v1984
  %v2040 = vmul.f32 %v1972, %v1984
  %v2041 = vmul.f32 %v1973, %v1984
  %v2042 = vmul.f32 %v1974, %v1984
  %v2043 = vmul.f32 %v1975, %v1984
  %v2044 = vmul.f32 %v1976, %v1984
  %v2045 = vmul.f32 %v1977, %v1984
  %v2046 = vmul.f32 %v1978, %v1984
  %v2047 = vmul.f32 %v1979, %v1984
  %v2048 = vmul.f32 %v1980, %v1984
  %v2049 = vadd.f32 %v1853, %v1985
  %v2050 = vadd.f32 %v1854, %v1986
  %v2051 = vadd.f32 %v1855, %v1987
  %v2052 = vadd.f32 %v1856, %v1988
  %v2053 = vadd.f32 %v1857, %v1989
  %v2054 = vadd.f32 %v1858, %v1990
  %v2055 = vadd.f32 %v1859, %v1991
  %v2056 = vadd.f32 %v1860, %v1992
  %v2057 = vadd.f32 %v1861, %v1993
  %v2058 = vadd.f32 %v1862, %v1994
  %v2059 = vadd.f32 %v1863, %v1995
  %v2060 = vadd.f32 %v1864, %v1996
  %v2061 = vadd.f32 %v1865, %v1997
  %v2062 = vadd.f32 %v1866, %v1998
  %v2063 = vadd.f32 %v1867, %v1999
  %v2064 = vadd.f32 %v1868, %v2000
  %v2065 = vadd.f32 %v1869, %v2001
  %v2066 = vadd.f32 %v1870, %v2002
  %v2067 = vadd.f32 %v1871, %v2003
  %v2068 = vadd.f32 %v1872, %v2004
  %v2069 = vadd.f32 %v1873, %v2005
  %v2070 = vadd.f32 %v1874, %v2006
  %v2071 = vadd.f32 %v1875, %v2007
  %v2072 = vadd.f32 %v1876, %v2008
  %v2073 = vadd.f32 %v1877, %v2009
  %v2074 = vadd.f32 %v1878, %v2010
  %v2075 = vadd.f32 %v1879, %v2011
  %v2076 = vadd.f32 %v1880, %v2012
  %v2077 = vadd.f32 %v1881, %v2013
  %v2078 = vadd.f32 %v1882, %v2014
  %v2079 = vadd.f32 %v1883, %v2015
  %v2080 = vadd.f32 %v1884, %v2016
  %v2081 = vadd.f32 %v1885, %v2017
  %v2082 = vadd.f32 %v1886, %v2018
  %v2083 = vadd.f32 %v1887, %v2019
  %v2084 = vadd.f32 %v1888, %v2020
  %v2085 = vadd.f32 %v1889, %v2021
  %v2086 = vadd.f32 %v1890, %v2022
  %v2087 = vadd.f32 %v1891, %v2023
  %v2088 = vadd.f32 %v1892, %v2024
  %v2089 = vadd.f32 %v1893, %v2025
  %v2090 = vadd.f32 %v1894, %v2026
  %v2091 = vadd.f32 %v1895, %v2027
  %v2092 = vadd.f32 %v1896, %v2028
  %v2093 = vadd.f32 %v1897, %v2029
  %v2094 = vadd.f32 %v1898, %v2030
  %v2095 = vadd.f32 %v1899, %v2031
  %v2096 = vadd.f32 %v1900, %v2032
  %v2097 = vadd.f32 %v1901, %v2033
  %v2098 = vadd.f32 %v1902, %v2034
  %v2099 = vadd.f32 %v1903, %v2035
  %v2100 = vadd.f32 %v1904, %v2036
  %v2101 = vadd.f32 %v1905, %v2037
  %v2102 = vadd.f32 %v1906, %v2038
  %v2103 = vadd.f32 %v1907, %v2039
  %v2104 = vadd.f32 %v1908, %v2040
  %v2105 = vadd.f32 %v1909, %v2041
  %v2106 = vadd.f32 %v1910, %v2042
  %v2107 = vadd.f32 %v1911, %v2043
  %v2108 = vadd.f32 %v1912, %v2044
  %v2109 = vadd.f32 %v1913, %v2045
  %v2110 = vadd.f32 %v1914, %v2046
  %v2111 = vadd.f32 %v1915, %v2047
  %v2112 = vadd.f32 %v1916, %v2048
  %v2113 = vld [vmem:[%s1720 + $0x2] sm:$0xff]
  %v2114 = vld [vmem:[%s1720 + $0xa] sm:$0xff]
  %v2115 = vld [vmem:[%s1720 + $0x1a] sm:$0xff]
  %v2116 = vld [vmem:[%s1720 + $0x22] sm:$0xff]
  %v2117 = vld [vmem:[%s1720 + $0x32] sm:$0xff]
  %v2118 = vld [vmem:[%s1720 + $0x3a] sm:$0xff]
  %v2119 = vld [vmem:[%s1720 + $0x4a] sm:$0xff]
  %v2120 = vld [vmem:[%s1720 + $0x52] sm:$0xff]
  %v2121 = vld [vmem:[%s1720 + $0x62] sm:$0xff]
  %v2122 = vld [vmem:[%s1720 + $0x6a] sm:$0xff]
  %v2123 = vld [vmem:[%s1720 + $0x7a] sm:$0xff]
  %v2124 = vld [vmem:[%s1720 + $0x82] sm:$0xff]
  %v2125 = vld [vmem:[%s1720 + $0x92] sm:$0xff]
  %v2126 = vld [vmem:[%s1720 + $0x9a] sm:$0xff]
  %v2127 = vld [vmem:[%s1720 + $0xaa] sm:$0xff]
  %v2128 = vld [vmem:[%s1720 + $0xb2] sm:$0xff]
  %v2129 = vld [vmem:[%s1720 + $0xc2] sm:$0xff]
  %v2130 = vld [vmem:[%s1720 + $0xca] sm:$0xff]
  %v2131 = vld [vmem:[%s1720 + $0xda] sm:$0xff]
  %v2132 = vld [vmem:[%s1720 + $0xe2] sm:$0xff]
  %v2133 = vld [vmem:[%s1720 + $0xf2] sm:$0xff]
  %v2134 = vld [vmem:[%s1720 + $0xfa] sm:$0xff]
  %v2135 = vld [vmem:[%s1720 + $0x10a] sm:$0xff]
  %v2136 = vld [vmem:[%s1720 + $0x112] sm:$0xff]
  %v2137 = vld [vmem:[%s1720 + $0x122] sm:$0xff]
  %v2138 = vld [vmem:[%s1720 + $0x12a] sm:$0xff]
  %v2139 = vld [vmem:[%s1720 + $0x13a] sm:$0xff]
  %v2140 = vld [vmem:[%s1720 + $0x142] sm:$0xff]
  %v2141 = vld [vmem:[%s1720 + $0x152] sm:$0xff]
  %v2142 = vld [vmem:[%s1720 + $0x15a] sm:$0xff]
  %v2143 = vld [vmem:[%s1720 + $0x16a] sm:$0xff]
  %v2144 = vld [vmem:[%s1720 + $0x172] sm:$0xff]
  %v2145 = vld [vmem:[%s1720 + $0x182] sm:$0xff]
  %v2146 = vld [vmem:[%s1720 + $0x18a] sm:$0xff]
  %v2147 = vld [vmem:[%s1720 + $0x19a] sm:$0xff]
  %v2148 = vld [vmem:[%s1720 + $0x1a2] sm:$0xff]
  %v2149 = vld [vmem:[%s1720 + $0x1b2] sm:$0xff]
  %v2150 = vld [vmem:[%s1720 + $0x1ba] sm:$0xff]
  %v2151 = vld [vmem:[%s1720 + $0x1ca] sm:$0xff]
  %v2152 = vld [vmem:[%s1720 + $0x1d2] sm:$0xff]
  %v2153 = vld [vmem:[%s1720 + $0x1e2] sm:$0xff]
  %v2154 = vld [vmem:[%s1720 + $0x1ea] sm:$0xff]
  %v2155 = vld [vmem:[%s1720 + $0x1fa] sm:$0xff]
  %v2156 = vld [vmem:[%s1720 + $0x202] sm:$0xff]
  %v2157 = vld [vmem:[%s1720 + $0x212] sm:$0xff]
  %v2158 = vld [vmem:[%s1720 + $0x21a] sm:$0xff]
  %v2159 = vld [vmem:[%s1720 + $0x22a] sm:$0xff]
  %v2160 = vld [vmem:[%s1720 + $0x232] sm:$0xff]
  %v2161 = vld [vmem:[%s1720 + $0x242] sm:$0xff]
  %v2162 = vld [vmem:[%s1720 + $0x24a] sm:$0xff]
  %v2163 = vld [vmem:[%s1720 + $0x25a] sm:$0xff]
  %v2164 = vld [vmem:[%s1720 + $0x262] sm:$0xff]
  %v2165 = vld [vmem:[%s1720 + $0x272] sm:$0xff]
  %v2166 = vld [vmem:[%s1720 + $0x27a] sm:$0xff]
  %v2167 = vld [vmem:[%s1720 + $0x28a] sm:$0xff]
  %v2168 = vld [vmem:[%s1720 + $0x292] sm:$0xff]
  %v2169 = vld [vmem:[%s1720 + $0x2a2] sm:$0xff]
  %v2170 = vld [vmem:[%s1720 + $0x2aa] sm:$0xff]
  %v2171 = vld [vmem:[%s1720 + $0x2ba] sm:$0xff]
  %v2172 = vld [vmem:[%s1720 + $0x2c2] sm:$0xff]
  %v2173 = vld [vmem:[%s1720 + $0x2d2] sm:$0xff]
  %v2174 = vld [vmem:[%s1720 + $0x2da] sm:$0xff]
  %v2175 = vld [vmem:[%s1720 + $0x2ea] sm:$0xff]
  %v2176 = vld [vmem:[%s1720 + $0x2f2] sm:$0xff]
  %v2177 = vlaneseq
  %v2178 = vshrl.u32 %v2177, 7
  %v2179 = vsub.s32 0, %v2178
  %v2180 = vrot.slane %v543, %v2179
  %v2181 = vmul.f32 %v2113, %v2180
  %v2182 = vmul.f32 %v2114, %v2180
  %v2183 = vmul.f32 %v2115, %v2180
  %v2184 = vmul.f32 %v2116, %v2180
  %v2185 = vmul.f32 %v2117, %v2180
  %v2186 = vmul.f32 %v2118, %v2180
  %v2187 = vmul.f32 %v2119, %v2180
  %v2188 = vmul.f32 %v2120, %v2180
  %v2189 = vmul.f32 %v2121, %v2180
  %v2190 = vmul.f32 %v2122, %v2180
  %v2191 = vmul.f32 %v2123, %v2180
  %v2192 = vmul.f32 %v2124, %v2180
  %v2193 = vmul.f32 %v2125, %v2180
  %v2194 = vmul.f32 %v2126, %v2180
  %v2195 = vmul.f32 %v2127, %v2180
  %v2196 = vmul.f32 %v2128, %v2180
  %v2197 = vmul.f32 %v2129, %v2180
  %v2198 = vmul.f32 %v2130, %v2180
  %v2199 = vmul.f32 %v2131, %v2180
  %v2200 = vmul.f32 %v2132, %v2180
  %v2201 = vmul.f32 %v2133, %v2180
  %v2202 = vmul.f32 %v2134, %v2180
  %v2203 = vmul.f32 %v2135, %v2180
  %v2204 = vmul.f32 %v2136, %v2180
  %v2205 = vmul.f32 %v2137, %v2180
  %v2206 = vmul.f32 %v2138, %v2180
  %v2207 = vmul.f32 %v2139, %v2180
  %v2208 = vmul.f32 %v2140, %v2180
  %v2209 = vmul.f32 %v2141, %v2180
  %v2210 = vmul.f32 %v2142, %v2180
  %v2211 = vmul.f32 %v2143, %v2180
  %v2212 = vmul.f32 %v2144, %v2180
  %v2213 = vmul.f32 %v2145, %v2180
  %v2214 = vmul.f32 %v2146, %v2180
  %v2215 = vmul.f32 %v2147, %v2180
  %v2216 = vmul.f32 %v2148, %v2180
  %v2217 = vmul.f32 %v2149, %v2180
  %v2218 = vmul.f32 %v2150, %v2180
  %v2219 = vmul.f32 %v2151, %v2180
  %v2220 = vmul.f32 %v2152, %v2180
  %v2221 = vmul.f32 %v2153, %v2180
  %v2222 = vmul.f32 %v2154, %v2180
  %v2223 = vmul.f32 %v2155, %v2180
  %v2224 = vmul.f32 %v2156, %v2180
  %v2225 = vmul.f32 %v2157, %v2180
  %v2226 = vmul.f32 %v2158, %v2180
  %v2227 = vmul.f32 %v2159, %v2180
  %v2228 = vmul.f32 %v2160, %v2180
  %v2229 = vmul.f32 %v2161, %v2180
  %v2230 = vmul.f32 %v2162, %v2180
  %v2231 = vmul.f32 %v2163, %v2180
  %v2232 = vmul.f32 %v2164, %v2180
  %v2233 = vmul.f32 %v2165, %v2180
  %v2234 = vmul.f32 %v2166, %v2180
  %v2235 = vmul.f32 %v2167, %v2180
  %v2236 = vmul.f32 %v2168, %v2180
  %v2237 = vmul.f32 %v2169, %v2180
  %v2238 = vmul.f32 %v2170, %v2180
  %v2239 = vmul.f32 %v2171, %v2180
  %v2240 = vmul.f32 %v2172, %v2180
  %v2241 = vmul.f32 %v2173, %v2180
  %v2242 = vmul.f32 %v2174, %v2180
  %v2243 = vmul.f32 %v2175, %v2180
  %v2244 = vmul.f32 %v2176, %v2180
  %v2245 = vadd.f32 %v2049, %v2181
  %v2246 = vadd.f32 %v2050, %v2182
  %v2247 = vadd.f32 %v2051, %v2183
  %v2248 = vadd.f32 %v2052, %v2184
  %v2249 = vadd.f32 %v2053, %v2185
  %v2250 = vadd.f32 %v2054, %v2186
  %v2251 = vadd.f32 %v2055, %v2187
  %v2252 = vadd.f32 %v2056, %v2188
  %v2253 = vadd.f32 %v2057, %v2189
  %v2254 = vadd.f32 %v2058, %v2190
  %v2255 = vadd.f32 %v2059, %v2191
  %v2256 = vadd.f32 %v2060, %v2192
  %v2257 = vadd.f32 %v2061, %v2193
  %v2258 = vadd.f32 %v2062, %v2194
  %v2259 = vadd.f32 %v2063, %v2195
  %v2260 = vadd.f32 %v2064, %v2196
  %v2261 = vadd.f32 %v2065, %v2197
  %v2262 = vadd.f32 %v2066, %v2198
  %v2263 = vadd.f32 %v2067, %v2199
  %v2264 = vadd.f32 %v2068, %v2200
  %v2265 = vadd.f32 %v2069, %v2201
  %v2266 = vadd.f32 %v2070, %v2202
  %v2267 = vadd.f32 %v2071, %v2203
  %v2268 = vadd.f32 %v2072, %v2204
  %v2269 = vadd.f32 %v2073, %v2205
  %v2270 = vadd.f32 %v2074, %v2206
  %v2271 = vadd.f32 %v2075, %v2207
  %v2272 = vadd.f32 %v2076, %v2208
  %v2273 = vadd.f32 %v2077, %v2209
  %v2274 = vadd.f32 %v2078, %v2210
  %v2275 = vadd.f32 %v2079, %v2211
  %v2276 = vadd.f32 %v2080, %v2212
  %v2277 = vadd.f32 %v2081, %v2213
  %v2278 = vadd.f32 %v2082, %v2214
  %v2279 = vadd.f32 %v2083, %v2215
  %v2280 = vadd.f32 %v2084, %v2216
  %v2281 = vadd.f32 %v2085, %v2217
  %v2282 = vadd.f32 %v2086, %v2218
  %v2283 = vadd.f32 %v2087, %v2219
  %v2284 = vadd.f32 %v2088, %v2220
  %v2285 = vadd.f32 %v2089, %v2221
  %v2286 = vadd.f32 %v2090, %v2222
  %v2287 = vadd.f32 %v2091, %v2223
  %v2288 = vadd.f32 %v2092, %v2224
  %v2289 = vadd.f32 %v2093, %v2225
  %v2290 = vadd.f32 %v2094, %v2226
  %v2291 = vadd.f32 %v2095, %v2227
  %v2292 = vadd.f32 %v2096, %v2228
  %v2293 = vadd.f32 %v2097, %v2229
  %v2294 = vadd.f32 %v2098, %v2230
  %v2295 = vadd.f32 %v2099, %v2231
  %v2296 = vadd.f32 %v2100, %v2232
  %v2297 = vadd.f32 %v2101, %v2233
  %v2298 = vadd.f32 %v2102, %v2234
  %v2299 = vadd.f32 %v2103, %v2235
  %v2300 = vadd.f32 %v2104, %v2236
  %v2301 = vadd.f32 %v2105, %v2237
  %v2302 = vadd.f32 %v2106, %v2238
  %v2303 = vadd.f32 %v2107, %v2239
  %v2304 = vadd.f32 %v2108, %v2240
  %v2305 = vadd.f32 %v2109, %v2241
  %v2306 = vadd.f32 %v2110, %v2242
  %v2307 = vadd.f32 %v2111, %v2243
  %v2308 = vadd.f32 %v2112, %v2244
  %v2309 = vld [vmem:[%s2] sm:$0x1]
  %v2311 = vlaneseq
  %v2312 = vshrl.u32 %v2311, 7
  %v2313 = vsub.s32 0, %v2312
  %v2314 = vrot.slane %v2309, %v2313
  %v2316 = vadd.f32 %v2245, %v2314
  %v2317 = vadd.f32 %v2246, %v2314
  %v2318 = vadd.f32 %v2247, %v2314
  %v2319 = vadd.f32 %v2248, %v2314
  %v2320 = vadd.f32 %v2249, %v2314
  %v2321 = vadd.f32 %v2250, %v2314
  %v2322 = vadd.f32 %v2251, %v2314
  %v2323 = vadd.f32 %v2252, %v2314
  %v2324 = vadd.f32 %v2253, %v2314
  %v2325 = vadd.f32 %v2254, %v2314
  %v2326 = vadd.f32 %v2255, %v2314
  %v2327 = vadd.f32 %v2256, %v2314
  %v2328 = vadd.f32 %v2257, %v2314
  %v2329 = vadd.f32 %v2258, %v2314
  %v2330 = vadd.f32 %v2259, %v2314
  %v2331 = vadd.f32 %v2260, %v2314
  %v2332 = vadd.f32 %v2261, %v2314
  %v2333 = vadd.f32 %v2262, %v2314
  %v2334 = vadd.f32 %v2263, %v2314
  %v2335 = vadd.f32 %v2264, %v2314
  %v2336 = vadd.f32 %v2265, %v2314
  %v2337 = vadd.f32 %v2266, %v2314
  %v2338 = vadd.f32 %v2267, %v2314
  %v2339 = vadd.f32 %v2268, %v2314
  %v2340 = vadd.f32 %v2269, %v2314
  %v2341 = vadd.f32 %v2270, %v2314
  %v2342 = vadd.f32 %v2271, %v2314
  %v2343 = vadd.f32 %v2272, %v2314
  %v2344 = vadd.f32 %v2273, %v2314
  %v2345 = vadd.f32 %v2274, %v2314
  %v2346 = vadd.f32 %v2275, %v2314
  %v2347 = vadd.f32 %v2276, %v2314
  %v2348 = vadd.f32 %v2277, %v2314
  %v2349 = vadd.f32 %v2278, %v2314
  %v2350 = vadd.f32 %v2279, %v2314
  %v2351 = vadd.f32 %v2280, %v2314
  %v2352 = vadd.f32 %v2281, %v2314
  %v2353 = vadd.f32 %v2282, %v2314
  %v2354 = vadd.f32 %v2283, %v2314
  %v2355 = vadd.f32 %v2284, %v2314
  %v2356 = vadd.f32 %v2285, %v2314
  %v2357 = vadd.f32 %v2286, %v2314
  %v2358 = vadd.f32 %v2287, %v2314
  %v2359 = vadd.f32 %v2288, %v2314
  %v2360 = vadd.f32 %v2289, %v2314
  %v2361 = vadd.f32 %v2290, %v2314
  %v2362 = vadd.f32 %v2291, %v2314
  %v2363 = vadd.f32 %v2292, %v2314
  %v2364 = vadd.f32 %v2293, %v2314
  %v2365 = vadd.f32 %v2294, %v2314
  %v2366 = vadd.f32 %v2295, %v2314
  %v2367 = vadd.f32 %v2296, %v2314
  %v2368 = vadd.f32 %v2297, %v2314
  %v2369 = vadd.f32 %v2298, %v2314
  %v2370 = vadd.f32 %v2299, %v2314
  %v2371 = vadd.f32 %v2300, %v2314
  %v2372 = vadd.f32 %v2301, %v2314
  %v2373 = vadd.f32 %v2302, %v2314
  %v2374 = vadd.f32 %v2303, %v2314
  %v2375 = vadd.f32 %v2304, %v2314
  %v2376 = vadd.f32 %v2305, %v2314
  %v2377 = vadd.f32 %v2306, %v2314
  %v2378 = vadd.f32 %v2307, %v2314
  %v2379 = vadd.f32 %v2308, %v2314
  %v2380 = vmax.f32 %v2316, 0.0
  %v2381 = vmax.f32 %v2317, 0.0
  %v2382 = vmax.f32 %v2318, 0.0
  %v2383 = vmax.f32 %v2319, 0.0
  %v2384 = vmax.f32 %v2320, 0.0
  %v2385 = vmax.f32 %v2321, 0.0
  %v2386 = vmax.f32 %v2322, 0.0
  %v2387 = vmax.f32 %v2323, 0.0
  %v2388 = vmax.f32 %v2324, 0.0
  %v2389 = vmax.f32 %v2325, 0.0
  %v2390 = vmax.f32 %v2326, 0.0
  %v2391 = vmax.f32 %v2327, 0.0
  %v2392 = vmax.f32 %v2328, 0.0
  %v2393 = vmax.f32 %v2329, 0.0
  %v2394 = vmax.f32 %v2330, 0.0
  %v2395 = vmax.f32 %v2331, 0.0
  %v2396 = vmax.f32 %v2332, 0.0
  %v2397 = vmax.f32 %v2333, 0.0
  %v2398 = vmax.f32 %v2334, 0.0
  %v2399 = vmax.f32 %v2335, 0.0
  %v2400 = vmax.f32 %v2336, 0.0
  %v2401 = vmax.f32 %v2337, 0.0
  %v2402 = vmax.f32 %v2338, 0.0
  %v2403 = vmax.f32 %v2339, 0.0
  %v2404 = vmax.f32 %v2340, 0.0
  %v2405 = vmax.f32 %v2341, 0.0
  %v2406 = vmax.f32 %v2342, 0.0
  %v2407 = vmax.f32 %v2343, 0.0
  %v2408 = vmax.f32 %v2344, 0.0
  %v2409 = vmax.f32 %v2345, 0.0
  %v2410 = vmax.f32 %v2346, 0.0
  %v2411 = vmax.f32 %v2347, 0.0
  %v2412 = vmax.f32 %v2348, 0.0
  %v2413 = vmax.f32 %v2349, 0.0
  %v2414 = vmax.f32 %v2350, 0.0
  %v2415 = vmax.f32 %v2351, 0.0
  %v2416 = vmax.f32 %v2352, 0.0
  %v2417 = vmax.f32 %v2353, 0.0
  %v2418 = vmax.f32 %v2354, 0.0
  %v2419 = vmax.f32 %v2355, 0.0
  %v2420 = vmax.f32 %v2356, 0.0
  %v2421 = vmax.f32 %v2357, 0.0
  %v2422 = vmax.f32 %v2358, 0.0
  %v2423 = vmax.f32 %v2359, 0.0
  %v2424 = vmax.f32 %v2360, 0.0
  %v2425 = vmax.f32 %v2361, 0.0
  %v2426 = vmax.f32 %v2362, 0.0
  %v2427 = vmax.f32 %v2363, 0.0
  %v2428 = vmax.f32 %v2364, 0.0
  %v2429 = vmax.f32 %v2365, 0.0
  %v2430 = vmax.f32 %v2366, 0.0
  %v2431 = vmax.f32 %v2367, 0.0
  %v2432 = vmax.f32 %v2368, 0.0
  %v2433 = vmax.f32 %v2369, 0.0
  %v2434 = vmax.f32 %v2370, 0.0
  %v2435 = vmax.f32 %v2371, 0.0
  %v2436 = vmax.f32 %v2372, 0.0
  %v2437 = vmax.f32 %v2373, 0.0
  %v2438 = vmax.f32 %v2374, 0.0
  %v2439 = vmax.f32 %v2375, 0.0
  %v2440 = vmax.f32 %v2376, 0.0
  %v2441 = vmax.f32 %v2377, 0.0
  %v2442 = vmax.f32 %v2378, 0.0
  %v2443 = vmax.f32 %v2379, 0.0
  %v2444 = vmax.f32 %v2380, %v2384
  %v2445 = vmax.f32 %v2381, %v2385
  %v2446 = vmax.f32 %v2382, %v2386
  %v2447 = vmax.f32 %v2383, %v2387
  %v2448 = vmax.f32 %v2388, %v2392
  %v2449 = vmax.f32 %v2389, %v2393
  %v2450 = vmax.f32 %v2390, %v2394
  %v2451 = vmax.f32 %v2391, %v2395
  %v2452 = vmax.f32 %v2396, %v2400
  %v2453 = vmax.f32 %v2397, %v2401
  %v2454 = vmax.f32 %v2398, %v2402
  %v2455 = vmax.f32 %v2399, %v2403
  %v2456 = vmax.f32 %v2404, %v2408
  %v2457 = vmax.f32 %v2405, %v2409
  %v2458 = vmax.f32 %v2406, %v2410
  %v2459 = vmax.f32 %v2407, %v2411
  %v2460 = vmax.f32 %v2412, %v2416
  %v2461 = vmax.f32 %v2413, %v2417
  %v2462 = vmax.f32 %v2414, %v2418
  %v2463 = vmax.f32 %v2415, %v2419
  %v2464 = vmax.f32 %v2420, %v2424
  %v2465 = vmax.f32 %v2421, %v2425
  %v2466 = vmax.f32 %v2422, %v2426
  %v2467 = vmax.f32 %v2423, %v2427
  %v2468 = vmax.f32 %v2428, %v2432
  %v2469 = vmax.f32 %v2429, %v2433
  %v2470 = vmax.f32 %v2430, %v2434
  %v2471 = vmax.f32 %v2431, %v2435
  %v2472 = vmax.f32 %v2436, %v2440
  %v2473 = vmax.f32 %v2437, %v2441
  %v2474 = vmax.f32 %v2438, %v2442
  %v2475 = vmax.f32 %v2439, %v2443
  %2476 = vst.msk [vmem:[#allocation3] sm:$0xff] %vm21, %v2444
  %2477 = vst.msk [vmem:[#allocation3 + $0x8] sm:$0xff] %vm21, %v2445
  %2478 = vst.msk [vmem:[#allocation3 + $0x10] sm:$0xff] %vm21, %v2446
  %2479 = vst.msk [vmem:[#allocation3 + $0x18] sm:$0xff] %vm21, %v2447
  %2480 = vst.msk [vmem:[#allocation3 + $0x20] sm:$0xff] %vm21, %v2448
  %2481 = vst.msk [vmem:[#allocation3 + $0x28] sm:$0xff] %vm21, %v2449
  %2482 = vst.msk [vmem:[#allocation3 + $0x30] sm:$0xff] %vm21, %v2450
  %2483 = vst.msk [vmem:[#allocation3 + $0x38] sm:$0xff] %vm21, %v2451
  %2484 = vst.msk [vmem:[#allocation3 + $0x40] sm:$0xff] %vm21, %v2452
  %2485 = vst.msk [vmem:[#allocation3 + $0x48] sm:$0xff] %vm21, %v2453
  %2486 = vst.msk [vmem:[#allocation3 + $0x50] sm:$0xff] %vm21, %v2454
  %2487 = vst.msk [vmem:[#allocation3 + $0x58] sm:$0xff] %vm21, %v2455
  %2488 = vst.msk [vmem:[#allocation3 + $0x60] sm:$0xff] %vm21, %v2456
  %2489 = vst.msk [vmem:[#allocation3 + $0x68] sm:$0xff] %vm21, %v2457
  %2490 = vst.msk [vmem:[#allocation3 + $0x70] sm:$0xff] %vm21, %v2458
  %2491 = vst.msk [vmem:[#allocation3 + $0x78] sm:$0xff] %vm21, %v2459
  %2492 = vst.msk [vmem:[#allocation3 + $0x80] sm:$0xff] %vm21, %v2460
  %2493 = vst.msk [vmem:[#allocation3 + $0x88] sm:$0xff] %vm21, %v2461
  %2494 = vst.msk [vmem:[#allocation3 + $0x90] sm:$0xff] %vm21, %v2462
  %2495 = vst.msk [vmem:[#allocation3 + $0x98] sm:$0xff] %vm21, %v2463
  %2496 = vst.msk [vmem:[#allocation3 + $0xa0] sm:$0xff] %vm21, %v2464
  %2497 = vst.msk [vmem:[#allocation3 + $0xa8] sm:$0xff] %vm21, %v2465
  %2498 = vst.msk [vmem:[#allocation3 + $0xb0] sm:$0xff] %vm21, %v2466
  %2499 = vst.msk [vmem:[#allocation3 + $0xb8] sm:$0xff] %vm21, %v2467
  %2500 = vst.msk [vmem:[#allocation3 + $0xc0] sm:$0xff] %vm21, %v2468
  %2501 = vst.msk [vmem:[#allocation3 + $0xc8] sm:$0xff] %vm21, %v2469
  %2502 = vst.msk [vmem:[#allocation3 + $0xd0] sm:$0xff] %vm21, %v2470
  %2503 = vst.msk [vmem:[#allocation3 + $0xd8] sm:$0xff] %vm21, %v2471
  %2504 = vst.msk [vmem:[#allocation3 + $0xe0] sm:$0xff] %vm21, %v2472
  %2505 = vst.msk [vmem:[#allocation3 + $0xe8] sm:$0xff] %vm21, %v2473
  %2506 = vst.msk [vmem:[#allocation3 + $0xf0] sm:$0xff] %vm21, %v2474
  %2507 = vst.msk [vmem:[#allocation3 + $0xf8] sm:$0xff] %vm21, %v2475
  %v2508 = vld [vmem:[#allocation3] ss:$2 sm:$0xff]
  %s2509 = scalar_lea.vmem [#allocation3], 16
  %v2510 = vld [vmem:[%s2509] ss:$2 sm:$0xff]
  %s2511 = scalar_lea.vmem [#allocation3], 32
  %v2512 = vld [vmem:[%s2511] ss:$2 sm:$0xff]
  %s2513 = scalar_lea.vmem [#allocation3], 48
  %v2514 = vld [vmem:[%s2513] ss:$2 sm:$0xff]
  %s2515 = scalar_lea.vmem [#allocation3], 64
  %v2516 = vld [vmem:[%s2515] ss:$2 sm:$0xff]
  %s2517 = scalar_lea.vmem [#allocation3], 80
  %v2518 = vld [vmem:[%s2517] ss:$2 sm:$0xff]
  %s2519 = scalar_lea.vmem [#allocation3], 96
  %v2520 = vld [vmem:[%s2519] ss:$2 sm:$0xff]
  %s2521 = scalar_lea.vmem [#allocation3], 112
  %v2522 = vld [vmem:[%s2521] ss:$2 sm:$0xff]
  %s2523 = scalar_lea.vmem [#allocation3], 128
  %v2524 = vld [vmem:[%s2523] ss:$2 sm:$0xff]
  %s2525 = scalar_lea.vmem [#allocation3], 144
  %v2526 = vld [vmem:[%s2525] ss:$2 sm:$0xff]
  %s2527 = scalar_lea.vmem [#allocation3], 160
  %v2528 = vld [vmem:[%s2527] ss:$2 sm:$0xff]
  %s2529 = scalar_lea.vmem [#allocation3], 176
  %v2530 = vld [vmem:[%s2529] ss:$2 sm:$0xff]
  %s2531 = scalar_lea.vmem [#allocation3], 192
  %v2532 = vld [vmem:[%s2531] ss:$2 sm:$0xff]
  %s2533 = scalar_lea.vmem [#allocation3], 208
  %v2534 = vld [vmem:[%s2533] ss:$2 sm:$0xff]
  %s2535 = scalar_lea.vmem [#allocation3], 224
  %v2536 = vld [vmem:[%s2535] ss:$2 sm:$0xff]
  %s2537 = scalar_lea.vmem [#allocation3], 240
  %v2538 = vld [vmem:[%s2537] ss:$2 sm:$0xff]
  %s2539 = scalar_lea.vmem [#allocation3], 1
  %v2540 = vld [vmem:[%s2539] ss:$2 sm:$0xff]
  %s2541 = scalar_lea.vmem [#allocation3], 17
  %v2542 = vld [vmem:[%s2541] ss:$2 sm:$0xff]
  %s2543 = scalar_lea.vmem [#allocation3], 33
  %v2544 = vld [vmem:[%s2543] ss:$2 sm:$0xff]
  %s2545 = scalar_lea.vmem [#allocation3], 49
  %v2546 = vld [vmem:[%s2545] ss:$2 sm:$0xff]
  %s2547 = scalar_lea.vmem [#allocation3], 65
  %v2548 = vld [vmem:[%s2547] ss:$2 sm:$0xff]
  %s2549 = scalar_lea.vmem [#allocation3], 81
  %v2550 = vld [vmem:[%s2549] ss:$2 sm:$0xff]
  %s2551 = scalar_lea.vmem [#allocation3], 97
  %v2552 = vld [vmem:[%s2551] ss:$2 sm:$0xff]
  %s2553 = scalar_lea.vmem [#allocation3], 113
  %v2554 = vld [vmem:[%s2553] ss:$2 sm:$0xff]
  %s2555 = scalar_lea.vmem [#allocation3], 129
  %v2556 = vld [vmem:[%s2555] ss:$2 sm:$0xff]
  %s2557 = scalar_lea.vmem [#allocation3], 145
  %v2558 = vld [vmem:[%s2557] ss:$2 sm:$0xff]
  %s2559 = scalar_lea.vmem [#allocation3], 161
  %v2560 = vld [vmem:[%s2559] ss:$2 sm:$0xff]
  %s2561 = scalar_lea.vmem [#allocation3], 177
  %v2562 = vld [vmem:[%s2561] ss:$2 sm:$0xff]
  %s2563 = scalar_lea.vmem [#allocation3], 193
  %v2564 = vld [vmem:[%s2563] ss:$2 sm:$0xff]
  %s2565 = scalar_lea.vmem [#allocation3], 209
  %v2566 = vld [vmem:[%s2565] ss:$2 sm:$0xff]
  %s2567 = scalar_lea.vmem [#allocation3], 225
  %v2568 = vld [vmem:[%s2567] ss:$2 sm:$0xff]
  %s2569 = scalar_lea.vmem [#allocation3], 241
  %v2570 = vld [vmem:[%s2569] ss:$2 sm:$0xff]
  %v2571 = vmax.f32 %v2508, %v2540
  %v2572 = vmax.f32 %v2510, %v2542
  %v2573 = vmax.f32 %v2512, %v2544
  %v2574 = vmax.f32 %v2514, %v2546
  %v2575 = vmax.f32 %v2516, %v2548
  %v2576 = vmax.f32 %v2518, %v2550
  %v2577 = vmax.f32 %v2520, %v2552
  %v2578 = vmax.f32 %v2522, %v2554
  %v2579 = vmax.f32 %v2524, %v2556
  %v2580 = vmax.f32 %v2526, %v2558
  %v2581 = vmax.f32 %v2528, %v2560
  %v2582 = vmax.f32 %v2530, %v2562
  %v2583 = vmax.f32 %v2532, %v2564
  %v2584 = vmax.f32 %v2534, %v2566
  %v2585 = vmax.f32 %v2536, %v2568
  %v2586 = vmax.f32 %v2538, %v2570
  %2587 = vst.msk [vmem:[#allocation4] sm:$0xff] %vm21, 0.0
  %2588 = vst.msk [vmem:[#allocation4 + $0x8] sm:$0x3] %vm24, 0.0
  %2589 = vst.msk [vmem:[#allocation4 + $0x10] sm:$0xff] %vm21, 0.0
  %2590 = vst.msk [vmem:[#allocation4 + $0x18] sm:$0x3] %vm24, 0.0
  %s2591 = scalar_lea.vmem [#allocation4], 288
  %2592 = vst.msk [vmem:[%s2591] sm:$0xff] %vm21, 0.0
  %2593 = vst.msk [vmem:[%s2591 + $0x8] sm:$0x3] %vm24, 0.0
  %2594 = vst.msk [vmem:[%s2591 + $0x10] sm:$0xff] %vm21, 0.0
  %2595 = vst.msk [vmem:[%s2591 + $0x18] sm:$0x3] %vm24, 0.0
  %2596 = vst.msk [vmem:[#allocation4] sm:$0x1] %vm36, 0.0
  %2597 = vst.msk [vmem:[#allocation4 + $0x10] sm:$0x1] %vm36, 0.0
  %2598 = vst.msk [vmem:[#allocation4 + $0x20] sm:$0x1] %vm36, 0.0
  %2599 = vst.msk [vmem:[#allocation4 + $0x30] sm:$0x1] %vm36, 0.0
  %2600 = vst.msk [vmem:[#allocation4 + $0x40] sm:$0x1] %vm36, 0.0
  %2601 = vst.msk [vmem:[#allocation4 + $0x50] sm:$0x1] %vm36, 0.0
  %2602 = vst.msk [vmem:[#allocation4 + $0x60] sm:$0x1] %vm36, 0.0
  %2603 = vst.msk [vmem:[#allocation4 + $0x70] sm:$0x1] %vm36, 0.0
  %2604 = vst.msk [vmem:[#allocation4 + $0x80] sm:$0x1] %vm36, 0.0
  %2605 = vst.msk [vmem:[#allocation4 + $0x90] sm:$0x1] %vm36, 0.0
  %2606 = vst.msk [vmem:[#allocation4 + $0xa0] sm:$0x1] %vm36, 0.0
  %2607 = vst.msk [vmem:[#allocation4 + $0xb0] sm:$0x1] %vm36, 0.0
  %2608 = vst.msk [vmem:[#allocation4 + $0xc0] sm:$0x1] %vm36, 0.0
  %2609 = vst.msk [vmem:[#allocation4 + $0xd0] sm:$0x1] %vm36, 0.0
  %2610 = vst.msk [vmem:[#allocation4 + $0xe0] sm:$0x1] %vm36, 0.0
  %2611 = vst.msk [vmem:[#allocation4 + $0xf0] sm:$0x1] %vm36, 0.0
  %2612 = vst.msk [vmem:[#allocation4 + $0x100] sm:$0x1] %vm36, 0.0
  %2613 = vst.msk [vmem:[#allocation4 + $0x110] sm:$0x1] %vm36, 0.0
  %2614 = vst.msk [vmem:[#allocation4 + $0x120] sm:$0x1] %vm36, 0.0
  %2615 = vst.msk [vmem:[#allocation4 + $0x130] sm:$0x1] %vm36, 0.0
  %2616 = vst.msk [vmem:[#allocation4 + $0x9] sm:$0x1] %vm36, 0.0
  %2617 = vst.msk [vmem:[#allocation4 + $0x19] sm:$0x1] %vm36, 0.0
  %2618 = vst.msk [vmem:[#allocation4 + $0x29] sm:$0x1] %vm36, 0.0
  %2619 = vst.msk [vmem:[#allocation4 + $0x39] sm:$0x1] %vm36, 0.0
  %2620 = vst.msk [vmem:[#allocation4 + $0x49] sm:$0x1] %vm36, 0.0
  %2621 = vst.msk [vmem:[#allocation4 + $0x59] sm:$0x1] %vm36, 0.0
  %2622 = vst.msk [vmem:[#allocation4 + $0x69] sm:$0x1] %vm36, 0.0
  %2623 = vst.msk [vmem:[#allocation4 + $0x79] sm:$0x1] %vm36, 0.0
  %2624 = vst.msk [vmem:[#allocation4 + $0x89] sm:$0x1] %vm36, 0.0
  %2625 = vst.msk [vmem:[#allocation4 + $0x99] sm:$0x1] %vm36, 0.0
  %2626 = vst.msk [vmem:[#allocation4 + $0xa9] sm:$0x1] %vm36, 0.0
  %2627 = vst.msk [vmem:[#allocation4 + $0xb9] sm:$0x1] %vm36, 0.0
  %2628 = vst.msk [vmem:[#allocation4 + $0xc9] sm:$0x1] %vm36, 0.0
  %2629 = vst.msk [vmem:[#allocation4 + $0xd9] sm:$0x1] %vm36, 0.0
  %2630 = vst.msk [vmem:[#allocation4 + $0xe9] sm:$0x1] %vm36, 0.0
  %2631 = vst.msk [vmem:[#allocation4 + $0xf9] sm:$0x1] %vm36, 0.0
  %2632 = vst.msk [vmem:[#allocation4 + $0x109] sm:$0x1] %vm36, 0.0
  %2633 = vst.msk [vmem:[#allocation4 + $0x119] sm:$0x1] %vm36, 0.0
  %2634 = vst.msk [vmem:[#allocation4 + $0x129] sm:$0x1] %vm36, 0.0
  %2635 = vst.msk [vmem:[#allocation4 + $0x139] sm:$0x1] %vm36, 0.0
  %s2636 = scalar_lea.vmem [#allocation4], 32
  %2637 = vst.msk [vmem:[%s2636 + $0x1] sm:$0xff] %vm21, %v2571
  %2638 = vst.msk [vmem:[%s2636 + $0x11] sm:$0xff] %vm21, %v2572
  %2639 = vst.msk [vmem:[%s2636 + $0x21] sm:$0xff] %vm21, %v2573
  %2640 = vst.msk [vmem:[%s2636 + $0x31] sm:$0xff] %vm21, %v2574
  %2641 = vst.msk [vmem:[%s2636 + $0x41] sm:$0xff] %vm21, %v2575
  %2642 = vst.msk [vmem:[%s2636 + $0x51] sm:$0xff] %vm21, %v2576
  %2643 = vst.msk [vmem:[%s2636 + $0x61] sm:$0xff] %vm21, %v2577
  %2644 = vst.msk [vmem:[%s2636 + $0x71] sm:$0xff] %vm21, %v2578
  %2645 = vst.msk [vmem:[%s2636 + $0x81] sm:$0xff] %vm21, %v2579
  %2646 = vst.msk [vmem:[%s2636 + $0x91] sm:$0xff] %vm21, %v2580
  %2647 = vst.msk [vmem:[%s2636 + $0xa1] sm:$0xff] %vm21, %v2581
  %2648 = vst.msk [vmem:[%s2636 + $0xb1] sm:$0xff] %vm21, %v2582
  %2649 = vst.msk [vmem:[%s2636 + $0xc1] sm:$0xff] %vm21, %v2583
  %2650 = vst.msk [vmem:[%s2636 + $0xd1] sm:$0xff] %vm21, %v2584
  %2651 = vst.msk [vmem:[%s2636 + $0xe1] sm:$0xff] %vm21, %v2585
  %2652 = vst.msk [vmem:[%s2636 + $0xf1] sm:$0xff] %vm21, %v2586
  %v2653 = vld [vmem:[#allocation4] sm:$0xff]
  %v2654 = vld [vmem:[#allocation4 + $0x10] sm:$0xff]
  %v2655 = vld [vmem:[#allocation4 + $0x20] sm:$0xff]
  %v2656 = vld [vmem:[#allocation4 + $0x30] sm:$0xff]
  %v2657 = vld [vmem:[#allocation4 + $0x40] sm:$0xff]
  %v2658 = vld [vmem:[#allocation4 + $0x50] sm:$0xff]
  %v2659 = vld [vmem:[#allocation4 + $0x60] sm:$0xff]
  %v2660 = vld [vmem:[#allocation4 + $0x70] sm:$0xff]
  %v2661 = vld [vmem:[#allocation4 + $0x80] sm:$0xff]
  %v2662 = vld [vmem:[#allocation4 + $0x90] sm:$0xff]
  %v2663 = vld [vmem:[#allocation4 + $0xa0] sm:$0xff]
  %v2664 = vld [vmem:[#allocation4 + $0xb0] sm:$0xff]
  %v2665 = vld [vmem:[#allocation4 + $0xc0] sm:$0xff]
  %v2666 = vld [vmem:[#allocation4 + $0xd0] sm:$0xff]
  %v2667 = vld [vmem:[#allocation4 + $0xe0] sm:$0xff]
  %v2668 = vld [vmem:[#allocation4 + $0xf0] sm:$0xff]
  %v2669 = vld [vmem:[#allocation4 + $0x1] sm:$0xff]
  %v2670 = vld [vmem:[#allocation4 + $0x11] sm:$0xff]
  %v2671 = vld [vmem:[#allocation4 + $0x21] sm:$0xff]
  %v2672 = vld [vmem:[#allocation4 + $0x31] sm:$0xff]
  %v2673 = vld [vmem:[#allocation4 + $0x41] sm:$0xff]
  %v2674 = vld [vmem:[#allocation4 + $0x51] sm:$0xff]
  %v2675 = vld [vmem:[#allocation4 + $0x61] sm:$0xff]
  %v2676 = vld [vmem:[#allocation4 + $0x71] sm:$0xff]
  %v2677 = vld [vmem:[#allocation4 + $0x81] sm:$0xff]
  %v2678 = vld [vmem:[#allocation4 + $0x91] sm:$0xff]
  %v2679 = vld [vmem:[#allocation4 + $0xa1] sm:$0xff]
  %v2680 = vld [vmem:[#allocation4 + $0xb1] sm:$0xff]
  %v2681 = vld [vmem:[#allocation4 + $0xc1] sm:$0xff]
  %v2682 = vld [vmem:[#allocation4 + $0xd1] sm:$0xff]
  %v2683 = vld [vmem:[#allocation4 + $0xe1] sm:$0xff]
  %v2684 = vld [vmem:[#allocation4 + $0xf1] sm:$0xff]
  %v2685 = vld [vmem:[#allocation4 + $0x2] sm:$0xff]
  %v2686 = vld [vmem:[#allocation4 + $0x12] sm:$0xff]
  %v2687 = vld [vmem:[#allocation4 + $0x22] sm:$0xff]
  %v2688 = vld [vmem:[#allocation4 + $0x32] sm:$0xff]
  %v2689 = vld [vmem:[#allocation4 + $0x42] sm:$0xff]
  %v2690 = vld [vmem:[#allocation4 + $0x52] sm:$0xff]
  %v2691 = vld [vmem:[#allocation4 + $0x62] sm:$0xff]
  %v2692 = vld [vmem:[#allocation4 + $0x72] sm:$0xff]
  %v2693 = vld [vmem:[#allocation4 + $0x82] sm:$0xff]
  %v2694 = vld [vmem:[#allocation4 + $0x92] sm:$0xff]
  %v2695 = vld [vmem:[#allocation4 + $0xa2] sm:$0xff]
  %v2696 = vld [vmem:[#allocation4 + $0xb2] sm:$0xff]
  %v2697 = vld [vmem:[#allocation4 + $0xc2] sm:$0xff]
  %v2698 = vld [vmem:[#allocation4 + $0xd2] sm:$0xff]
  %v2699 = vld [vmem:[#allocation4 + $0xe2] sm:$0xff]
  %v2700 = vld [vmem:[#allocation4 + $0xf2] sm:$0xff]
  %v2701 = vld [vmem:[%s2636] sm:$0xff]
  %v2702 = vld [vmem:[%s2636 + $0x10] sm:$0xff]
  %v2703 = vld [vmem:[%s2636 + $0x20] sm:$0xff]
  %v2704 = vld [vmem:[%s2636 + $0x30] sm:$0xff]
  %v2705 = vld [vmem:[%s2636 + $0x40] sm:$0xff]
  %v2706 = vld [vmem:[%s2636 + $0x50] sm:$0xff]
  %v2707 = vld [vmem:[%s2636 + $0x60] sm:$0xff]
  %v2708 = vld [vmem:[%s2636 + $0x70] sm:$0xff]
  %v2709 = vld [vmem:[%s2636 + $0x80] sm:$0xff]
  %v2710 = vld [vmem:[%s2636 + $0x90] sm:$0xff]
  %v2711 = vld [vmem:[%s2636 + $0xa0] sm:$0xff]
  %v2712 = vld [vmem:[%s2636 + $0xb0] sm:$0xff]
  %v2713 = vld [vmem:[%s2636 + $0xc0] sm:$0xff]
  %v2714 = vld [vmem:[%s2636 + $0xd0] sm:$0xff]
  %v2715 = vld [vmem:[%s2636 + $0xe0] sm:$0xff]
  %v2716 = vld [vmem:[%s2636 + $0xf0] sm:$0xff]
  %v2717 = vld [vmem:[%s2636 + $0x1] sm:$0xff]
  %v2718 = vld [vmem:[%s2636 + $0x11] sm:$0xff]
  %v2719 = vld [vmem:[%s2636 + $0x21] sm:$0xff]
  %v2720 = vld [vmem:[%s2636 + $0x31] sm:$0xff]
  %v2721 = vld [vmem:[%s2636 + $0x41] sm:$0xff]
  %v2722 = vld [vmem:[%s2636 + $0x51] sm:$0xff]
  %v2723 = vld [vmem:[%s2636 + $0x61] sm:$0xff]
  %v2724 = vld [vmem:[%s2636 + $0x71] sm:$0xff]
  %v2725 = vld [vmem:[%s2636 + $0x81] sm:$0xff]
  %v2726 = vld [vmem:[%s2636 + $0x91] sm:$0xff]
  %v2727 = vld [vmem:[%s2636 + $0xa1] sm:$0xff]
  %v2728 = vld [vmem:[%s2636 + $0xb1] sm:$0xff]
  %v2729 = vld [vmem:[%s2636 + $0xc1] sm:$0xff]
  %v2730 = vld [vmem:[%s2636 + $0xd1] sm:$0xff]
  %v2731 = vld [vmem:[%s2636 + $0xe1] sm:$0xff]
  %v2732 = vld [vmem:[%s2636 + $0xf1] sm:$0xff]
  %v2733 = vld [vmem:[%s2636 + $0x2] sm:$0xff]
  %v2734 = vld [vmem:[%s2636 + $0x12] sm:$0xff]
  %v2735 = vld [vmem:[%s2636 + $0x22] sm:$0xff]
  %v2736 = vld [vmem:[%s2636 + $0x32] sm:$0xff]
  %v2737 = vld [vmem:[%s2636 + $0x42] sm:$0xff]
  %v2738 = vld [vmem:[%s2636 + $0x52] sm:$0xff]
  %v2739 = vld [vmem:[%s2636 + $0x62] sm:$0xff]
  %v2740 = vld [vmem:[%s2636 + $0x72] sm:$0xff]
  %v2741 = vld [vmem:[%s2636 + $0x82] sm:$0xff]
  %v2742 = vld [vmem:[%s2636 + $0x92] sm:$0xff]
  %v2743 = vld [vmem:[%s2636 + $0xa2] sm:$0xff]
  %v2744 = vld [vmem:[%s2636 + $0xb2] sm:$0xff]
  %v2745 = vld [vmem:[%s2636 + $0xc2] sm:$0xff]
  %v2746 = vld [vmem:[%s2636 + $0xd2] sm:$0xff]
  %v2747 = vld [vmem:[%s2636 + $0xe2] sm:$0xff]
  %v2748 = vld [vmem:[%s2636 + $0xf2] sm:$0xff]
  %s2749 = scalar_lea.vmem [#allocation4], 64
  %v2750 = vld [vmem:[%s2749] sm:$0xff]
  %v2751 = vld [vmem:[%s2749 + $0x10] sm:$0xff]
  %v2752 = vld [vmem:[%s2749 + $0x20] sm:$0xff]
  %v2753 = vld [vmem:[%s2749 + $0x30] sm:$0xff]
  %v2754 = vld [vmem:[%s2749 + $0x40] sm:$0xff]
  %v2755 = vld [vmem:[%s2749 + $0x50] sm:$0xff]
  %v2756 = vld [vmem:[%s2749 + $0x60] sm:$0xff]
  %v2757 = vld [vmem:[%s2749 + $0x70] sm:$0xff]
  %v2758 = vld [vmem:[%s2749 + $0x80] sm:$0xff]
  %v2759 = vld [vmem:[%s2749 + $0x90] sm:$0xff]
  %v2760 = vld [vmem:[%s2749 + $0xa0] sm:$0xff]
  %v2761 = vld [vmem:[%s2749 + $0xb0] sm:$0xff]
  %v2762 = vld [vmem:[%s2749 + $0xc0] sm:$0xff]
  %v2763 = vld [vmem:[%s2749 + $0xd0] sm:$0xff]
  %v2764 = vld [vmem:[%s2749 + $0xe0] sm:$0xff]
  %v2765 = vld [vmem:[%s2749 + $0xf0] sm:$0xff]
  %v2766 = vld [vmem:[%s2749 + $0x1] sm:$0xff]
  %v2767 = vld [vmem:[%s2749 + $0x11] sm:$0xff]
  %v2768 = vld [vmem:[%s2749 + $0x21] sm:$0xff]
  %v2769 = vld [vmem:[%s2749 + $0x31] sm:$0xff]
  %v2770 = vld [vmem:[%s2749 + $0x41] sm:$0xff]
  %v2771 = vld [vmem:[%s2749 + $0x51] sm:$0xff]
  %v2772 = vld [vmem:[%s2749 + $0x61] sm:$0xff]
  %v2773 = vld [vmem:[%s2749 + $0x71] sm:$0xff]
  %v2774 = vld [vmem:[%s2749 + $0x81] sm:$0xff]
  %v2775 = vld [vmem:[%s2749 + $0x91] sm:$0xff]
  %v2776 = vld [vmem:[%s2749 + $0xa1] sm:$0xff]
  %v2777 = vld [vmem:[%s2749 + $0xb1] sm:$0xff]
  %v2778 = vld [vmem:[%s2749 + $0xc1] sm:$0xff]
  %v2779 = vld [vmem:[%s2749 + $0xd1] sm:$0xff]
  %v2780 = vld [vmem:[%s2749 + $0xe1] sm:$0xff]
  %v2781 = vld [vmem:[%s2749 + $0xf1] sm:$0xff]
  %v2782 = vld [vmem:[%s2749 + $0x2] sm:$0xff]
  %v2783 = vld [vmem:[%s2749 + $0x12] sm:$0xff]
  %v2784 = vld [vmem:[%s2749 + $0x22] sm:$0xff]
  %v2785 = vld [vmem:[%s2749 + $0x32] sm:$0xff]
  %v2786 = vld [vmem:[%s2749 + $0x42] sm:$0xff]
  %v2787 = vld [vmem:[%s2749 + $0x52] sm:$0xff]
  %v2788 = vld [vmem:[%s2749 + $0x62] sm:$0xff]
  %v2789 = vld [vmem:[%s2749 + $0x72] sm:$0xff]
  %v2790 = vld [vmem:[%s2749 + $0x82] sm:$0xff]
  %v2791 = vld [vmem:[%s2749 + $0x92] sm:$0xff]
  %v2792 = vld [vmem:[%s2749 + $0xa2] sm:$0xff]
  %v2793 = vld [vmem:[%s2749 + $0xb2] sm:$0xff]
  %v2794 = vld [vmem:[%s2749 + $0xc2] sm:$0xff]
  %v2795 = vld [vmem:[%s2749 + $0xd2] sm:$0xff]
  %v2796 = vld [vmem:[%s2749 + $0xe2] sm:$0xff]
  %v2797 = vld [vmem:[%s2749 + $0xf2] sm:$0xff]
  %2814 = vrot.lane.b32.xlu0 %v2669, 32
  %v2815 = vpop.permute.xlu0 %2814
  %2816 = vrot.lane.b32.xlu0 %v2670, 32
  %v2817 = vpop.permute.xlu0 %2816
  %2818 = vrot.lane.b32.xlu0 %v2671, 32
  %v2819 = vpop.permute.xlu0 %2818
  %2820 = vrot.lane.b32.xlu0 %v2672, 32
  %v2821 = vpop.permute.xlu0 %2820
  %2822 = vrot.lane.b32.xlu0 %v2673, 32
  %v2823 = vpop.permute.xlu0 %2822
  %2824 = vrot.lane.b32.xlu0 %v2674, 32
  %v2825 = vpop.permute.xlu0 %2824
  %2826 = vrot.lane.b32.xlu0 %v2675, 32
  %v2827 = vpop.permute.xlu0 %2826
  %2828 = vrot.lane.b32.xlu0 %v2676, 32
  %v2829 = vpop.permute.xlu0 %2828
  %2830 = vrot.lane.b32.xlu0 %v2677, 32
  %v2831 = vpop.permute.xlu0 %2830
  %2832 = vrot.lane.b32.xlu0 %v2678, 32
  %v2833 = vpop.permute.xlu0 %2832
  %2834 = vrot.lane.b32.xlu0 %v2679, 32
  %v2835 = vpop.permute.xlu0 %2834
  %2836 = vrot.lane.b32.xlu0 %v2680, 32
  %v2837 = vpop.permute.xlu0 %2836
  %2838 = vrot.lane.b32.xlu0 %v2681, 32
  %v2839 = vpop.permute.xlu0 %2838
  %2840 = vrot.lane.b32.xlu0 %v2682, 32
  %v2841 = vpop.permute.xlu0 %2840
  %2842 = vrot.lane.b32.xlu0 %v2683, 32
  %v2843 = vpop.permute.xlu0 %2842
  %2844 = vrot.lane.b32.xlu0 %v2684, 32
  %v2845 = vpop.permute.xlu0 %2844
  %2878 = vrot.lane.b32.xlu0 %v2685, 64
  %v2879 = vpop.permute.xlu0 %2878
  %2880 = vrot.lane.b32.xlu0 %v2686, 64
  %v2881 = vpop.permute.xlu0 %2880
  %2882 = vrot.lane.b32.xlu0 %v2687, 64
  %v2883 = vpop.permute.xlu0 %2882
  %2884 = vrot.lane.b32.xlu0 %v2688, 64
  %v2885 = vpop.permute.xlu0 %2884
  %2886 = vrot.lane.b32.xlu0 %v2689, 64
  %v2887 = vpop.permute.xlu0 %2886
  %2888 = vrot.lane.b32.xlu0 %v2690, 64
  %v2889 = vpop.permute.xlu0 %2888
  %2890 = vrot.lane.b32.xlu0 %v2691, 64
  %v2891 = vpop.permute.xlu0 %2890
  %2892 = vrot.lane.b32.xlu0 %v2692, 64
  %v2893 = vpop.permute.xlu0 %2892
  %2894 = vrot.lane.b32.xlu0 %v2693, 64
  %v2895 = vpop.permute.xlu0 %2894
  %2896 = vrot.lane.b32.xlu0 %v2694, 64
  %v2897 = vpop.permute.xlu0 %2896
  %2898 = vrot.lane.b32.xlu0 %v2695, 64
  %v2899 = vpop.permute.xlu0 %2898
  %2900 = vrot.lane.b32.xlu0 %v2696, 64
  %v2901 = vpop.permute.xlu0 %2900
  %2902 = vrot.lane.b32.xlu0 %v2697, 64
  %v2903 = vpop.permute.xlu0 %2902
  %2904 = vrot.lane.b32.xlu0 %v2698, 64
  %v2905 = vpop.permute.xlu0 %2904
  %2906 = vrot.lane.b32.xlu0 %v2699, 64
  %v2907 = vpop.permute.xlu0 %2906
  %2908 = vrot.lane.b32.xlu0 %v2700, 64
  %v2909 = vpop.permute.xlu0 %2908
  %2942 = vrot.lane.b32.xlu0 %v2701, 96
  %v2943 = vpop.permute.xlu0 %2942
  %2944 = vrot.lane.b32.xlu0 %v2702, 96
  %v2945 = vpop.permute.xlu0 %2944
  %2946 = vrot.lane.b32.xlu0 %v2703, 96
  %v2947 = vpop.permute.xlu0 %2946
  %2948 = vrot.lane.b32.xlu0 %v2704, 96
  %v2949 = vpop.permute.xlu0 %2948
  %2950 = vrot.lane.b32.xlu0 %v2705, 96
  %v2951 = vpop.permute.xlu0 %2950
  %2952 = vrot.lane.b32.xlu0 %v2706, 96
  %v2953 = vpop.permute.xlu0 %2952
  %2954 = vrot.lane.b32.xlu0 %v2707, 96
  %v2955 = vpop.permute.xlu0 %2954
  %2956 = vrot.lane.b32.xlu0 %v2708, 96
  %v2957 = vpop.permute.xlu0 %2956
  %2958 = vrot.lane.b32.xlu0 %v2709, 96
  %v2959 = vpop.permute.xlu0 %2958
  %2960 = vrot.lane.b32.xlu0 %v2710, 96
  %v2961 = vpop.permute.xlu0 %2960
  %2962 = vrot.lane.b32.xlu0 %v2711, 96
  %v2963 = vpop.permute.xlu0 %2962
  %2964 = vrot.lane.b32.xlu0 %v2712, 96
  %v2965 = vpop.permute.xlu0 %2964
  %2966 = vrot.lane.b32.xlu0 %v2713, 96
  %v2967 = vpop.permute.xlu0 %2966
  %2968 = vrot.lane.b32.xlu0 %v2714, 96
  %v2969 = vpop.permute.xlu0 %2968
  %2970 = vrot.lane.b32.xlu0 %v2715, 96
  %v2971 = vpop.permute.xlu0 %2970
  %2972 = vrot.lane.b32.xlu0 %v2716, 96
  %v2973 = vpop.permute.xlu0 %2972
  %3006 = vrot.lane.b32.xlu0 %v2733, 32
  %v3007 = vpop.permute.xlu0 %3006
  %3008 = vrot.lane.b32.xlu0 %v2734, 32
  %v3009 = vpop.permute.xlu0 %3008
  %3010 = vrot.lane.b32.xlu0 %v2735, 32
  %v3011 = vpop.permute.xlu0 %3010
  %3012 = vrot.lane.b32.xlu0 %v2736, 32
  %v3013 = vpop.permute.xlu0 %3012
  %3014 = vrot.lane.b32.xlu0 %v2737, 32
  %v3015 = vpop.permute.xlu0 %3014
  %3016 = vrot.lane.b32.xlu0 %v2738, 32
  %v3017 = vpop.permute.xlu0 %3016
  %3018 = vrot.lane.b32.xlu0 %v2739, 32
  %v3019 = vpop.permute.xlu0 %3018
  %3020 = vrot.lane.b32.xlu0 %v2740, 32
  %v3021 = vpop.permute.xlu0 %3020
  %3022 = vrot.lane.b32.xlu0 %v2741, 32
  %v3023 = vpop.permute.xlu0 %3022
  %3024 = vrot.lane.b32.xlu0 %v2742, 32
  %v3025 = vpop.permute.xlu0 %3024
  %3026 = vrot.lane.b32.xlu0 %v2743, 32
  %v3027 = vpop.permute.xlu0 %3026
  %3028 = vrot.lane.b32.xlu0 %v2744, 32
  %v3029 = vpop.permute.xlu0 %3028
  %3030 = vrot.lane.b32.xlu0 %v2745, 32
  %v3031 = vpop.permute.xlu0 %3030
  %3032 = vrot.lane.b32.xlu0 %v2746, 32
  %v3033 = vpop.permute.xlu0 %3032
  %3034 = vrot.lane.b32.xlu0 %v2747, 32
  %v3035 = vpop.permute.xlu0 %3034
  %3036 = vrot.lane.b32.xlu0 %v2748, 32
  %v3037 = vpop.permute.xlu0 %3036
  %3070 = vrot.lane.b32.xlu0 %v2750, 64
  %v3071 = vpop.permute.xlu0 %3070
  %3072 = vrot.lane.b32.xlu0 %v2751, 64
  %v3073 = vpop.permute.xlu0 %3072
  %3074 = vrot.lane.b32.xlu0 %v2752, 64
  %v3075 = vpop.permute.xlu0 %3074
  %3076 = vrot.lane.b32.xlu0 %v2753, 64
  %v3077 = vpop.permute.xlu0 %3076
  %3078 = vrot.lane.b32.xlu0 %v2754, 64
  %v3079 = vpop.permute.xlu0 %3078
  %3080 = vrot.lane.b32.xlu0 %v2755, 64
  %v3081 = vpop.permute.xlu0 %3080
  %3082 = vrot.lane.b32.xlu0 %v2756, 64
  %v3083 = vpop.permute.xlu0 %3082
  %3084 = vrot.lane.b32.xlu0 %v2757, 64
  %v3085 = vpop.permute.xlu0 %3084
  %3086 = vrot.lane.b32.xlu0 %v2758, 64
  %v3087 = vpop.permute.xlu0 %3086
  %3088 = vrot.lane.b32.xlu0 %v2759, 64
  %v3089 = vpop.permute.xlu0 %3088
  %3090 = vrot.lane.b32.xlu0 %v2760, 64
  %v3091 = vpop.permute.xlu0 %3090
  %3092 = vrot.lane.b32.xlu0 %v2761, 64
  %v3093 = vpop.permute.xlu0 %3092
  %3094 = vrot.lane.b32.xlu0 %v2762, 64
  %v3095 = vpop.permute.xlu0 %3094
  %3096 = vrot.lane.b32.xlu0 %v2763, 64
  %v3097 = vpop.permute.xlu0 %3096
  %3098 = vrot.lane.b32.xlu0 %v2764, 64
  %v3099 = vpop.permute.xlu0 %3098
  %3100 = vrot.lane.b32.xlu0 %v2765, 64
  %v3101 = vpop.permute.xlu0 %3100
  %3134 = vrot.lane.b32.xlu0 %v2766, 96
  %v3135 = vpop.permute.xlu0 %3134
  %3136 = vrot.lane.b32.xlu0 %v2767, 96
  %v3137 = vpop.permute.xlu0 %3136
  %3138 = vrot.lane.b32.xlu0 %v2768, 96
  %v3139 = vpop.permute.xlu0 %3138
  %3140 = vrot.lane.b32.xlu0 %v2769, 96
  %v3141 = vpop.permute.xlu0 %3140
  %3142 = vrot.lane.b32.xlu0 %v2770, 96
  %v3143 = vpop.permute.xlu0 %3142
  %3144 = vrot.lane.b32.xlu0 %v2771, 96
  %v3145 = vpop.permute.xlu0 %3144
  %3146 = vrot.lane.b32.xlu0 %v2772, 96
  %v3147 = vpop.permute.xlu0 %3146
  %3148 = vrot.lane.b32.xlu0 %v2773, 96
  %v3149 = vpop.permute.xlu0 %3148
  %3150 = vrot.lane.b32.xlu0 %v2774, 96
  %v3151 = vpop.permute.xlu0 %3150
  %3152 = vrot.lane.b32.xlu0 %v2775, 96
  %v3153 = vpop.permute.xlu0 %3152
  %3154 = vrot.lane.b32.xlu0 %v2776, 96
  %v3155 = vpop.permute.xlu0 %3154
  %3156 = vrot.lane.b32.xlu0 %v2777, 96
  %v3157 = vpop.permute.xlu0 %3156
  %3158 = vrot.lane.b32.xlu0 %v2778, 96
  %v3159 = vpop.permute.xlu0 %3158
  %3160 = vrot.lane.b32.xlu0 %v2779, 96
  %v3161 = vpop.permute.xlu0 %3160
  %3162 = vrot.lane.b32.xlu0 %v2780, 96
  %v3163 = vpop.permute.xlu0 %3162
  %3164 = vrot.lane.b32.xlu0 %v2781, 96
  %v3165 = vpop.permute.xlu0 %3164
  %v3182 = vsel %vm21, %v2653, %v2815
  %v3183 = vsel %vm21, %v2654, %v2817
  %v3184 = vsel %vm21, %v2655, %v2819
  %v3185 = vsel %vm21, %v2656, %v2821
  %v3186 = vsel %vm21, %v2657, %v2823
  %v3187 = vsel %vm21, %v2658, %v2825
  %v3188 = vsel %vm21, %v2659, %v2827
  %v3189 = vsel %vm21, %v2660, %v2829
  %v3190 = vsel %vm21, %v2661, %v2831
  %v3191 = vsel %vm21, %v2662, %v2833
  %v3192 = vsel %vm21, %v2663, %v2835
  %v3193 = vsel %vm21, %v2664, %v2837
  %v3194 = vsel %vm21, %v2665, %v2839
  %v3195 = vsel %vm21, %v2666, %v2841
  %v3196 = vsel %vm21, %v2667, %v2843
  %v3197 = vsel %vm21, %v2668, %v2845
  %vm3198 = vcmask 523264
  %v3199 = vsel %vm3198, %v3182, %v2879
  %v3200 = vsel %vm3198, %v3183, %v2881
  %v3201 = vsel %vm3198, %v3184, %v2883
  %v3202 = vsel %vm3198, %v3185, %v2885
  %v3203 = vsel %vm3198, %v3186, %v2887
  %v3204 = vsel %vm3198, %v3187, %v2889
  %v3205 = vsel %vm3198, %v3188, %v2891
  %v3206 = vsel %vm3198, %v3189, %v2893
  %v3207 = vsel %vm3198, %v3190, %v2895
  %v3208 = vsel %vm3198, %v3191, %v2897
  %v3209 = vsel %vm3198, %v3192, %v2899
  %v3210 = vsel %vm3198, %v3193, %v2901
  %v3211 = vsel %vm3198, %v3194, %v2903
  %v3212 = vsel %vm3198, %v3195, %v2905
  %v3213 = vsel %vm3198, %v3196, %v2907
  %v3214 = vsel %vm3198, %v3197, %v2909
  %vm3215 = vcmask 785408
  %v3216 = vsel %vm3215, %v3199, %v2943
  %v3217 = vsel %vm3215, %v3200, %v2945
  %v3218 = vsel %vm3215, %v3201, %v2947
  %v3219 = vsel %vm3215, %v3202, %v2949
  %v3220 = vsel %vm3215, %v3203, %v2951
  %v3221 = vsel %vm3215, %v3204, %v2953
  %v3222 = vsel %vm3215, %v3205, %v2955
  %v3223 = vsel %vm3215, %v3206, %v2957
  %v3224 = vsel %vm3215, %v3207, %v2959
  %v3225 = vsel %vm3215, %v3208, %v2961
  %v3226 = vsel %vm3215, %v3209, %v2963
  %v3227 = vsel %vm3215, %v3210, %v2965
  %v3228 = vsel %vm3215, %v3211, %v2967
  %v3229 = vsel %vm3215, %v3212, %v2969
  %v3230 = vsel %vm3215, %v3213, %v2971
  %v3231 = vsel %vm3215, %v3214, %v2973
  %v3232 = vsel %vm21, %v2717, %v3007
  %v3233 = vsel %vm21, %v2718, %v3009
  %v3234 = vsel %vm21, %v2719, %v3011
  %v3235 = vsel %vm21, %v2720, %v3013
  %v3236 = vsel %vm21, %v2721, %v3015
  %v3237 = vsel %vm21, %v2722, %v3017
  %v3238 = vsel %vm21, %v2723, %v3019
  %v3239 = vsel %vm21, %v2724, %v3021
  %v3240 = vsel %vm21, %v2725, %v3023
  %v3241 = vsel %vm21, %v2726, %v3025
  %v3242 = vsel %vm21, %v2727, %v3027
  %v3243 = vsel %vm21, %v2728, %v3029
  %v3244 = vsel %vm21, %v2729, %v3031
  %v3245 = vsel %vm21, %v2730, %v3033
  %v3246 = vsel %vm21, %v2731, %v3035
  %v3247 = vsel %vm21, %v2732, %v3037
  %v3248 = vsel %vm3198, %v3232, %v3071
  %v3249 = vsel %vm3198, %v3233, %v3073
  %v3250 = vsel %vm3198, %v3234, %v3075
  %v3251 = vsel %vm3198, %v3235, %v3077
  %v3252 = vsel %vm3198, %v3236, %v3079
  %v3253 = vsel %vm3198, %v3237, %v3081
  %v3254 = vsel %vm3198, %v3238, %v3083
  %v3255 = vsel %vm3198, %v3239, %v3085
  %v3256 = vsel %vm3198, %v3240, %v3087
  %v3257 = vsel %vm3198, %v3241, %v3089
  %v3258 = vsel %vm3198, %v3242, %v3091
  %v3259 = vsel %vm3198, %v3243, %v3093
  %v3260 = vsel %vm3198, %v3244, %v3095
  %v3261 = vsel %vm3198, %v3245, %v3097
  %v3262 = vsel %vm3198, %v3246, %v3099
  %v3263 = vsel %vm3198, %v3247, %v3101
  %v3264 = vsel %vm3215, %v3248, %v3135
  %v3265 = vsel %vm3215, %v3249, %v3137
  %v3266 = vsel %vm3215, %v3250, %v3139
  %v3267 = vsel %vm3215, %v3251, %v3141
  %v3268 = vsel %vm3215, %v3252, %v3143
  %v3269 = vsel %vm3215, %v3253, %v3145
  %v3270 = vsel %vm3215, %v3254, %v3147
  %v3271 = vsel %vm3215, %v3255, %v3149
  %v3272 = vsel %vm3215, %v3256, %v3151
  %v3273 = vsel %vm3215, %v3257, %v3153
  %v3274 = vsel %vm3215, %v3258, %v3155
  %v3275 = vsel %vm3215, %v3259, %v3157
  %v3276 = vsel %vm3215, %v3260, %v3159
  %v3277 = vsel %vm3215, %v3261, %v3161
  %v3278 = vsel %vm3215, %v3262, %v3163
  %v3279 = vsel %vm3215, %v3263, %v3165
  %v3280 = vpack.c.bf16 %v3217, %v3216
  %v3281 = vpack.c.bf16 %v3265, %v3264
  %v3282 = vpack.c.bf16 %v2783, %v2782
  %v3283 = vpack.c.bf16 %v3219, %v3218
  %v3284 = vpack.c.bf16 %v3267, %v3266
  %v3285 = vpack.c.bf16 %v2785, %v2784
  %v3286 = vpack.c.bf16 %v3221, %v3220
  %v3287 = vpack.c.bf16 %v3269, %v3268
  %v3288 = vpack.c.bf16 %v2787, %v2786
  %v3289 = vpack.c.bf16 %v3223, %v3222
  %v3290 = vpack.c.bf16 %v3271, %v3270
  %v3291 = vpack.c.bf16 %v2789, %v2788
  %v3292 = vpack.c.bf16 %v3225, %v3224
  %v3293 = vpack.c.bf16 %v3273, %v3272
  %v3294 = vpack.c.bf16 %v2791, %v2790
  %v3295 = vpack.c.bf16 %v3227, %v3226
  %v3296 = vpack.c.bf16 %v3275, %v3274
  %v3297 = vpack.c.bf16 %v2793, %v2792
  %v3298 = vpack.c.bf16 %v3229, %v3228
  %v3299 = vpack.c.bf16 %v3277, %v3276
  %v3300 = vpack.c.bf16 %v2795, %v2794
  %v3301 = vpack.c.bf16 %v3231, %v3230
  %v3302 = vpack.c.bf16 %v3279, %v3278
  %v3303 = vpack.c.bf16 %v2797, %v2796
  %v3304 = vld [vmem:[%s3] sm:$0xf]
  %v3305 = vld [vmem:[%s3 + $0x4] sm:$0xf]
  %v3306 = vld [vmem:[%s3 + $0x8] sm:$0xf]
  %v3307 = vld [vmem:[%s3 + $0xc] sm:$0xf]
  %v3308 = vld [vmem:[%s3 + $0x10] sm:$0xf]
  %v3309 = vld [vmem:[%s3 + $0x14] sm:$0xf]
  %v3310 = vld [vmem:[%s3 + $0x18] sm:$0xf]
  %v3311 = vld [vmem:[%s3 + $0x1c] sm:$0xf]
  %v3312 = vld [vmem:[%s3 + $0x20] sm:$0xf]
  %v3313 = vld [vmem:[%s3 + $0x24] sm:$0xf]
  %v3314 = vld [vmem:[%s3 + $0x28] sm:$0xf]
  %v3315 = vld [vmem:[%s3 + $0x2c] sm:$0xf]
  %v3316 = vld [vmem:[%s3 + $0x30] sm:$0xf]
  %v3317 = vld [vmem:[%s3 + $0x34] sm:$0xf]
  %v3318 = vld [vmem:[%s3 + $0x38] sm:$0xf]
  %v3319 = vld [vmem:[%s3 + $0x3c] sm:$0xf]
  %v3320 = vld [vmem:[%s3 + $0x40] sm:$0xf]
  %v3321 = vld [vmem:[%s3 + $0x44] sm:$0xf]
  %v3322 = vld [vmem:[%s3 + $0x48] sm:$0xf]
  %v3323 = vld [vmem:[%s3 + $0x4c] sm:$0xf]
  %v3324 = vld [vmem:[%s3 + $0x50] sm:$0xf]
  %v3325 = vld [vmem:[%s3 + $0x54] sm:$0xf]
  %v3326 = vld [vmem:[%s3 + $0x58] sm:$0xf]
  %v3327 = vld [vmem:[%s3 + $0x5c] sm:$0xf]
  %v3328 = vld [vmem:[%s3 + $0x60] sm:$0xf]
  %v3329 = vld [vmem:[%s3 + $0x64] sm:$0xf]
  %v3330 = vld [vmem:[%s3 + $0x68] sm:$0xf]
  %v3331 = vld [vmem:[%s3 + $0x6c] sm:$0xf]
  %v3332 = vld [vmem:[%s3 + $0x70] sm:$0xf]
  %v3333 = vld [vmem:[%s3 + $0x74] sm:$0xf]
  %v3334 = vld [vmem:[%s3 + $0x78] sm:$0xf]
  %v3335 = vld [vmem:[%s3 + $0x7c] sm:$0xf]
  %v3336 = vld [vmem:[%s3 + $0x80] sm:$0xf]
  %v3337 = vld [vmem:[%s3 + $0x84] sm:$0xf]
  %v3338 = vld [vmem:[%s3 + $0x88] sm:$0xf]
  %v3339 = vld [vmem:[%s3 + $0x8c] sm:$0xf]
  %v3340 = vld [vmem:[%s4] sm:$0x1]
  %v3342 = vlaneseq
  %v3343 = vshrl.u32 %v3342, 7
  %v3344 = vsub.s32 0, %v3343
  %v3345 = vrot.slane %v3340, %v3344
  %v3383 = vunpack.c.l.b16 %v3304
  %v3384 = vunpack.c.l.b16 %v3305
  %v3385 = vunpack.c.l.b16 %v3306
  %v3386 = vunpack.c.l.b16 %v3307
  %v3387 = vunpack.c.l.b16 %v3308
  %v3388 = vunpack.c.l.b16 %v3309
  %v3389 = vunpack.c.l.b16 %v3310
  %v3390 = vunpack.c.l.b16 %v3311
  %v3391 = vunpack.c.l.b16 %v3312
  %v3392 = vunpack.c.l.b16 %v3313
  %v3393 = vunpack.c.l.b16 %v3314
  %v3394 = vunpack.c.l.b16 %v3315
  %v3395 = vunpack.c.l.b16 %v3316
  %v3396 = vunpack.c.l.b16 %v3317
  %v3397 = vunpack.c.l.b16 %v3318
  %v3398 = vunpack.c.l.b16 %v3319
  %v3399 = vunpack.c.l.b16 %v3320
  %v3400 = vunpack.c.l.b16 %v3321
  %v3401 = vunpack.c.l.b16 %v3322
  %v3402 = vunpack.c.l.b16 %v3323
  %v3403 = vunpack.c.l.b16 %v3324
  %v3404 = vunpack.c.l.b16 %v3325
  %v3405 = vunpack.c.l.b16 %v3326
  %v3406 = vunpack.c.l.b16 %v3327
  %v3407 = vunpack.c.l.b16 %v3328
  %v3408 = vunpack.c.l.b16 %v3329
  %v3409 = vunpack.c.l.b16 %v3330
  %v3410 = vunpack.c.l.b16 %v3331
  %v3411 = vunpack.c.l.b16 %v3332
  %v3412 = vunpack.c.l.b16 %v3333
  %v3413 = vunpack.c.l.b16 %v3334
  %v3414 = vunpack.c.l.b16 %v3335
  %v3415 = vunpack.c.l.b16 %v3336
  %v3416 = vunpack.c.l.b16 %v3337
  %v3417 = vunpack.c.l.b16 %v3338
  %v3418 = vunpack.c.l.b16 %v3339
  %v3419 = vpack.c.b16 %v3384, %v3383
  %v3420 = vpack.c.b16 %v3386, %v3385
  %v3421 = vpack.c.b16 %v3388, %v3387
  %v3422 = vpack.c.b16 %v3390, %v3389
  %v3423 = vpack.c.b16 %v3392, %v3391
  %v3424 = vpack.c.b16 %v3394, %v3393
  %v3425 = vpack.c.b16 %v3396, %v3395
  %v3426 = vpack.c.b16 %v3398, %v3397
  %v3427 = vpack.c.b16 %v3400, %v3399
  %v3428 = vpack.c.b16 %v3402, %v3401
  %v3429 = vpack.c.b16 %v3404, %v3403
  %v3430 = vpack.c.b16 %v3406, %v3405
  %v3431 = vpack.c.b16 %v3408, %v3407
  %v3432 = vpack.c.b16 %v3410, %v3409
  %v3433 = vpack.c.b16 %v3412, %v3411
  %v3434 = vpack.c.b16 %v3414, %v3413
  %v3435 = vpack.c.b16 %v3416, %v3415
  %v3436 = vpack.c.b16 %v3418, %v3417
  %v3456 = vsel %vm21, %v3282, 0
  %v3459 = vsel %vm21, %v3285, 0
  %v3462 = vsel %vm21, %v3288, 0
  %v3465 = vsel %vm21, %v3291, 0
  %v3468 = vsel %vm21, %v3294, 0
  %v3471 = vsel %vm21, %v3297, 0
  %v3474 = vsel %vm21, %v3300, 0
  %v3477 = vsel %vm21, %v3303, 0
  %3479 = vmatprep.subr.bf16.mxu0 0
  %3480 = vmatpush1.bf16.msra.mxu0 %v3419
  %3481 = vmatprep.subr.bf16.mxu0 0
  %3482 = vmatpush1.bf16.msra.mxu0 %v3420
  %3483 = vmatprep.subr.bf16.mxu0 0
  %3484 = vmatpush1.bf16.msra.mxu0 %v3421
  %3485 = vmatprep.subr.bf16.mxu0 0
  %3486 = vmatpush1.bf16.msra.mxu0 %v3422
  %3487 = vmatprep.subr.bf16.mxu0 0
  %3488 = vmatpush1.bf16.msra.mxu0 %v3423
  %3489 = vmatprep.subr.bf16.mxu0 0
  %3490 = vmatpush1.bf16.msra.mxu0 %v3424
  %3491 = vmatprep.subr.bf16.mxu0 0
  %3492 = vmatpush1.bf16.msra.mxu0 %v3425
  %3493 = vmatprep.subr.bf16.mxu0 0
  %3494 = vmatpush1.bf16.msra.mxu0 %v3426
  %3495 = vmatprep.subr.bf16.mxu0 0
  %3496 = vmatpush1.bf16.msra.mxu0 %v3427
  %3497 = vmatprep.subr.bf16.mxu0 0
  %3498 = vmatpush1.bf16.msra.mxu0 %v3428
  %3499 = vmatprep.subr.bf16.mxu0 0
  %3500 = vmatpush1.bf16.msra.mxu0 %v3429
  %3501 = vmatprep.subr.bf16.mxu0 0
  %3502 = vmatpush1.bf16.msra.mxu0 %v3430
  %3503 = vmatprep.subr.bf16.mxu0 0
  %3504 = vmatpush1.bf16.msra.mxu0 %v3431
  %3505 = vmatprep.subr.bf16.mxu0 0
  %3506 = vmatpush1.bf16.msra.mxu0 %v3432
  %3507 = vmatprep.subr.bf16.mxu0 0
  %3508 = vmatpush1.bf16.msra.mxu0 %v3433
  %3509 = vmatprep.subr.bf16.mxu0 0
  %3510 = vmatpush1.bf16.msra.mxu0 %v3434
  %3511 = vmatprep.mubr.bf16.mxu0 %v3281
  %3512 = vmatmul.mubr.bf16.gmra.mrb[0].mxu0 %v3280
  %v3513 = vpop.f32.mrb[0].mxu0
  %v3514 = vadd.f32 %v3345, %v3513
  %v3515 = vpop.f32.mrb[0].mxu0
  %v3516 = vpop.f32.mrb[0].mxu0
  %v3517 = vadd.f32 %v3345, %v3516
  %v3518 = vpop.f32.mrb[0].mxu0
  %3519 = vmatprep.mubr.bf16.mxu0 %v3284
  %3520 = vmatmul.mubr.bf16.gmra.mrb[0].mxu0 %v3283
  %v3521 = vpop.f32.mrb[0].mxu0
  %v3522 = vadd.f32 %v3345, %v3521
  %v3523 = vpop.f32.mrb[0].mxu0
  %v3524 = vpop.f32.mrb[0].mxu0
  %v3525 = vadd.f32 %v3345, %v3524
  %v3526 = vpop.f32.mrb[0].mxu0
  %3527 = vmatprep.mubr.bf16.mxu0 %v3287
  %3528 = vmatmul.mubr.bf16.gmra.mrb[0].mxu0 %v3286
  %v3529 = vpop.f32.mrb[0].mxu0
  %v3530 = vadd.f32 %v3345, %v3529
  %v3531 = vpop.f32.mrb[0].mxu0
  %v3532 = vpop.f32.mrb[0].mxu0
  %v3533 = vadd.f32 %v3345, %v3532
  %v3534 = vpop.f32.mrb[0].mxu0
  %3535 = vmatprep.mubr.bf16.mxu0 %v3290
  %3536 = vmatmul.mubr.bf16.gmra.mrb[0].mxu0 %v3289
  %v3537 = vpop.f32.mrb[0].mxu0
  %v3538 = vadd.f32 %v3345, %v3537
  %v3539 = vpop.f32.mrb[0].mxu0
  %v3540 = vpop.f32.mrb[0].mxu0
  %v3541 = vadd.f32 %v3345, %v3540
  %v3542 = vpop.f32.mrb[0].mxu0
  %3543 = vmatprep.mubr.bf16.mxu0 %v3293
  %3544 = vmatmul.mubr.bf16.gmra.mrb[0].mxu0 %v3292
  %v3545 = vpop.f32.mrb[0].mxu0
  %v3546 = vadd.f32 %v3345, %v3545
  %v3547 = vpop.f32.mrb[0].mxu0
  %v3548 = vpop.f32.mrb[0].mxu0
  %v3549 = vadd.f32 %v3345, %v3548
  %v3550 = vpop.f32.mrb[0].mxu0
  %3551 = vmatprep.mubr.bf16.mxu0 %v3296
  %3552 = vmatmul.mubr.bf16.gmra.mrb[0].mxu0 %v3295
  %v3553 = vpop.f32.mrb[0].mxu0
  %v3554 = vadd.f32 %v3345, %v3553
  %v3555 = vpop.f32.mrb[0].mxu0
  %v3556 = vpop.f32.mrb[0].mxu0
  %v3557 = vadd.f32 %v3345, %v3556
  %v3558 = vpop.f32.mrb[0].mxu0
  %3559 = vmatprep.mubr.bf16.mxu0 %v3299
  %3560 = vmatmul.mubr.bf16.gmra.mrb[0].mxu0 %v3298
  %v3561 = vpop.f32.mrb[0].mxu0
  %v3562 = vadd.f32 %v3345, %v3561
  %v3563 = vpop.f32.mrb[0].mxu0
  %v3564 = vpop.f32.mrb[0].mxu0
  %v3565 = vadd.f32 %v3345, %v3564
  %v3566 = vpop.f32.mrb[0].mxu0
  %3567 = vmatprep.mubr.bf16.mxu0 %v3302
  %3568 = vmatmul.mubr.bf16.gmra.mrb[0].mxu0 %v3301
  %v3569 = vpop.f32.mrb[0].mxu0
  %v3570 = vadd.f32 %v3345, %v3569
  %v3571 = vpop.f32.mrb[0].mxu0
  %v3572 = vpop.f32.mrb[0].mxu0
  %v3573 = vadd.f32 %v3345, %v3572
  %v3574 = vpop.f32.mrb[0].mxu0
  %3575 = vdwg.mxu0
  %3576 = vmatprep.subr.bf16.mxu0 0
  %3577 = vmatpush1.bf16.msra.mxu0 %v3435
  %3578 = vmatprep.subr.bf16.mxu0 0
  %3579 = vmatpush1.bf16.msra.mxu0 %v3436
  %3580 = vmatprep.subr.bf16.mxu0 0
  %3581 = vmatpush1.bf16.msra.mxu0 0
  %3582 = vmatprep.subr.bf16.mxu0 0
  %3583 = vmatpush1.bf16.msra.mxu0 0
  %3584 = vmatprep.subr.bf16.mxu0 0
  %3585 = vmatpush1.bf16.msra.mxu0 0
  %3586 = vmatprep.subr.bf16.mxu0 0
  %3587 = vmatpush1.bf16.msra.mxu0 0
  %3588 = vmatprep.subr.bf16.mxu0 0
  %3589 = vmatpush1.bf16.msra.mxu0 0
  %3590 = vmatprep.subr.bf16.mxu0 0
  %3591 = vmatpush1.bf16.msra.mxu0 0
  %3592 = vmatprep.subr.bf16.mxu0 0
  %3593 = vmatpush1.bf16.msra.mxu0 0
  %3594 = vmatprep.subr.bf16.mxu0 0
  %3595 = vmatpush1.bf16.msra.mxu0 0
  %3596 = vmatprep.subr.bf16.mxu0 0
  %3597 = vmatpush1.bf16.msra.mxu0 0
  %3598 = vmatprep.subr.bf16.mxu0 0
  %3599 = vmatpush1.bf16.msra.mxu0 0
  %3600 = vmatprep.subr.bf16.mxu0 0
  %3601 = vmatpush1.bf16.msra.mxu0 0
  %3602 = vmatprep.subr.bf16.mxu0 0
  %3603 = vmatpush1.bf16.msra.mxu0 0
  %3604 = vmatprep.subr.bf16.mxu0 0
  %3605 = vmatpush1.bf16.msra.mxu0 0
  %3606 = vmatprep.subr.bf16.mxu0 0
  %3607 = vmatpush1.bf16.msra.mxu0 0
  %3608 = vmatprep.mubr.bf16.mxu0 0
  %3609 = vmatmul.mubr.bf16.gmra.mrb[0].mxu0 %v3456
  %v3610 = vpop.f32.mrb[0].mxu0
  %v3611 = vadd.f32 %v3514, %v3610
  %v3612 = vpop.f32.mrb[0].mxu0
  %v3613 = vpop.f32.mrb[0].mxu0
  %v3614 = vadd.f32 %v3517, %v3613
  %v3615 = vpop.f32.mrb[0].mxu0
  %3616 = vmatprep.mubr.bf16.mxu0 0
  %3617 = vmatmul.mubr.bf16.gmra.mrb[0].mxu0 %v3459
  %v3618 = vpop.f32.mrb[0].mxu0
  %v3619 = vadd.f32 %v3522, %v3618
  %v3620 = vpop.f32.mrb[0].mxu0
  %v3621 = vpop.f32.mrb[0].mxu0
  %v3622 = vadd.f32 %v3525, %v3621
  %v3623 = vpop.f32.mrb[0].mxu0
  %3624 = vmatprep.mubr.bf16.mxu0 0
  %3625 = vmatmul.mubr.bf16.gmra.mrb[0].mxu0 %v3462
  %v3626 = vpop.f32.mrb[0].mxu0
  %v3627 = vadd.f32 %v3530, %v3626
  %v3628 = vpop.f32.mrb[0].mxu0
  %v3629 = vpop.f32.mrb[0].mxu0
  %v3630 = vadd.f32 %v3533, %v3629
  %v3631 = vpop.f32.mrb[0].mxu0
  %3632 = vmatprep.mubr.bf16.mxu0 0
  %3633 = vmatmul.mubr.bf16.gmra.mrb[0].mxu0 %v3465
  %v3634 = vpop.f32.mrb[0].mxu0
  %v3635 = vadd.f32 %v3538, %v3634
  %v3636 = vpop.f32.mrb[0].mxu0
  %v3637 = vpop.f32.mrb[0].mxu0
  %v3638 = vadd.f32 %v3541, %v3637
  %v3639 = vpop.f32.mrb[0].mxu0
  %3640 = vmatprep.mubr.bf16.mxu0 0
  %3641 = vmatmul.mubr.bf16.gmra.mrb[0].mxu0 %v3468
  %v3642 = vpop.f32.mrb[0].mxu0
  %v3643 = vadd.f32 %v3546, %v3642
  %v3644 = vpop.f32.mrb[0].mxu0
  %v3645 = vpop.f32.mrb[0].mxu0
  %v3646 = vadd.f32 %v3549, %v3645
  %v3647 = vpop.f32.mrb[0].mxu0
  %3648 = vmatprep.mubr.bf16.mxu0 0
  %3649 = vmatmul.mubr.bf16.gmra.mrb[0].mxu0 %v3471
  %v3650 = vpop.f32.mrb[0].mxu0
  %v3651 = vadd.f32 %v3554, %v3650
  %v3652 = vpop.f32.mrb[0].mxu0
  %v3653 = vpop.f32.mrb[0].mxu0
  %v3654 = vadd.f32 %v3557, %v3653
  %v3655 = vpop.f32.mrb[0].mxu0
  %3656 = vmatprep.mubr.bf16.mxu0 0
  %3657 = vmatmul.mubr.bf16.gmra.mrb[0].mxu0 %v3474
  %v3658 = vpop.f32.mrb[0].mxu0
  %v3659 = vadd.f32 %v3562, %v3658
  %v3660 = vpop.f32.mrb[0].mxu0
  %v3661 = vpop.f32.mrb[0].mxu0
  %v3662 = vadd.f32 %v3565, %v3661
  %v3663 = vpop.f32.mrb[0].mxu0
  %3664 = vmatprep.mubr.bf16.mxu0 0
  %3665 = vmatmul.mubr.bf16.gmra.mrb[0].mxu0 %v3477
  %v3666 = vpop.f32.mrb[0].mxu0
  %v3667 = vadd.f32 %v3570, %v3666
  %v3668 = vpop.f32.mrb[0].mxu0
  %v3669 = vpop.f32.mrb[0].mxu0
  %v3670 = vadd.f32 %v3573, %v3669
  %v3671 = vpop.f32.mrb[0].mxu0
  %3672 = vdwg.mxu0
  %v3673 = vmax.f32 %v3611, 0.0
  %v3674 = vmax.f32 %v3614, 0.0
  %v3675 = vmax.f32 %v3619, 0.0
  %v3676 = vmax.f32 %v3622, 0.0
  %v3677 = vmax.f32 %v3627, 0.0
  %v3678 = vmax.f32 %v3630, 0.0
  %v3679 = vmax.f32 %v3635, 0.0
  %v3680 = vmax.f32 %v3638, 0.0
  %v3681 = vmax.f32 %v3643, 0.0
  %v3682 = vmax.f32 %v3646, 0.0
  %v3683 = vmax.f32 %v3651, 0.0
  %v3684 = vmax.f32 %v3654, 0.0
  %v3685 = vmax.f32 %v3659, 0.0
  %v3686 = vmax.f32 %v3662, 0.0
  %v3687 = vmax.f32 %v3667, 0.0
  %v3688 = vmax.f32 %v3670, 0.0
  %v3689 = vmax.f32 %v3673, %v3675
  %v3690 = vmax.f32 %v3674, %v3676
  %v3691 = vmax.f32 %v3677, %v3679
  %v3692 = vmax.f32 %v3678, %v3680
  %v3693 = vmax.f32 %v3681, %v3683
  %v3694 = vmax.f32 %v3682, %v3684
  %v3695 = vmax.f32 %v3685, %v3687
  %v3696 = vmax.f32 %v3686, %v3688
  %3697 = vst.msk [vmem:[#allocation5] sm:$0xff] %vm3198, %v3689
  %3698 = vst.msk [vmem:[#allocation5 + $0x8] sm:$0xff] %vm3198, %v3690
  %3699 = vst.msk [vmem:[#allocation5 + $0x10] sm:$0xff] %vm3198, %v3691
  %3700 = vst.msk [vmem:[#allocation5 + $0x18] sm:$0xff] %vm3198, %v3692
  %3701 = vst.msk [vmem:[#allocation5 + $0x20] sm:$0xff] %vm3198, %v3693
  %3702 = vst.msk [vmem:[#allocation5 + $0x28] sm:$0xff] %vm3198, %v3694
  %3703 = vst.msk [vmem:[#allocation5 + $0x30] sm:$0xff] %vm3198, %v3695
  %3704 = vst.msk [vmem:[#allocation5 + $0x38] sm:$0xff] %vm3198, %v3696
  %v3705 = vld [vmem:[#allocation5] ss:$8 sm:$0xf]
  %v3706 = vld [vmem:[#allocation5] ss:$8 sm:$0xf0]
  %v3707 = vor.u32 %v3705, %v3706
  %s3708 = scalar_lea.vmem [#allocation5], 1
  %v3709 = vld [vmem:[%s3708] ss:$8 sm:$0xf]
  %v3710 = vld [vmem:[%s3708] ss:$8 sm:$0xf0]
  %v3711 = vor.u32 %v3709, %v3710
  %v3712 = vmax.f32 %v3707, %v3711
  %s3713 = scalar_lea.vmem [#allocation5], 2
  %v3714 = vld [vmem:[%s3713] ss:$8 sm:$0xf]
  %v3715 = vld [vmem:[%s3713] ss:$8 sm:$0xf0]
  %v3716 = vor.u32 %v3714, %v3715
  %s3717 = scalar_lea.vmem [#allocation5], 3
  %v3718 = vld [vmem:[%s3717] ss:$8 sm:$0xf]
  %v3719 = vld [vmem:[%s3717] ss:$8 sm:$0xf0]
  %v3720 = vor.u32 %v3718, %v3719
  %v3721 = vmax.f32 %v3716, %v3720
  %s3722 = scalar_lea.vmem [#allocation5], 4
  %v3723 = vld [vmem:[%s3722] ss:$8 sm:$0xf]
  %v3724 = vld [vmem:[%s3722] ss:$8 sm:$0xf0]
  %v3725 = vor.u32 %v3723, %v3724
  %s3726 = scalar_lea.vmem [#allocation5], 5
  %v3727 = vld [vmem:[%s3726] ss:$8 sm:$0xf]
  %v3728 = vld [vmem:[%s3726] ss:$8 sm:$0xf0]
  %v3729 = vor.u32 %v3727, %v3728
  %v3730 = vmax.f32 %v3725, %v3729
  %s3731 = scalar_lea.vmem [#allocation5], 6
  %v3732 = vld [vmem:[%s3731] ss:$8 sm:$0xf]
  %v3733 = vld [vmem:[%s3731] ss:$8 sm:$0xf0]
  %v3734 = vor.u32 %v3732, %v3733
  %s3735 = scalar_lea.vmem [#allocation5], 7
  %v3736 = vld [vmem:[%s3735] ss:$8 sm:$0xf]
  %v3737 = vld [vmem:[%s3735] ss:$8 sm:$0xf0]
  %v3738 = vor.u32 %v3736, %v3737
  %v3739 = vmax.f32 %v3734, %v3738
  %3741 = vrot.lane.b32.xlu0 %v3721, 64
  %v3742 = vpop.permute.xlu0 %3741
  %3745 = vrot.lane.b32.xlu0 %v3739, 64
  %v3746 = vpop.permute.xlu0 %3745
  %v3748 = vsel %vm3198, %v3712, %v3742
  %v3749 = vsel %vm3198, %v3730, %v3746
  %v3750 = vpack.c.bf16 %v3748, %v3748
  %v3751 = vpack.c.bf16 %v3749, %v3749
  %v3754 = vcombine.low %v3750, %v3751
  %v3756 = vunpack.c.l.s4 1966171168
  %v3757 = vunpack.c.0.s8 %v3756
  %v3758 = vlaneseq
  %v3759 = vshrl.u32 %v3758, 7
  %v3760 = vsub.s32 %v3757, %v3759
  %v3761 = vrot.slane %v3754, %v3760
  %v3763 = vunpack.c.l.s4 1966171168
  %v3764 = vunpack.c.0.s8 %v3763
  %v3765 = vlaneseq
  %v3766 = vshrl.u32 %v3765, 7
  %v3767 = vsub.s32 %v3764, %v3766
  %v3768 = vrot.slane %v3761, %v3767
  %3770 = vst [vmem:[%s5] sm:$0x3] %v3768
  %v3771 = vcombine.high %v3761, %v3761
  %v3773 = vunpack.c.l.s4 1966171168
  %v3774 = vunpack.c.0.s8 %v3773
  %v3775 = vlaneseq
  %v3776 = vshrl.u32 %v3775, 7
  %v3777 = vsub.s32 %v3774, %v3776
  %v3778 = vrot.slane %v3771, %v3777
  %s3780 = scalar_lea.vmem %s5, 2
  %3781 = vst [vmem:[%s3780] sm:$0x3] %v3778
  %v3782 = vcombine.high %v3768, %v3768
  %s3784 = scalar_lea.vmem %s5, 4
  %3785 = vst [vmem:[%s3784] sm:$0x3] %v3782
  %v3786 = vcombine.high %v3778, %v3778
  %s3788 = scalar_lea.vmem %s5, 6
  %3789 = vst [vmem:[%s3788] sm:$0x3] %v3786
  // Predicated region
  $region22: #{cnn_lstm_forward.2} parent=0 // pred_check
    _
  $region23: #{cnn_lstm_forward.2} parent=0 // pred_check_branch
    %3791 = sbr.rel (0) target = $region25
  $region24: #{cnn_lstm_forward.2} parent=0 // pred_region
    _
  $region25: #{cnn_lstm_forward.2} parent=0 // pred_fallthru
    _
  // Predicated region
  $region26: #{cnn_lstm_forward.2} parent=0 // pred_check
    _
  $region27: #{cnn_lstm_forward.2} parent=0 // pred_check_branch
    %3793 = sbr.rel (0) target = $region29
  $region28: #{cnn_lstm_forward.2} parent=0 // pred_region
    _
  $region29: #{cnn_lstm_forward.2} parent=0 // pred_fallthru
    _

</llo_original>
